<compile_context>
chip_gen: v7x
topology: tpu7x:2x2x1
jax: 0.10.0
libtpu: 0.0.40
codegen_flags: <defaults>
</compile_context>

<pallas_src>
import functools
import math

import numpy as np
import jax
import jax.numpy as jnp
from jax.experimental import pallas as pl
from jax.experimental.pallas import tpu as pltpu


def _round_up(x, m):
    return (x + m - 1) // m * m


# ----------------------------- fused Pallas kernel --------------------------

def _encoder_kernel(x_ref, *refs, layers, hp, h5, n_tile):
    """Whole CNNEncoder forward on VMEM-resident data (one grid step = n_tile samples).

    refs layout: [M1, b1, ..., M5, b5, Wfc, bfc]   (inputs)
                 [out]                              (output, [n_tile, 2*z_dim])
                 [slab0, ..., slab5]                (VMEM scratch)

    slab_i (i = 0..4) holds the input of conv layer i as a flat per-sample
    slab [n_tile*hp[i], W_i*C_i]; sample n's image row r lives at slab row
    n*hp[i] + 1 + r, and rows 0 / h_i+1 of each sample block are the vertical
    zero padding.  slab5 is the un-padded conv-5 output [n_tile*h5, W5*C5].
    """
    n_conv = len(layers)
    conv_refs = refs[:2 * n_conv]
    wfc_ref = refs[2 * n_conv]
    bfc_ref = refs[2 * n_conv + 1]
    out_ref = refs[2 * n_conv + 2]
    slabs = refs[2 * n_conv + 3:]

    inv_sqrt2 = jnp.float32(1.0 / math.sqrt(2.0))

    def gelu(v):  # exact GELU (PyTorch nn.GELU default)
        return 0.5 * v * (1.0 + jax.lax.erf(v * inv_sqrt2))

    # Zero the padded slabs once so the vertical pad rows read as 0.
    for li in range(n_conv):
        slabs[li][...] = jnp.zeros(slabs[li].shape, slabs[li].dtype)

    # Preprocess the input exactly once: x.float()/15*2 - 1 into slab0.
    h0 = layers[0][0]
    for n in range(n_tile):
        slabs[0][pl.ds(n * hp[0] + 1, h0), :] = (
            x_ref[n].astype(jnp.float32) * jnp.float32(2.0 / 15.0) - 1.0)

    # Conv stack: per (sample, dy) one [h_out, K] @ [K, W_out*C_out] dot.
    for li, (h_in, h_out, s) in enumerate(layers):
        m_ref = conv_refs[2 * li]
        bias = conv_refs[2 * li + 1][...]        # hoisted: one load/bcast per layer
        a_in, a_out = slabs[li], slabs[li + 1]
        last = li == n_conv - 1
        for n in range(n_tile):                  # n_tile <= 8: small static unroll
            base = n * hp[li]
            acc = None
            for dy in range(3):
                if s == 1:
                    rows = a_in[pl.ds(base + dy, h_out), :]
                else:   # stride-2 layer: strided row window folds the vertical stride
                    rows = a_in[pl.ds(base + dy, h_out, stride=s), :]
                t = jnp.dot(rows, m_ref[dy], preferred_element_type=jnp.float32)
                acc = t if acc is None else acc + t
            act = gelu(acc + bias)
            if last:
                a_out[pl.ds(n * h_out, h_out), :] = act          # un-padded FC staging
            else:
                a_out[pl.ds(n * hp[li + 1] + 1, h_out), :] = act

    # Fused fc_mu / fc_var head: y = sum_h feat_h @ Wfc[h] + b  -> [n_tile, 2z].
    acc = None
    for h in range(h5):
        feat_h = slabs[-1][pl.ds(h, n_tile, stride=h5), :]       # [n_tile, W5*C5]
        t = jnp.dot(feat_h, wfc_ref[h], preferred_element_type=jnp.float32)
        acc = t if acc is None else acc + t
    out_ref[...] = acc + bfc_ref[...]


# -------------------------- one-time parameter prep -------------------------

def prepare_params(params, *, input_hw=(32, 32)):
    """Repack PyTorch-layout weights into kernel layout (done once).

    Each conv -> 3 per-dy matrices M[dy] of shape [W_in*C_in, W_out*C_out]
    with the horizontal stride and zero padding folded in.  fc_mu / fc_var
    are fused into one [h5, W5*C5, 2*z_dim] tensor whose rows follow the
    kernel's (w, c) lane order and PyTorch's NCHW flatten ordering.
    """
    strides = (2, 1, 2, 1, 2)
    cur_h, cur_w = input_hw
    c_in0 = int(np.asarray(params["convs"][0][0]).shape[1])

    tensors, layers = [], []
    hp = [_round_up(cur_h + 2, 8)]
    slab_lanes = [cur_w * c_in0]

    for li, ((w_oihw, b), s) in enumerate(zip(params["convs"], strides)):
        w_np = np.asarray(w_oihw, dtype=np.float32)
        b_np = np.asarray(b, dtype=np.float32)
        c_out, c_in = int(w_np.shape[0]), int(w_np.shape[1])
        h_out = (cur_h - 1) // s + 1          # k=3, pad=1
        w_out = (cur_w - 1) // s + 1
        M = np.zeros((3, cur_w * c_in, w_out * c_out), np.float32)
        for dy in range(3):
            for wo in range(w_out):
                for dx in range(3):
                    wi = s * wo + dx - 1
                    if 0 <= wi < cur_w:       # horizontal zero pad folded in
                        for ci in range(c_in):
                            # layer-1 input lanes are (c, w); later layers (w, c)
                            k = ci * cur_w + wi if li == 0 else wi * c_in + ci
                            M[dy, k, wo * c_out:(wo + 1) * c_out] = w_np[:, ci, dy, dx]
        tensors += [jnp.asarray(M),
                    jnp.asarray(np.tile(b_np, w_out).reshape(1, w_out * c_out))]
        layers.append((cur_h, h_out, s))
        cur_h, cur_w = h_out, w_out
        slab_lanes.append(cur_w * c_out)
        if li < len(strides) - 1:
            hp.append(_round_up(cur_h + 2, 8))

    c_last = int(np.asarray(params["convs"][-1][0]).shape[0])
    (w_mu, b_mu), (w_var, b_var) = params["fc_mu"], params["fc_var"]
    z = int(np.asarray(w_mu).shape[0])
    w_cat = np.concatenate([np.asarray(w_mu, np.float32).T,
                            np.asarray(w_var, np.float32).T], axis=1)  # [C*H*W, 2z]
    w_fc = np.zeros((cur_h, cur_w * c_last, 2 * z), np.float32)
    for h in range(cur_h):
        for w_i in range(cur_w):
            for c in range(c_last):
                w_fc[h, w_i * c_last + c, :] = \
                    w_cat[c * cur_h * cur_w + h * cur_w + w_i, :]
    b_fc = np.concatenate([np.asarray(b_mu, np.float32),
                           np.asarray(b_var, np.float32)]).reshape(1, 2 * z)
    tensors += [jnp.asarray(w_fc), jnp.asarray(b_fc)]
    return {"tensors": tensors, "layers": tuple(layers), "hp": tuple(hp),
            "slab_lanes": tuple(slab_lanes), "h5": cur_h, "z_dim": z}


# --------------------------------- forward ----------------------------------

def cnn_encoder_forward(x_nchw, prepped, *, n_tile=None):
    N, Cin, H, W = x_nchw.shape
    z = prepped["z_dim"]
    layers, hp = prepped["layers"], prepped["hp"]
    lanes, h5 = prepped["slab_lanes"], prepped["h5"]

    # Batch tiling: one grid step per n_tile samples ("parallel" axis).
    if n_tile is None:
        n_tile = N if N <= 8 else 8
    n_pad = (-N) % n_tile
    n_total = N + n_pad

    # Layout only (no arithmetic in the wrapper): [N,Cin,H,W] -> [N,H,Cin*W]
    # with lane order (ci, wi) matching the layer-1 M rows.
    x_rows = jnp.transpose(x_nchw, (0, 2, 1, 3)).reshape(N, H, Cin * W)
    if n_pad:
        x_rows = jnp.pad(x_rows, ((0, n_pad), (0, 0), (0, 0)))

    kernel = functools.partial(_encoder_kernel, layers=layers, hp=hp, h5=h5,
                               n_tile=n_tile)

    def _resident(shape):  # full-array block, constant index map (stays in VMEM)
        nd = len(shape)
        return pl.BlockSpec(shape, lambda b, _nd=nd: (0,) * _nd)

    in_specs = [pl.BlockSpec((n_tile, H, Cin * W), lambda b: (b, 0, 0))]
    in_specs += [_resident(tuple(t.shape)) for t in prepped["tensors"]]

    scratch = [pltpu.VMEM((n_tile * hp[i], lanes[i]), jnp.float32)
               for i in range(len(hp))]
    scratch += [pltpu.VMEM((n_tile * h5, lanes[-1]), jnp.float32)]

    y = pl.pallas_call(
        kernel,
        grid=(n_total // n_tile,),
        in_specs=in_specs,
        out_specs=pl.BlockSpec((n_tile, 2 * z), lambda b: (b, 0)),
        out_shape=jax.ShapeDtypeStruct((n_total, 2 * z), jnp.float32),
        scratch_shapes=scratch,
        compiler_params=pltpu.CompilerParams(
            dimension_semantics=("parallel",)),
    )(x_rows, *prepped["tensors"])

    y = y[:N]
    return y[:, :z], y[:, z:]


# ------------------------- deterministic parameters -------------------------

def init_params(key, num_input_channels, c_hid, z_dim):
    def conv_init(k, c_in, c_out):
        k1, k2 = jax.random.split(k)
        bound = 1.0 / math.sqrt(c_in * 9)
        w = jax.random.uniform(k1, (c_out, c_in, 3, 3), jnp.float32, -bound, bound)
        b = jax.random.uniform(k2, (c_out,), jnp.float32, -bound, bound)
        return w, b

    def linear_init(k, in_dim, out_dim):
        k1, k2 = jax.random.split(k)
        bound = 1.0 / math.sqrt(in_dim)
        w = jax.random.uniform(k1, (out_dim, in_dim), jnp.float32, -bound, bound)
        b = jax.random.uniform(k2, (out_dim,), jnp.float32, -bound, bound)
        return w, b

    keys = jax.random.split(key, 7)
    convs = [
        conv_init(keys[0], num_input_channels, c_hid),
        conv_init(keys[1], c_hid, c_hid),
        conv_init(keys[2], c_hid, 2 * c_hid),
        conv_init(keys[3], 2 * c_hid, 2 * c_hid),
        conv_init(keys[4], 2 * c_hid, 2 * c_hid),
    ]
    fc_in = 2 * 16 * c_hid
    return {
        "convs": convs,
        "fc_mu": linear_init(keys[5], fc_in, z_dim),
        "fc_var": linear_init(keys[6], fc_in, z_dim),
    }


# ------------------------------ pure-JAX reference ---------------------------

def ref_forward(x_nchw, params):
    def gelu(v):
        return 0.5 * v * (1.0 + jax.lax.erf(v / jnp.sqrt(jnp.float32(2.0))))

    conv_strides = (2, 1, 2, 1, 2)
    h = x_nchw.astype(jnp.float32) / 15.0 * 2.0 - 1.0
    for (w, b), s in zip(params["convs"], conv_strides):
        h = jax.lax.conv_general_dilated(
            h, w, (s, s), ((1, 1), (1, 1)),
            dimension_numbers=("NCHW", "OIHW", "NCHW"))
        h = gelu(h + b[None, :, None, None])
    feat = h.reshape(h.shape[0], -1)
    w_mu, b_mu = params["fc_mu"]
    w_var, b_var = params["fc_var"]
    return feat @ w_mu.T + b_mu, feat @ w_var.T + b_var


# ----------------------------------- main ------------------------------------

if __name__ == "__main__":
    num_input_channels, c_hid, z_dim = 1, 8, 16
    batch, spatial = 2, 32  # 32 -> 16 -> 16 -> 8 -> 8 -> 4 : flatten = 2*16*c_hid

    key = jax.random.PRNGKey(0)
    k_params, k_data = jax.random.split(key)
    params = init_params(k_params, num_input_channels, c_hid, z_dim)
    prepped = prepare_params(params, input_hw=(spatial, spatial))

    # 4-bit pixel values, matching the x.float()/15 normalization in the module.
    x = jax.random.randint(k_data, (batch, num_input_channels, spatial, spatial),
                           0, 16, dtype=jnp.int32)

    mean, log_std = cnn_encoder_forward(x, prepped)
    jax.block_until_ready((mean, log_std))

    mean_ref, log_std_ref = ref_forward(x, params)
    assert mean.shape == (batch, z_dim) and log_std.shape == (batch, z_dim)
    assert jnp.allclose(mean, mean_ref, rtol=2e-4, atol=2e-4)
    assert jnp.allclose(log_std, log_std_ref, rtol=2e-4, atol=2e-4)

    print("KERNEL_OK")
</pallas_src>

<mosaic_0001>
module attributes {stable_mosaic.version = 11 : i64} {
  func.func @_encoder_kernel(%arg0: i32, %arg1: memref<2x32x32xi32, #tpu.memory_space<vmem>>, %arg2: memref<3x32x128xf32, #tpu.memory_space<vmem>>, %arg3: memref<1x128xf32, #tpu.memory_space<vmem>>, %arg4: memref<3x128x128xf32, #tpu.memory_space<vmem>>, %arg5: memref<1x128xf32, #tpu.memory_space<vmem>>, %arg6: memref<3x128x128xf32, #tpu.memory_space<vmem>>, %arg7: memref<1x128xf32, #tpu.memory_space<vmem>>, %arg8: memref<3x128x128xf32, #tpu.memory_space<vmem>>, %arg9: memref<1x128xf32, #tpu.memory_space<vmem>>, %arg10: memref<3x128x64xf32, #tpu.memory_space<vmem>>, %arg11: memref<1x64xf32, #tpu.memory_space<vmem>>, %arg12: memref<4x64x32xf32, #tpu.memory_space<vmem>>, %arg13: memref<1x32xf32, #tpu.memory_space<vmem>>, %arg14: memref<2x32xf32, #tpu.memory_space<vmem>>, %arg15: memref<80x32xf32, #tpu.memory_space<vmem>>, %arg16: memref<48x128xf32, #tpu.memory_space<vmem>>, %arg17: memref<48x128xf32, #tpu.memory_space<vmem>>, %arg18: memref<32x128xf32, #tpu.memory_space<vmem>>, %arg19: memref<32x128xf32, #tpu.memory_space<vmem>>, %arg20: memref<8x64xf32, #tpu.memory_space<vmem>>) attributes {dimension_semantics = [#tpu.dimension_semantics<parallel>], iteration_bounds = array<i64: 1>, scalar_prefetch = 0 : i64, scratch_operands = 6 : i64, tpu.core_type = #tpu.core_type<tc>, window_params = [{transform_indices = @transform_0, window_bounds = array<i64: 2, 32, 32>}, {pipeline_mode = #tpu.pipeline_mode<synchronous>, transform_indices = @transform_1, window_bounds = array<i64: 3, 32, 128>}, {pipeline_mode = #tpu.pipeline_mode<synchronous>, transform_indices = @transform_2, window_bounds = array<i64: 1, 128>}, {pipeline_mode = #tpu.pipeline_mode<synchronous>, transform_indices = @transform_3, window_bounds = array<i64: 3, 128, 128>}, {pipeline_mode = #tpu.pipeline_mode<synchronous>, transform_indices = @transform_4, window_bounds = array<i64: 1, 128>}, {pipeline_mode = #tpu.pipeline_mode<synchronous>, transform_indices = @transform_5, window_bounds = array<i64: 3, 128, 128>}, {pipeline_mode = #tpu.pipeline_mode<synchronous>, transform_indices = @transform_6, window_bounds = array<i64: 1, 128>}, {pipeline_mode = #tpu.pipeline_mode<synchronous>, transform_indices = @transform_7, window_bounds = array<i64: 3, 128, 128>}, {pipeline_mode = #tpu.pipeline_mode<synchronous>, transform_indices = @transform_8, window_bounds = array<i64: 1, 128>}, {pipeline_mode = #tpu.pipeline_mode<synchronous>, transform_indices = @transform_9, window_bounds = array<i64: 3, 128, 64>}, {pipeline_mode = #tpu.pipeline_mode<synchronous>, transform_indices = @transform_10, window_bounds = array<i64: 1, 64>}, {pipeline_mode = #tpu.pipeline_mode<synchronous>, transform_indices = @transform_11, window_bounds = array<i64: 4, 64, 32>}, {pipeline_mode = #tpu.pipeline_mode<synchronous>, transform_indices = @transform_12, window_bounds = array<i64: 1, 32>}, {transform_indices = @transform_13, window_bounds = array<i64: 2, 32>}]} {
    %cst = arith.constant 0.000000e+00 : f32
    %0 = vector.broadcast %cst : f32 to vector<80x32xf32>
    %c0 = arith.constant 0 : index
    %c0_0 = arith.constant 0 : index
    %1 = vector.load %arg15[%c0, %c0_0] : memref<80x32xf32, #tpu.memory_space<vmem>>, vector<80x32xf32>
    tpu.vector_store %arg15[%c0, %c0_0], %0 {strides = array<i32>} : memref<80x32xf32, #tpu.memory_space<vmem>>, vector<80x32xf32>,
    %cst_1 = arith.constant 0.000000e+00 : f32
    %2 = vector.broadcast %cst_1 : f32 to vector<48x128xf32>
    %c0_2 = arith.constant 0 : index
    %c0_3 = arith.constant 0 : index
    %3 = vector.load %arg16[%c0_2, %c0_3] : memref<48x128xf32, #tpu.memory_space<vmem>>, vector<48x128xf32>
    tpu.vector_store %arg16[%c0_2, %c0_3], %2 {strides = array<i32>} : memref<48x128xf32, #tpu.memory_space<vmem>>, vector<48x128xf32>,
    %cst_4 = arith.constant 0.000000e+00 : f32
    %4 = vector.broadcast %cst_4 : f32 to vector<48x128xf32>
    %c0_5 = arith.constant 0 : index
    %c0_6 = arith.constant 0 : index
    %5 = vector.load %arg17[%c0_5, %c0_6] : memref<48x128xf32, #tpu.memory_space<vmem>>, vector<48x128xf32>
    tpu.vector_store %arg17[%c0_5, %c0_6], %4 {strides = array<i32>} : memref<48x128xf32, #tpu.memory_space<vmem>>, vector<48x128xf32>,
    %cst_7 = arith.constant 0.000000e+00 : f32
    %6 = vector.broadcast %cst_7 : f32 to vector<32x128xf32>
    %c0_8 = arith.constant 0 : index
    %c0_9 = arith.constant 0 : index
    %7 = vector.load %arg18[%c0_8, %c0_9] : memref<32x128xf32, #tpu.memory_space<vmem>>, vector<32x128xf32>
    tpu.vector_store %arg18[%c0_8, %c0_9], %6 {strides = array<i32>} : memref<32x128xf32, #tpu.memory_space<vmem>>, vector<32x128xf32>,
    %cst_10 = arith.constant 0.000000e+00 : f32
    %8 = vector.broadcast %cst_10 : f32 to vector<32x128xf32>
    %c0_11 = arith.constant 0 : index
    %c0_12 = arith.constant 0 : index
    %9 = vector.load %arg19[%c0_11, %c0_12] : memref<32x128xf32, #tpu.memory_space<vmem>>, vector<32x128xf32>
    tpu.vector_store %arg19[%c0_11, %c0_12], %8 {strides = array<i32>} : memref<32x128xf32, #tpu.memory_space<vmem>>, vector<32x128xf32>,
    %c0_13 = arith.constant 0 : index
    %c0_14 = arith.constant 0 : index
    %c0_15 = arith.constant 0 : index
    %10 = vector.load %arg1[%c0_13, %c0_14, %c0_15] : memref<2x32x32xi32, #tpu.memory_space<vmem>>, vector<1x32x32xi32>
    %11 = vector.shape_cast %10 : vector<1x32x32xi32> to vector<32x32xi32>
    %12 = arith.sitofp %11 : vector<32x32xi32> to vector<32x32xf32>
    %cst_16 = arith.constant 0.13333334 : f32
    %13 = vector.broadcast %cst_16 : f32 to vector<32x32xf32>
    %14 = arith.mulf %12, %13 : vector<32x32xf32>
    %cst_17 = arith.constant 1.000000e+00 : f32
    %15 = vector.broadcast %cst_17 : f32 to vector<32x32xf32>
    %16 = arith.subf %14, %15 : vector<32x32xf32>
    %c1 = arith.constant 1 : index
    %c0_18 = arith.constant 0 : index
    %17 = vector.load %arg15[%c1, %c0_18] : memref<80x32xf32, #tpu.memory_space<vmem>>, vector<32x32xf32>
    tpu.vector_store %arg15[%c1, %c0_18], %16 {strides = array<i32>} : memref<80x32xf32, #tpu.memory_space<vmem>>, vector<32x32xf32>,
    %c1_19 = arith.constant 1 : index
    %c0_20 = arith.constant 0 : index
    %c0_21 = arith.constant 0 : index
    %18 = vector.load %arg1[%c1_19, %c0_20, %c0_21] : memref<2x32x32xi32, #tpu.memory_space<vmem>>, vector<1x32x32xi32>
    %19 = vector.shape_cast %18 : vector<1x32x32xi32> to vector<32x32xi32>
    %20 = arith.sitofp %19 : vector<32x32xi32> to vector<32x32xf32>
    %cst_22 = arith.constant 0.13333334 : f32
    %21 = vector.broadcast %cst_22 : f32 to vector<32x32xf32>
    %22 = arith.mulf %20, %21 : vector<32x32xf32>
    %cst_23 = arith.constant 1.000000e+00 : f32
    %23 = vector.broadcast %cst_23 : f32 to vector<32x32xf32>
    %24 = arith.subf %22, %23 : vector<32x32xf32>
    %c41 = arith.constant 41 : index
    %c0_24 = arith.constant 0 : index
    %25 = vector.load %arg15[%c41, %c0_24] : memref<80x32xf32, #tpu.memory_space<vmem>>, vector<32x32xf32>
    tpu.vector_store %arg15[%c41, %c0_24], %24 {strides = array<i32>} : memref<80x32xf32, #tpu.memory_space<vmem>>, vector<32x32xf32>,
    %c0_25 = arith.constant 0 : index
    %c0_26 = arith.constant 0 : index
    %26 = vector.load %arg3[%c0_25, %c0_26] : memref<1x128xf32, #tpu.memory_space<vmem>>, vector<1x128xf32>
    %c0_27 = arith.constant 0 : index
    %c0_28 = arith.constant 0 : index
    %27 = tpu.strided_load %arg15[%c0_27, %c0_28] {strides = array<i32: 2, 1>} : memref<80x32xf32, #tpu.memory_space<vmem>>, vector<16x32xf32>
    %c0_29 = arith.constant 0 : index
    %c0_30 = arith.constant 0 : index
    %c0_31 = arith.constant 0 : index
    %28 = vector.load %arg2[%c0_29, %c0_30, %c0_31] : memref<3x32x128xf32, #tpu.memory_space<vmem>>, vector<1x32x128xf32>
    %29 = vector.shape_cast %28 : vector<1x32x128xf32> to vector<32x128xf32>
    %cst_32 = arith.constant dense<0.000000e+00> : vector<16x128xf32>
    %30 = tpu.matmul %27, %29, %cst_32 {dimension_numbers = #tpu.dot_dimension_numbers<[1], [0], [0], [1], [0, 0, 1, 1], [], []>} : vector<16x32xf32>, vector<32x128xf32>, vector<16x128xf32> -> vector<16x128xf32>
    %c1_33 = arith.constant 1 : index
    %c0_34 = arith.constant 0 : index
    %31 = tpu.strided_load %arg15[%c1_33, %c0_34] {strides = array<i32: 2, 1>} : memref<80x32xf32, #tpu.memory_space<vmem>>, vector<16x32xf32>
    %c1_35 = arith.constant 1 : index
    %c0_36 = arith.constant 0 : index
    %c0_37 = arith.constant 0 : index
    %32 = vector.load %arg2[%c1_35, %c0_36, %c0_37] : memref<3x32x128xf32, #tpu.memory_space<vmem>>, vector<1x32x128xf32>
    %33 = vector.shape_cast %32 : vector<1x32x128xf32> to vector<32x128xf32>
    %cst_38 = arith.constant dense<0.000000e+00> : vector<16x128xf32>
    %34 = tpu.matmul %31, %33, %cst_38 {dimension_numbers = #tpu.dot_dimension_numbers<[1], [0], [0], [1], [0, 0, 1, 1], [], []>} : vector<16x32xf32>, vector<32x128xf32>, vector<16x128xf32> -> vector<16x128xf32>
    %35 = arith.addf %30, %34 : vector<16x128xf32>
    %c2 = arith.constant 2 : index
    %c0_39 = arith.constant 0 : index
    %36 = tpu.strided_load %arg15[%c2, %c0_39] {strides = array<i32: 2, 1>} : memref<80x32xf32, #tpu.memory_space<vmem>>, vector<16x32xf32>
    %c2_40 = arith.constant 2 : index
    %c0_41 = arith.constant 0 : index
    %c0_42 = arith.constant 0 : index
    %37 = vector.load %arg2[%c2_40, %c0_41, %c0_42] : memref<3x32x128xf32, #tpu.memory_space<vmem>>, vector<1x32x128xf32>
    %38 = vector.shape_cast %37 : vector<1x32x128xf32> to vector<32x128xf32>
    %cst_43 = arith.constant dense<0.000000e+00> : vector<16x128xf32>
    %39 = tpu.matmul %36, %38, %cst_43 {dimension_numbers = #tpu.dot_dimension_numbers<[1], [0], [0], [1], [0, 0, 1, 1], [], []>} : vector<16x32xf32>, vector<32x128xf32>, vector<16x128xf32> -> vector<16x128xf32>
    %40 = arith.addf %35, %39 : vector<16x128xf32>
    %41 = vector.broadcast %26 : vector<1x128xf32> to vector<16x128xf32>
    %42 = arith.addf %40, %41 : vector<16x128xf32>
    %cst_44 = arith.constant 5.000000e-01 : f32
    %43 = vector.broadcast %cst_44 : f32 to vector<16x128xf32>
    %44 = arith.mulf %43, %42 : vector<16x128xf32>
    %cst_45 = arith.constant 0.707106769 : f32
    %45 = vector.broadcast %cst_45 : f32 to vector<16x128xf32>
    %46 = arith.mulf %42, %45 : vector<16x128xf32>
    %47 = math.erf %46 : vector<16x128xf32>
    %cst_46 = arith.constant 1.000000e+00 : f32
    %48 = vector.broadcast %cst_46 : f32 to vector<16x128xf32>
    %49 = arith.addf %48, %47 : vector<16x128xf32>
    %50 = arith.mulf %44, %49 : vector<16x128xf32>
    %c1_47 = arith.constant 1 : index
    %c0_48 = arith.constant 0 : index
    %51 = vector.load %arg16[%c1_47, %c0_48] : memref<48x128xf32, #tpu.memory_space<vmem>>, vector<16x128xf32>
    tpu.vector_store %arg16[%c1_47, %c0_48], %50 {strides = array<i32>} : memref<48x128xf32, #tpu.memory_space<vmem>>, vector<16x128xf32>,
    %c40 = arith.constant 40 : index
    %c0_49 = arith.constant 0 : index
    %52 = tpu.strided_load %arg15[%c40, %c0_49] {strides = array<i32: 2, 1>} : memref<80x32xf32, #tpu.memory_space<vmem>>, vector<16x32xf32>
    %c0_50 = arith.constant 0 : index
    %c0_51 = arith.constant 0 : index
    %c0_52 = arith.constant 0 : index
    %53 = vector.load %arg2[%c0_50, %c0_51, %c0_52] : memref<3x32x128xf32, #tpu.memory_space<vmem>>, vector<1x32x128xf32>
    %54 = vector.shape_cast %53 : vector<1x32x128xf32> to vector<32x128xf32>
    %cst_53 = arith.constant dense<0.000000e+00> : vector<16x128xf32>
    %55 = tpu.matmul %52, %54, %cst_53 {dimension_numbers = #tpu.dot_dimension_numbers<[1], [0], [0], [1], [0, 0, 1, 1], [], []>} : vector<16x32xf32>, vector<32x128xf32>, vector<16x128xf32> -> vector<16x128xf32>
    %c41_54 = arith.constant 41 : index
    %c0_55 = arith.constant 0 : index
    %56 = tpu.strided_load %arg15[%c41_54, %c0_55] {strides = array<i32: 2, 1>} : memref<80x32xf32, #tpu.memory_space<vmem>>, vector<16x32xf32>
    %c1_56 = arith.constant 1 : index
    %c0_57 = arith.constant 0 : index
    %c0_58 = arith.constant 0 : index
    %57 = vector.load %arg2[%c1_56, %c0_57, %c0_58] : memref<3x32x128xf32, #tpu.memory_space<vmem>>, vector<1x32x128xf32>
    %58 = vector.shape_cast %57 : vector<1x32x128xf32> to vector<32x128xf32>
    %cst_59 = arith.constant dense<0.000000e+00> : vector<16x128xf32>
    %59 = tpu.matmul %56, %58, %cst_59 {dimension_numbers = #tpu.dot_dimension_numbers<[1], [0], [0], [1], [0, 0, 1, 1], [], []>} : vector<16x32xf32>, vector<32x128xf32>, vector<16x128xf32> -> vector<16x128xf32>
    %60 = arith.addf %55, %59 : vector<16x128xf32>
    %c42 = arith.constant 42 : index
    %c0_60 = arith.constant 0 : index
    %61 = tpu.strided_load %arg15[%c42, %c0_60] {strides = array<i32: 2, 1>} : memref<80x32xf32, #tpu.memory_space<vmem>>, vector<16x32xf32>
    %c2_61 = arith.constant 2 : index
    %c0_62 = arith.constant 0 : index
    %c0_63 = arith.constant 0 : index
    %62 = vector.load %arg2[%c2_61, %c0_62, %c0_63] : memref<3x32x128xf32, #tpu.memory_space<vmem>>, vector<1x32x128xf32>
    %63 = vector.shape_cast %62 : vector<1x32x128xf32> to vector<32x128xf32>
    %cst_64 = arith.constant dense<0.000000e+00> : vector<16x128xf32>
    %64 = tpu.matmul %61, %63, %cst_64 {dimension_numbers = #tpu.dot_dimension_numbers<[1], [0], [0], [1], [0, 0, 1, 1], [], []>} : vector<16x32xf32>, vector<32x128xf32>, vector<16x128xf32> -> vector<16x128xf32>
    %65 = arith.addf %60, %64 : vector<16x128xf32>
    %66 = vector.broadcast %26 : vector<1x128xf32> to vector<16x128xf32>
    %67 = arith.addf %65, %66 : vector<16x128xf32>
    %cst_65 = arith.constant 5.000000e-01 : f32
    %68 = vector.broadcast %cst_65 : f32 to vector<16x128xf32>
    %69 = arith.mulf %68, %67 : vector<16x128xf32>
    %cst_66 = arith.constant 0.707106769 : f32
    %70 = vector.broadcast %cst_66 : f32 to vector<16x128xf32>
    %71 = arith.mulf %67, %70 : vector<16x128xf32>
    %72 = math.erf %71 : vector<16x128xf32>
    %cst_67 = arith.constant 1.000000e+00 : f32
    %73 = vector.broadcast %cst_67 : f32 to vector<16x128xf32>
    %74 = arith.addf %73, %72 : vector<16x128xf32>
    %75 = arith.mulf %69, %74 : vector<16x128xf32>
    %c25 = arith.constant 25 : index
    %c0_68 = arith.constant 0 : index
    %76 = vector.load %arg16[%c25, %c0_68] : memref<48x128xf32, #tpu.memory_space<vmem>>, vector<16x128xf32>
    tpu.vector_store %arg16[%c25, %c0_68], %75 {strides = array<i32>} : memref<48x128xf32, #tpu.memory_space<vmem>>, vector<16x128xf32>,
    %c0_69 = arith.constant 0 : index
    %c0_70 = arith.constant 0 : index
    %77 = vector.load %arg5[%c0_69, %c0_70] : memref<1x128xf32, #tpu.memory_space<vmem>>, vector<1x128xf32>
    %c0_71 = arith.constant 0 : index
    %c0_72 = arith.constant 0 : index
    %78 = vector.load %arg16[%c0_71, %c0_72] : memref<48x128xf32, #tpu.memory_space<vmem>>, vector<16x128xf32>
    %c0_73 = arith.constant 0 : index
    %c0_74 = arith.constant 0 : index
    %c0_75 = arith.constant 0 : index
    %79 = vector.load %arg4[%c0_73, %c0_74, %c0_75] : memref<3x128x128xf32, #tpu.memory_space<vmem>>, vector<1x128x128xf32>
    %80 = vector.shape_cast %79 : vector<1x128x128xf32> to vector<128x128xf32>
    %cst_76 = arith.constant dense<0.000000e+00> : vector<16x128xf32>
    %81 = tpu.matmul %78, %80, %cst_76 {dimension_numbers = #tpu.dot_dimension_numbers<[1], [0], [0], [1], [0, 0, 1, 1], [], []>} : vector<16x128xf32>, vector<128x128xf32>, vector<16x128xf32> -> vector<16x128xf32>
    %c1_77 = arith.constant 1 : index
    %c0_78 = arith.constant 0 : index
    %82 = vector.load %arg16[%c1_77, %c0_78] : memref<48x128xf32, #tpu.memory_space<vmem>>, vector<16x128xf32>
    %c1_79 = arith.constant 1 : index
    %c0_80 = arith.constant 0 : index
    %c0_81 = arith.constant 0 : index
    %83 = vector.load %arg4[%c1_79, %c0_80, %c0_81] : memref<3x128x128xf32, #tpu.memory_space<vmem>>, vector<1x128x128xf32>
    %84 = vector.shape_cast %83 : vector<1x128x128xf32> to vector<128x128xf32>
    %cst_82 = arith.constant dense<0.000000e+00> : vector<16x128xf32>
    %85 = tpu.matmul %82, %84, %cst_82 {dimension_numbers = #tpu.dot_dimension_numbers<[1], [0], [0], [1], [0, 0, 1, 1], [], []>} : vector<16x128xf32>, vector<128x128xf32>, vector<16x128xf32> -> vector<16x128xf32>
    %86 = arith.addf %81, %85 : vector<16x128xf32>
    %c2_83 = arith.constant 2 : index
    %c0_84 = arith.constant 0 : index
    %87 = vector.load %arg16[%c2_83, %c0_84] : memref<48x128xf32, #tpu.memory_space<vmem>>, vector<16x128xf32>
    %c2_85 = arith.constant 2 : index
    %c0_86 = arith.constant 0 : index
    %c0_87 = arith.constant 0 : index
    %88 = vector.load %arg4[%c2_85, %c0_86, %c0_87] : memref<3x128x128xf32, #tpu.memory_space<vmem>>, vector<1x128x128xf32>
    %89 = vector.shape_cast %88 : vector<1x128x128xf32> to vector<128x128xf32>
    %cst_88 = arith.constant dense<0.000000e+00> : vector<16x128xf32>
    %90 = tpu.matmul %87, %89, %cst_88 {dimension_numbers = #tpu.dot_dimension_numbers<[1], [0], [0], [1], [0, 0, 1, 1], [], []>} : vector<16x128xf32>, vector<128x128xf32>, vector<16x128xf32> -> vector<16x128xf32>
    %91 = arith.addf %86, %90 : vector<16x128xf32>
    %92 = vector.broadcast %77 : vector<1x128xf32> to vector<16x128xf32>
    %93 = arith.addf %91, %92 : vector<16x128xf32>
    %cst_89 = arith.constant 5.000000e-01 : f32
    %94 = vector.broadcast %cst_89 : f32 to vector<16x128xf32>
    %95 = arith.mulf %94, %93 : vector<16x128xf32>
    %cst_90 = arith.constant 0.707106769 : f32
    %96 = vector.broadcast %cst_90 : f32 to vector<16x128xf32>
    %97 = arith.mulf %93, %96 : vector<16x128xf32>
    %98 = math.erf %97 : vector<16x128xf32>
    %cst_91 = arith.constant 1.000000e+00 : f32
    %99 = vector.broadcast %cst_91 : f32 to vector<16x128xf32>
    %100 = arith.addf %99, %98 : vector<16x128xf32>
    %101 = arith.mulf %95, %100 : vector<16x128xf32>
    %c1_92 = arith.constant 1 : index
    %c0_93 = arith.constant 0 : index
    %102 = vector.load %arg17[%c1_92, %c0_93] : memref<48x128xf32, #tpu.memory_space<vmem>>, vector<16x128xf32>
    tpu.vector_store %arg17[%c1_92, %c0_93], %101 {strides = array<i32>} : memref<48x128xf32, #tpu.memory_space<vmem>>, vector<16x128xf32>,
    %c24 = arith.constant 24 : index
    %c0_94 = arith.constant 0 : index
    %103 = vector.load %arg16[%c24, %c0_94] : memref<48x128xf32, #tpu.memory_space<vmem>>, vector<16x128xf32>
    %c0_95 = arith.constant 0 : index
    %c0_96 = arith.constant 0 : index
    %c0_97 = arith.constant 0 : index
    %104 = vector.load %arg4[%c0_95, %c0_96, %c0_97] : memref<3x128x128xf32, #tpu.memory_space<vmem>>, vector<1x128x128xf32>
    %105 = vector.shape_cast %104 : vector<1x128x128xf32> to vector<128x128xf32>
    %cst_98 = arith.constant dense<0.000000e+00> : vector<16x128xf32>
    %106 = tpu.matmul %103, %105, %cst_98 {dimension_numbers = #tpu.dot_dimension_numbers<[1], [0], [0], [1], [0, 0, 1, 1], [], []>} : vector<16x128xf32>, vector<128x128xf32>, vector<16x128xf32> -> vector<16x128xf32>
    %c25_99 = arith.constant 25 : index
    %c0_100 = arith.constant 0 : index
    %107 = vector.load %arg16[%c25_99, %c0_100] : memref<48x128xf32, #tpu.memory_space<vmem>>, vector<16x128xf32>
    %c1_101 = arith.constant 1 : index
    %c0_102 = arith.constant 0 : index
    %c0_103 = arith.constant 0 : index
    %108 = vector.load %arg4[%c1_101, %c0_102, %c0_103] : memref<3x128x128xf32, #tpu.memory_space<vmem>>, vector<1x128x128xf32>
    %109 = vector.shape_cast %108 : vector<1x128x128xf32> to vector<128x128xf32>
    %cst_104 = arith.constant dense<0.000000e+00> : vector<16x128xf32>
    %110 = tpu.matmul %107, %109, %cst_104 {dimension_numbers = #tpu.dot_dimension_numbers<[1], [0], [0], [1], [0, 0, 1, 1], [], []>} : vector<16x128xf32>, vector<128x128xf32>, vector<16x128xf32> -> vector<16x128xf32>
    %111 = arith.addf %106, %110 : vector<16x128xf32>
    %c26 = arith.constant 26 : index
    %c0_105 = arith.constant 0 : index
    %112 = vector.load %arg16[%c26, %c0_105] : memref<48x128xf32, #tpu.memory_space<vmem>>, vector<16x128xf32>
    %c2_106 = arith.constant 2 : index
    %c0_107 = arith.constant 0 : index
    %c0_108 = arith.constant 0 : index
    %113 = vector.load %arg4[%c2_106, %c0_107, %c0_108] : memref<3x128x128xf32, #tpu.memory_space<vmem>>, vector<1x128x128xf32>
    %114 = vector.shape_cast %113 : vector<1x128x128xf32> to vector<128x128xf32>
    %cst_109 = arith.constant dense<0.000000e+00> : vector<16x128xf32>
    %115 = tpu.matmul %112, %114, %cst_109 {dimension_numbers = #tpu.dot_dimension_numbers<[1], [0], [0], [1], [0, 0, 1, 1], [], []>} : vector<16x128xf32>, vector<128x128xf32>, vector<16x128xf32> -> vector<16x128xf32>
    %116 = arith.addf %111, %115 : vector<16x128xf32>
    %117 = vector.broadcast %77 : vector<1x128xf32> to vector<16x128xf32>
    %118 = arith.addf %116, %117 : vector<16x128xf32>
    %cst_110 = arith.constant 5.000000e-01 : f32
    %119 = vector.broadcast %cst_110 : f32 to vector<16x128xf32>
    %120 = arith.mulf %119, %118 : vector<16x128xf32>
    %cst_111 = arith.constant 0.707106769 : f32
    %121 = vector.broadcast %cst_111 : f32 to vector<16x128xf32>
    %122 = arith.mulf %118, %121 : vector<16x128xf32>
    %123 = math.erf %122 : vector<16x128xf32>
    %cst_112 = arith.constant 1.000000e+00 : f32
    %124 = vector.broadcast %cst_112 : f32 to vector<16x128xf32>
    %125 = arith.addf %124, %123 : vector<16x128xf32>
    %126 = arith.mulf %120, %125 : vector<16x128xf32>
    %c25_113 = arith.constant 25 : index
    %c0_114 = arith.constant 0 : index
    %127 = vector.load %arg17[%c25_113, %c0_114] : memref<48x128xf32, #tpu.memory_space<vmem>>, vector<16x128xf32>
    tpu.vector_store %arg17[%c25_113, %c0_114], %126 {strides = array<i32>} : memref<48x128xf32, #tpu.memory_space<vmem>>, vector<16x128xf32>,
    %c0_115 = arith.constant 0 : index
    %c0_116 = arith.constant 0 : index
    %128 = vector.load %arg7[%c0_115, %c0_116] : memref<1x128xf32, #tpu.memory_space<vmem>>, vector<1x128xf32>
    %c0_117 = arith.constant 0 : index
    %c0_118 = arith.constant 0 : index
    %129 = tpu.strided_load %arg17[%c0_117, %c0_118] {strides = array<i32: 2, 1>} : memref<48x128xf32, #tpu.memory_space<vmem>>, vector<8x128xf32>
    %c0_119 = arith.constant 0 : index
    %c0_120 = arith.constant 0 : index
    %c0_121 = arith.constant 0 : index
    %130 = vector.load %arg6[%c0_119, %c0_120, %c0_121] : memref<3x128x128xf32, #tpu.memory_space<vmem>>, vector<1x128x128xf32>
    %131 = vector.shape_cast %130 : vector<1x128x128xf32> to vector<128x128xf32>
    %cst_122 = arith.constant dense<0.000000e+00> : vector<8x128xf32>
    %132 = tpu.matmul %129, %131, %cst_122 {dimension_numbers = #tpu.dot_dimension_numbers<[1], [0], [0], [1], [0, 0, 1, 1], [], []>} : vector<8x128xf32>, vector<128x128xf32>, vector<8x128xf32> -> vector<8x128xf32>
    %c1_123 = arith.constant 1 : index
    %c0_124 = arith.constant 0 : index
    %133 = tpu.strided_load %arg17[%c1_123, %c0_124] {strides = array<i32: 2, 1>} : memref<48x128xf32, #tpu.memory_space<vmem>>, vector<8x128xf32>
    %c1_125 = arith.constant 1 : index
    %c0_126 = arith.constant 0 : index
    %c0_127 = arith.constant 0 : index
    %134 = vector.load %arg6[%c1_125, %c0_126, %c0_127] : memref<3x128x128xf32, #tpu.memory_space<vmem>>, vector<1x128x128xf32>
    %135 = vector.shape_cast %134 : vector<1x128x128xf32> to vector<128x128xf32>
    %cst_128 = arith.constant dense<0.000000e+00> : vector<8x128xf32>
    %136 = tpu.matmul %133, %135, %cst_128 {dimension_numbers = #tpu.dot_dimension_numbers<[1], [0], [0], [1], [0, 0, 1, 1], [], []>} : vector<8x128xf32>, vector<128x128xf32>, vector<8x128xf32> -> vector<8x128xf32>
    %137 = arith.addf %132, %136 : vector<8x128xf32>
    %c2_129 = arith.constant 2 : index
    %c0_130 = arith.constant 0 : index
    %138 = tpu.strided_load %arg17[%c2_129, %c0_130] {strides = array<i32: 2, 1>} : memref<48x128xf32, #tpu.memory_space<vmem>>, vector<8x128xf32>
    %c2_131 = arith.constant 2 : index
    %c0_132 = arith.constant 0 : index
    %c0_133 = arith.constant 0 : index
    %139 = vector.load %arg6[%c2_131, %c0_132, %c0_133] : memref<3x128x128xf32, #tpu.memory_space<vmem>>, vector<1x128x128xf32>
    %140 = vector.shape_cast %139 : vector<1x128x128xf32> to vector<128x128xf32>
    %cst_134 = arith.constant dense<0.000000e+00> : vector<8x128xf32>
    %141 = tpu.matmul %138, %140, %cst_134 {dimension_numbers = #tpu.dot_dimension_numbers<[1], [0], [0], [1], [0, 0, 1, 1], [], []>} : vector<8x128xf32>, vector<128x128xf32>, vector<8x128xf32> -> vector<8x128xf32>
    %142 = arith.addf %137, %141 : vector<8x128xf32>
    %143 = vector.broadcast %128 : vector<1x128xf32> to vector<8x128xf32>
    %144 = arith.addf %142, %143 : vector<8x128xf32>
    %cst_135 = arith.constant 5.000000e-01 : f32
    %145 = vector.broadcast %cst_135 : f32 to vector<8x128xf32>
    %146 = arith.mulf %145, %144 : vector<8x128xf32>
    %cst_136 = arith.constant 0.707106769 : f32
    %147 = vector.broadcast %cst_136 : f32 to vector<8x128xf32>
    %148 = arith.mulf %144, %147 : vector<8x128xf32>
    %149 = math.erf %148 : vector<8x128xf32>
    %cst_137 = arith.constant 1.000000e+00 : f32
    %150 = vector.broadcast %cst_137 : f32 to vector<8x128xf32>
    %151 = arith.addf %150, %149 : vector<8x128xf32>
    %152 = arith.mulf %146, %151 : vector<8x128xf32>
    %c1_138 = arith.constant 1 : index
    %c0_139 = arith.constant 0 : index
    %153 = vector.load %arg18[%c1_138, %c0_139] : memref<32x128xf32, #tpu.memory_space<vmem>>, vector<8x128xf32>
    tpu.vector_store %arg18[%c1_138, %c0_139], %152 {strides = array<i32>} : memref<32x128xf32, #tpu.memory_space<vmem>>, vector<8x128xf32>,
    %c24_140 = arith.constant 24 : index
    %c0_141 = arith.constant 0 : index
    %154 = tpu.strided_load %arg17[%c24_140, %c0_141] {strides = array<i32: 2, 1>} : memref<48x128xf32, #tpu.memory_space<vmem>>, vector<8x128xf32>
    %c0_142 = arith.constant 0 : index
    %c0_143 = arith.constant 0 : index
    %c0_144 = arith.constant 0 : index
    %155 = vector.load %arg6[%c0_142, %c0_143, %c0_144] : memref<3x128x128xf32, #tpu.memory_space<vmem>>, vector<1x128x128xf32>
    %156 = vector.shape_cast %155 : vector<1x128x128xf32> to vector<128x128xf32>
    %cst_145 = arith.constant dense<0.000000e+00> : vector<8x128xf32>
    %157 = tpu.matmul %154, %156, %cst_145 {dimension_numbers = #tpu.dot_dimension_numbers<[1], [0], [0], [1], [0, 0, 1, 1], [], []>} : vector<8x128xf32>, vector<128x128xf32>, vector<8x128xf32> -> vector<8x128xf32>
    %c25_146 = arith.constant 25 : index
    %c0_147 = arith.constant 0 : index
    %158 = tpu.strided_load %arg17[%c25_146, %c0_147] {strides = array<i32: 2, 1>} : memref<48x128xf32, #tpu.memory_space<vmem>>, vector<8x128xf32>
    %c1_148 = arith.constant 1 : index
    %c0_149 = arith.constant 0 : index
    %c0_150 = arith.constant 0 : index
    %159 = vector.load %arg6[%c1_148, %c0_149, %c0_150] : memref<3x128x128xf32, #tpu.memory_space<vmem>>, vector<1x128x128xf32>
    %160 = vector.shape_cast %159 : vector<1x128x128xf32> to vector<128x128xf32>
    %cst_151 = arith.constant dense<0.000000e+00> : vector<8x128xf32>
    %161 = tpu.matmul %158, %160, %cst_151 {dimension_numbers = #tpu.dot_dimension_numbers<[1], [0], [0], [1], [0, 0, 1, 1], [], []>} : vector<8x128xf32>, vector<128x128xf32>, vector<8x128xf32> -> vector<8x128xf32>
    %162 = arith.addf %157, %161 : vector<8x128xf32>
    %c26_152 = arith.constant 26 : index
    %c0_153 = arith.constant 0 : index
    %163 = tpu.strided_load %arg17[%c26_152, %c0_153] {strides = array<i32: 2, 1>} : memref<48x128xf32, #tpu.memory_space<vmem>>, vector<8x128xf32>
    %c2_154 = arith.constant 2 : index
    %c0_155 = arith.constant 0 : index
    %c0_156 = arith.constant 0 : index
    %164 = vector.load %arg6[%c2_154, %c0_155, %c0_156] : memref<3x128x128xf32, #tpu.memory_space<vmem>>, vector<1x128x128xf32>
    %165 = vector.shape_cast %164 : vector<1x128x128xf32> to vector<128x128xf32>
    %cst_157 = arith.constant dense<0.000000e+00> : vector<8x128xf32>
    %166 = tpu.matmul %163, %165, %cst_157 {dimension_numbers = #tpu.dot_dimension_numbers<[1], [0], [0], [1], [0, 0, 1, 1], [], []>} : vector<8x128xf32>, vector<128x128xf32>, vector<8x128xf32> -> vector<8x128xf32>
    %167 = arith.addf %162, %166 : vector<8x128xf32>
    %168 = vector.broadcast %128 : vector<1x128xf32> to vector<8x128xf32>
    %169 = arith.addf %167, %168 : vector<8x128xf32>
    %cst_158 = arith.constant 5.000000e-01 : f32
    %170 = vector.broadcast %cst_158 : f32 to vector<8x128xf32>
    %171 = arith.mulf %170, %169 : vector<8x128xf32>
    %cst_159 = arith.constant 0.707106769 : f32
    %172 = vector.broadcast %cst_159 : f32 to vector<8x128xf32>
    %173 = arith.mulf %169, %172 : vector<8x128xf32>
    %174 = math.erf %173 : vector<8x128xf32>
    %cst_160 = arith.constant 1.000000e+00 : f32
    %175 = vector.broadcast %cst_160 : f32 to vector<8x128xf32>
    %176 = arith.addf %175, %174 : vector<8x128xf32>
    %177 = arith.mulf %171, %176 : vector<8x128xf32>
    %c17 = arith.constant 17 : index
    %c0_161 = arith.constant 0 : index
    %178 = vector.load %arg18[%c17, %c0_161] : memref<32x128xf32, #tpu.memory_space<vmem>>, vector<8x128xf32>
    tpu.vector_store %arg18[%c17, %c0_161], %177 {strides = array<i32>} : memref<32x128xf32, #tpu.memory_space<vmem>>, vector<8x128xf32>,
    %c0_162 = arith.constant 0 : index
    %c0_163 = arith.constant 0 : index
    %179 = vector.load %arg9[%c0_162, %c0_163] : memref<1x128xf32, #tpu.memory_space<vmem>>, vector<1x128xf32>
    %c0_164 = arith.constant 0 : index
    %c0_165 = arith.constant 0 : index
    %180 = vector.load %arg18[%c0_164, %c0_165] : memref<32x128xf32, #tpu.memory_space<vmem>>, vector<8x128xf32>
    %c0_166 = arith.constant 0 : index
    %c0_167 = arith.constant 0 : index
    %c0_168 = arith.constant 0 : index
    %181 = vector.load %arg8[%c0_166, %c0_167, %c0_168] : memref<3x128x128xf32, #tpu.memory_space<vmem>>, vector<1x128x128xf32>
    %182 = vector.shape_cast %181 : vector<1x128x128xf32> to vector<128x128xf32>
    %cst_169 = arith.constant dense<0.000000e+00> : vector<8x128xf32>
    %183 = tpu.matmul %180, %182, %cst_169 {dimension_numbers = #tpu.dot_dimension_numbers<[1], [0], [0], [1], [0, 0, 1, 1], [], []>} : vector<8x128xf32>, vector<128x128xf32>, vector<8x128xf32> -> vector<8x128xf32>
    %c1_170 = arith.constant 1 : index
    %c0_171 = arith.constant 0 : index
    %184 = vector.load %arg18[%c1_170, %c0_171] : memref<32x128xf32, #tpu.memory_space<vmem>>, vector<8x128xf32>
    %c1_172 = arith.constant 1 : index
    %c0_173 = arith.constant 0 : index
    %c0_174 = arith.constant 0 : index
    %185 = vector.load %arg8[%c1_172, %c0_173, %c0_174] : memref<3x128x128xf32, #tpu.memory_space<vmem>>, vector<1x128x128xf32>
    %186 = vector.shape_cast %185 : vector<1x128x128xf32> to vector<128x128xf32>
    %cst_175 = arith.constant dense<0.000000e+00> : vector<8x128xf32>
    %187 = tpu.matmul %184, %186, %cst_175 {dimension_numbers = #tpu.dot_dimension_numbers<[1], [0], [0], [1], [0, 0, 1, 1], [], []>} : vector<8x128xf32>, vector<128x128xf32>, vector<8x128xf32> -> vector<8x128xf32>
    %188 = arith.addf %183, %187 : vector<8x128xf32>
    %c2_176 = arith.constant 2 : index
    %c0_177 = arith.constant 0 : index
    %189 = vector.load %arg18[%c2_176, %c0_177] : memref<32x128xf32, #tpu.memory_space<vmem>>, vector<8x128xf32>
    %c2_178 = arith.constant 2 : index
    %c0_179 = arith.constant 0 : index
    %c0_180 = arith.constant 0 : index
    %190 = vector.load %arg8[%c2_178, %c0_179, %c0_180] : memref<3x128x128xf32, #tpu.memory_space<vmem>>, vector<1x128x128xf32>
    %191 = vector.shape_cast %190 : vector<1x128x128xf32> to vector<128x128xf32>
    %cst_181 = arith.constant dense<0.000000e+00> : vector<8x128xf32>
    %192 = tpu.matmul %189, %191, %cst_181 {dimension_numbers = #tpu.dot_dimension_numbers<[1], [0], [0], [1], [0, 0, 1, 1], [], []>} : vector<8x128xf32>, vector<128x128xf32>, vector<8x128xf32> -> vector<8x128xf32>
    %193 = arith.addf %188, %192 : vector<8x128xf32>
    %194 = vector.broadcast %179 : vector<1x128xf32> to vector<8x128xf32>
    %195 = arith.addf %193, %194 : vector<8x128xf32>
    %cst_182 = arith.constant 5.000000e-01 : f32
    %196 = vector.broadcast %cst_182 : f32 to vector<8x128xf32>
    %197 = arith.mulf %196, %195 : vector<8x128xf32>
    %cst_183 = arith.constant 0.707106769 : f32
    %198 = vector.broadcast %cst_183 : f32 to vector<8x128xf32>
    %199 = arith.mulf %195, %198 : vector<8x128xf32>
    %200 = math.erf %199 : vector<8x128xf32>
    %cst_184 = arith.constant 1.000000e+00 : f32
    %201 = vector.broadcast %cst_184 : f32 to vector<8x128xf32>
    %202 = arith.addf %201, %200 : vector<8x128xf32>
    %203 = arith.mulf %197, %202 : vector<8x128xf32>
    %c1_185 = arith.constant 1 : index
    %c0_186 = arith.constant 0 : index
    %204 = vector.load %arg19[%c1_185, %c0_186] : memref<32x128xf32, #tpu.memory_space<vmem>>, vector<8x128xf32>
    tpu.vector_store %arg19[%c1_185, %c0_186], %203 {strides = array<i32>} : memref<32x128xf32, #tpu.memory_space<vmem>>, vector<8x128xf32>,
    %c16 = arith.constant 16 : index
    %c0_187 = arith.constant 0 : index
    %205 = vector.load %arg18[%c16, %c0_187] : memref<32x128xf32, #tpu.memory_space<vmem>>, vector<8x128xf32>
    %c0_188 = arith.constant 0 : index
    %c0_189 = arith.constant 0 : index
    %c0_190 = arith.constant 0 : index
    %206 = vector.load %arg8[%c0_188, %c0_189, %c0_190] : memref<3x128x128xf32, #tpu.memory_space<vmem>>, vector<1x128x128xf32>
    %207 = vector.shape_cast %206 : vector<1x128x128xf32> to vector<128x128xf32>
    %cst_191 = arith.constant dense<0.000000e+00> : vector<8x128xf32>
    %208 = tpu.matmul %205, %207, %cst_191 {dimension_numbers = #tpu.dot_dimension_numbers<[1], [0], [0], [1], [0, 0, 1, 1], [], []>} : vector<8x128xf32>, vector<128x128xf32>, vector<8x128xf32> -> vector<8x128xf32>
    %c17_192 = arith.constant 17 : index
    %c0_193 = arith.constant 0 : index
    %209 = vector.load %arg18[%c17_192, %c0_193] : memref<32x128xf32, #tpu.memory_space<vmem>>, vector<8x128xf32>
    %c1_194 = arith.constant 1 : index
    %c0_195 = arith.constant 0 : index
    %c0_196 = arith.constant 0 : index
    %210 = vector.load %arg8[%c1_194, %c0_195, %c0_196] : memref<3x128x128xf32, #tpu.memory_space<vmem>>, vector<1x128x128xf32>
    %211 = vector.shape_cast %210 : vector<1x128x128xf32> to vector<128x128xf32>
    %cst_197 = arith.constant dense<0.000000e+00> : vector<8x128xf32>
    %212 = tpu.matmul %209, %211, %cst_197 {dimension_numbers = #tpu.dot_dimension_numbers<[1], [0], [0], [1], [0, 0, 1, 1], [], []>} : vector<8x128xf32>, vector<128x128xf32>, vector<8x128xf32> -> vector<8x128xf32>
    %213 = arith.addf %208, %212 : vector<8x128xf32>
    %c18 = arith.constant 18 : index
    %c0_198 = arith.constant 0 : index
    %214 = vector.load %arg18[%c18, %c0_198] : memref<32x128xf32, #tpu.memory_space<vmem>>, vector<8x128xf32>
    %c2_199 = arith.constant 2 : index
    %c0_200 = arith.constant 0 : index
    %c0_201 = arith.constant 0 : index
    %215 = vector.load %arg8[%c2_199, %c0_200, %c0_201] : memref<3x128x128xf32, #tpu.memory_space<vmem>>, vector<1x128x128xf32>
    %216 = vector.shape_cast %215 : vector<1x128x128xf32> to vector<128x128xf32>
    %cst_202 = arith.constant dense<0.000000e+00> : vector<8x128xf32>
    %217 = tpu.matmul %214, %216, %cst_202 {dimension_numbers = #tpu.dot_dimension_numbers<[1], [0], [0], [1], [0, 0, 1, 1], [], []>} : vector<8x128xf32>, vector<128x128xf32>, vector<8x128xf32> -> vector<8x128xf32>
    %218 = arith.addf %213, %217 : vector<8x128xf32>
    %219 = vector.broadcast %179 : vector<1x128xf32> to vector<8x128xf32>
    %220 = arith.addf %218, %219 : vector<8x128xf32>
    %cst_203 = arith.constant 5.000000e-01 : f32
    %221 = vector.broadcast %cst_203 : f32 to vector<8x128xf32>
    %222 = arith.mulf %221, %220 : vector<8x128xf32>
    %cst_204 = arith.constant 0.707106769 : f32
    %223 = vector.broadcast %cst_204 : f32 to vector<8x128xf32>
    %224 = arith.mulf %220, %223 : vector<8x128xf32>
    %225 = math.erf %224 : vector<8x128xf32>
    %cst_205 = arith.constant 1.000000e+00 : f32
    %226 = vector.broadcast %cst_205 : f32 to vector<8x128xf32>
    %227 = arith.addf %226, %225 : vector<8x128xf32>
    %228 = arith.mulf %222, %227 : vector<8x128xf32>
    %c17_206 = arith.constant 17 : index
    %c0_207 = arith.constant 0 : index
    %229 = vector.load %arg19[%c17_206, %c0_207] : memref<32x128xf32, #tpu.memory_space<vmem>>, vector<8x128xf32>
    tpu.vector_store %arg19[%c17_206, %c0_207], %228 {strides = array<i32>} : memref<32x128xf32, #tpu.memory_space<vmem>>, vector<8x128xf32>,
    %c0_208 = arith.constant 0 : index
    %c0_209 = arith.constant 0 : index
    %230 = vector.load %arg11[%c0_208, %c0_209] : memref<1x64xf32, #tpu.memory_space<vmem>>, vector<1x64xf32>
    %c0_210 = arith.constant 0 : index
    %c0_211 = arith.constant 0 : index
    %231 = tpu.strided_load %arg19[%c0_210, %c0_211] {strides = array<i32: 2, 1>} : memref<32x128xf32, #tpu.memory_space<vmem>>, vector<4x128xf32>
    %c0_212 = arith.constant 0 : index
    %c0_213 = arith.constant 0 : index
    %c0_214 = arith.constant 0 : index
    %232 = vector.load %arg10[%c0_212, %c0_213, %c0_214] : memref<3x128x64xf32, #tpu.memory_space<vmem>>, vector<1x128x64xf32>
    %233 = vector.shape_cast %232 : vector<1x128x64xf32> to vector<128x64xf32>
    %cst_215 = arith.constant dense<0.000000e+00> : vector<4x64xf32>
    %234 = tpu.matmul %231, %233, %cst_215 {dimension_numbers = #tpu.dot_dimension_numbers<[1], [0], [0], [1], [0, 0, 1, 1], [], []>} : vector<4x128xf32>, vector<128x64xf32>, vector<4x64xf32> -> vector<4x64xf32>
    %c1_216 = arith.constant 1 : index
    %c0_217 = arith.constant 0 : index
    %235 = tpu.strided_load %arg19[%c1_216, %c0_217] {strides = array<i32: 2, 1>} : memref<32x128xf32, #tpu.memory_space<vmem>>, vector<4x128xf32>
    %c1_218 = arith.constant 1 : index
    %c0_219 = arith.constant 0 : index
    %c0_220 = arith.constant 0 : index
    %236 = vector.load %arg10[%c1_218, %c0_219, %c0_220] : memref<3x128x64xf32, #tpu.memory_space<vmem>>, vector<1x128x64xf32>
    %237 = vector.shape_cast %236 : vector<1x128x64xf32> to vector<128x64xf32>
    %cst_221 = arith.constant dense<0.000000e+00> : vector<4x64xf32>
    %238 = tpu.matmul %235, %237, %cst_221 {dimension_numbers = #tpu.dot_dimension_numbers<[1], [0], [0], [1], [0, 0, 1, 1], [], []>} : vector<4x128xf32>, vector<128x64xf32>, vector<4x64xf32> -> vector<4x64xf32>
    %239 = arith.addf %234, %238 : vector<4x64xf32>
    %c2_222 = arith.constant 2 : index
    %c0_223 = arith.constant 0 : index
    %240 = tpu.strided_load %arg19[%c2_222, %c0_223] {strides = array<i32: 2, 1>} : memref<32x128xf32, #tpu.memory_space<vmem>>, vector<4x128xf32>
    %c2_224 = arith.constant 2 : index
    %c0_225 = arith.constant 0 : index
    %c0_226 = arith.constant 0 : index
    %241 = vector.load %arg10[%c2_224, %c0_225, %c0_226] : memref<3x128x64xf32, #tpu.memory_space<vmem>>, vector<1x128x64xf32>
    %242 = vector.shape_cast %241 : vector<1x128x64xf32> to vector<128x64xf32>
    %cst_227 = arith.constant dense<0.000000e+00> : vector<4x64xf32>
    %243 = tpu.matmul %240, %242, %cst_227 {dimension_numbers = #tpu.dot_dimension_numbers<[1], [0], [0], [1], [0, 0, 1, 1], [], []>} : vector<4x128xf32>, vector<128x64xf32>, vector<4x64xf32> -> vector<4x64xf32>
    %244 = arith.addf %239, %243 : vector<4x64xf32>
    %245 = vector.broadcast %230 : vector<1x64xf32> to vector<4x64xf32>
    %246 = arith.addf %244, %245 : vector<4x64xf32>
    %cst_228 = arith.constant 5.000000e-01 : f32
    %247 = vector.broadcast %cst_228 : f32 to vector<4x64xf32>
    %248 = arith.mulf %247, %246 : vector<4x64xf32>
    %cst_229 = arith.constant 0.707106769 : f32
    %249 = vector.broadcast %cst_229 : f32 to vector<4x64xf32>
    %250 = arith.mulf %246, %249 : vector<4x64xf32>
    %251 = math.erf %250 : vector<4x64xf32>
    %cst_230 = arith.constant 1.000000e+00 : f32
    %252 = vector.broadcast %cst_230 : f32 to vector<4x64xf32>
    %253 = arith.addf %252, %251 : vector<4x64xf32>
    %254 = arith.mulf %248, %253 : vector<4x64xf32>
    %c0_231 = arith.constant 0 : index
    %c0_232 = arith.constant 0 : index
    %255 = vector.load %arg20[%c0_231, %c0_232] : memref<8x64xf32, #tpu.memory_space<vmem>>, vector<4x64xf32>
    tpu.vector_store %arg20[%c0_231, %c0_232], %254 {strides = array<i32>} : memref<8x64xf32, #tpu.memory_space<vmem>>, vector<4x64xf32>,
    %c16_233 = arith.constant 16 : index
    %c0_234 = arith.constant 0 : index
    %256 = tpu.strided_load %arg19[%c16_233, %c0_234] {strides = array<i32: 2, 1>} : memref<32x128xf32, #tpu.memory_space<vmem>>, vector<4x128xf32>
    %c0_235 = arith.constant 0 : index
    %c0_236 = arith.constant 0 : index
    %c0_237 = arith.constant 0 : index
    %257 = vector.load %arg10[%c0_235, %c0_236, %c0_237] : memref<3x128x64xf32, #tpu.memory_space<vmem>>, vector<1x128x64xf32>
    %258 = vector.shape_cast %257 : vector<1x128x64xf32> to vector<128x64xf32>
    %cst_238 = arith.constant dense<0.000000e+00> : vector<4x64xf32>
    %259 = tpu.matmul %256, %258, %cst_238 {dimension_numbers = #tpu.dot_dimension_numbers<[1], [0], [0], [1], [0, 0, 1, 1], [], []>} : vector<4x128xf32>, vector<128x64xf32>, vector<4x64xf32> -> vector<4x64xf32>
    %c17_239 = arith.constant 17 : index
    %c0_240 = arith.constant 0 : index
    %260 = tpu.strided_load %arg19[%c17_239, %c0_240] {strides = array<i32: 2, 1>} : memref<32x128xf32, #tpu.memory_space<vmem>>, vector<4x128xf32>
    %c1_241 = arith.constant 1 : index
    %c0_242 = arith.constant 0 : index
    %c0_243 = arith.constant 0 : index
    %261 = vector.load %arg10[%c1_241, %c0_242, %c0_243] : memref<3x128x64xf32, #tpu.memory_space<vmem>>, vector<1x128x64xf32>
    %262 = vector.shape_cast %261 : vector<1x128x64xf32> to vector<128x64xf32>
    %cst_244 = arith.constant dense<0.000000e+00> : vector<4x64xf32>
    %263 = tpu.matmul %260, %262, %cst_244 {dimension_numbers = #tpu.dot_dimension_numbers<[1], [0], [0], [1], [0, 0, 1, 1], [], []>} : vector<4x128xf32>, vector<128x64xf32>, vector<4x64xf32> -> vector<4x64xf32>
    %264 = arith.addf %259, %263 : vector<4x64xf32>
    %c18_245 = arith.constant 18 : index
    %c0_246 = arith.constant 0 : index
    %265 = tpu.strided_load %arg19[%c18_245, %c0_246] {strides = array<i32: 2, 1>} : memref<32x128xf32, #tpu.memory_space<vmem>>, vector<4x128xf32>
    %c2_247 = arith.constant 2 : index
    %c0_248 = arith.constant 0 : index
    %c0_249 = arith.constant 0 : index
    %266 = vector.load %arg10[%c2_247, %c0_248, %c0_249] : memref<3x128x64xf32, #tpu.memory_space<vmem>>, vector<1x128x64xf32>
    %267 = vector.shape_cast %266 : vector<1x128x64xf32> to vector<128x64xf32>
    %cst_250 = arith.constant dense<0.000000e+00> : vector<4x64xf32>
    %268 = tpu.matmul %265, %267, %cst_250 {dimension_numbers = #tpu.dot_dimension_numbers<[1], [0], [0], [1], [0, 0, 1, 1], [], []>} : vector<4x128xf32>, vector<128x64xf32>, vector<4x64xf32> -> vector<4x64xf32>
    %269 = arith.addf %264, %268 : vector<4x64xf32>
    %270 = vector.broadcast %230 : vector<1x64xf32> to vector<4x64xf32>
    %271 = arith.addf %269, %270 : vector<4x64xf32>
    %cst_251 = arith.constant 5.000000e-01 : f32
    %272 = vector.broadcast %cst_251 : f32 to vector<4x64xf32>
    %273 = arith.mulf %272, %271 : vector<4x64xf32>
    %cst_252 = arith.constant 0.707106769 : f32
    %274 = vector.broadcast %cst_252 : f32 to vector<4x64xf32>
    %275 = arith.mulf %271, %274 : vector<4x64xf32>
    %276 = math.erf %275 : vector<4x64xf32>
    %cst_253 = arith.constant 1.000000e+00 : f32
    %277 = vector.broadcast %cst_253 : f32 to vector<4x64xf32>
    %278 = arith.addf %277, %276 : vector<4x64xf32>
    %279 = arith.mulf %273, %278 : vector<4x64xf32>
    %c4 = arith.constant 4 : index
    %c0_254 = arith.constant 0 : index
    %280 = vector.load %arg20[%c4, %c0_254] : memref<8x64xf32, #tpu.memory_space<vmem>>, vector<4x64xf32>
    tpu.vector_store %arg20[%c4, %c0_254], %279 {strides = array<i32>} : memref<8x64xf32, #tpu.memory_space<vmem>>, vector<4x64xf32>,
    %c0_255 = arith.constant 0 : index
    %c0_256 = arith.constant 0 : index
    %281 = tpu.strided_load %arg20[%c0_255, %c0_256] {strides = array<i32: 4, 1>} : memref<8x64xf32, #tpu.memory_space<vmem>>, vector<2x64xf32>
    %c0_257 = arith.constant 0 : index
    %c0_258 = arith.constant 0 : index
    %c0_259 = arith.constant 0 : index
    %282 = vector.load %arg12[%c0_257, %c0_258, %c0_259] : memref<4x64x32xf32, #tpu.memory_space<vmem>>, vector<1x64x32xf32>
    %283 = vector.shape_cast %282 : vector<1x64x32xf32> to vector<64x32xf32>
    %cst_260 = arith.constant dense<0.000000e+00> : vector<2x32xf32>
    %284 = tpu.matmul %281, %283, %cst_260 {dimension_numbers = #tpu.dot_dimension_numbers<[1], [0], [0], [1], [0, 0, 1, 1], [], []>} : vector<2x64xf32>, vector<64x32xf32>, vector<2x32xf32> -> vector<2x32xf32>
    %c1_261 = arith.constant 1 : index
    %c0_262 = arith.constant 0 : index
    %285 = tpu.strided_load %arg20[%c1_261, %c0_262] {strides = array<i32: 4, 1>} : memref<8x64xf32, #tpu.memory_space<vmem>>, vector<2x64xf32>
    %c1_263 = arith.constant 1 : index
    %c0_264 = arith.constant 0 : index
    %c0_265 = arith.constant 0 : index
    %286 = vector.load %arg12[%c1_263, %c0_264, %c0_265] : memref<4x64x32xf32, #tpu.memory_space<vmem>>, vector<1x64x32xf32>
    %287 = vector.shape_cast %286 : vector<1x64x32xf32> to vector<64x32xf32>
    %cst_266 = arith.constant dense<0.000000e+00> : vector<2x32xf32>
    %288 = tpu.matmul %285, %287, %cst_266 {dimension_numbers = #tpu.dot_dimension_numbers<[1], [0], [0], [1], [0, 0, 1, 1], [], []>} : vector<2x64xf32>, vector<64x32xf32>, vector<2x32xf32> -> vector<2x32xf32>
    %289 = arith.addf %284, %288 : vector<2x32xf32>
    %c2_267 = arith.constant 2 : index
    %c0_268 = arith.constant 0 : index
    %290 = tpu.strided_load %arg20[%c2_267, %c0_268] {strides = array<i32: 4, 1>} : memref<8x64xf32, #tpu.memory_space<vmem>>, vector<2x64xf32>
    %c2_269 = arith.constant 2 : index
    %c0_270 = arith.constant 0 : index
    %c0_271 = arith.constant 0 : index
    %291 = vector.load %arg12[%c2_269, %c0_270, %c0_271] : memref<4x64x32xf32, #tpu.memory_space<vmem>>, vector<1x64x32xf32>
    %292 = vector.shape_cast %291 : vector<1x64x32xf32> to vector<64x32xf32>
    %cst_272 = arith.constant dense<0.000000e+00> : vector<2x32xf32>
    %293 = tpu.matmul %290, %292, %cst_272 {dimension_numbers = #tpu.dot_dimension_numbers<[1], [0], [0], [1], [0, 0, 1, 1], [], []>} : vector<2x64xf32>, vector<64x32xf32>, vector<2x32xf32> -> vector<2x32xf32>
    %294 = arith.addf %289, %293 : vector<2x32xf32>
    %c3 = arith.constant 3 : index
    %c0_273 = arith.constant 0 : index
    %295 = tpu.strided_load %arg20[%c3, %c0_273] {strides = array<i32: 4, 1>} : memref<8x64xf32, #tpu.memory_space<vmem>>, vector<2x64xf32>
    %c3_274 = arith.constant 3 : index
    %c0_275 = arith.constant 0 : index
    %c0_276 = arith.constant 0 : index
    %296 = vector.load %arg12[%c3_274, %c0_275, %c0_276] : memref<4x64x32xf32, #tpu.memory_space<vmem>>, vector<1x64x32xf32>
    %297 = vector.shape_cast %296 : vector<1x64x32xf32> to vector<64x32xf32>
    %cst_277 = arith.constant dense<0.000000e+00> : vector<2x32xf32>
    %298 = tpu.matmul %295, %297, %cst_277 {dimension_numbers = #tpu.dot_dimension_numbers<[1], [0], [0], [1], [0, 0, 1, 1], [], []>} : vector<2x64xf32>, vector<64x32xf32>, vector<2x32xf32> -> vector<2x32xf32>
    %299 = arith.addf %294, %298 : vector<2x32xf32>
    %c0_278 = arith.constant 0 : index
    %c0_279 = arith.constant 0 : index
    %300 = vector.load %arg13[%c0_278, %c0_279] : memref<1x32xf32, #tpu.memory_space<vmem>>, vector<1x32xf32>
    %301 = vector.broadcast %300 : vector<1x32xf32> to vector<2x32xf32>
    %302 = arith.addf %299, %301 : vector<2x32xf32>
    %c0_280 = arith.constant 0 : index
    %c0_281 = arith.constant 0 : index
    %303 = vector.load %arg14[%c0_280, %c0_281] : memref<2x32xf32, #tpu.memory_space<vmem>>, vector<2x32xf32>
    tpu.vector_store %arg14[%c0_280, %c0_281], %302 {strides = array<i32>} : memref<2x32xf32, #tpu.memory_space<vmem>>, vector<2x32xf32>,
    return
  }
  func.func @transform_0(%arg0: i32) -> (i32, i32, i32) {
    %c0_i32 = arith.constant 0 : i32
    %c0_i32_0 = arith.constant 0 : i32
    %c0_i32_1 = arith.constant 0 : i32
    return %arg0, %c0_i32, %c0_i32_0 : i32, i32, i32
  }
  func.func @transform_1(%arg0: i32) -> (i32, i32, i32) {
    %c0_i32 = arith.constant 0 : i32
    %c0_i32_0 = arith.constant 0 : i32
    %c0_i32_1 = arith.constant 0 : i32
    %c0_i32_2 = arith.constant 0 : i32
    return %c0_i32, %c0_i32_0, %c0_i32_1 : i32, i32, i32
  }
  func.func @transform_2(%arg0: i32) -> (i32, i32) {
    %c0_i32 = arith.constant 0 : i32
    %c0_i32_0 = arith.constant 0 : i32
    %c0_i32_1 = arith.constant 0 : i32
    return %c0_i32, %c0_i32_0 : i32, i32
  }
  func.func @transform_3(%arg0: i32) -> (i32, i32, i32) {
    %c0_i32 = arith.constant 0 : i32
    %c0_i32_0 = arith.constant 0 : i32
    %c0_i32_1 = arith.constant 0 : i32
    %c0_i32_2 = arith.constant 0 : i32
    return %c0_i32, %c0_i32_0, %c0_i32_1 : i32, i32, i32
  }
  func.func @transform_4(%arg0: i32) -> (i32, i32) {
    %c0_i32 = arith.constant 0 : i32
    %c0_i32_0 = arith.constant 0 : i32
    %c0_i32_1 = arith.constant 0 : i32
    return %c0_i32, %c0_i32_0 : i32, i32
  }
  func.func @transform_5(%arg0: i32) -> (i32, i32, i32) {
    %c0_i32 = arith.constant 0 : i32
    %c0_i32_0 = arith.constant 0 : i32
    %c0_i32_1 = arith.constant 0 : i32
    %c0_i32_2 = arith.constant 0 : i32
    return %c0_i32, %c0_i32_0, %c0_i32_1 : i32, i32, i32
  }
  func.func @transform_6(%arg0: i32) -> (i32, i32) {
    %c0_i32 = arith.constant 0 : i32
    %c0_i32_0 = arith.constant 0 : i32
    %c0_i32_1 = arith.constant 0 : i32
    return %c0_i32, %c0_i32_0 : i32, i32
  }
  func.func @transform_7(%arg0: i32) -> (i32, i32, i32) {
    %c0_i32 = arith.constant 0 : i32
    %c0_i32_0 = arith.constant 0 : i32
    %c0_i32_1 = arith.constant 0 : i32
    %c0_i32_2 = arith.constant 0 : i32
    return %c0_i32, %c0_i32_0, %c0_i32_1 : i32, i32, i32
  }
  func.func @transform_8(%arg0: i32) -> (i32, i32) {
    %c0_i32 = arith.constant 0 : i32
    %c0_i32_0 = arith.constant 0 : i32
    %c0_i32_1 = arith.constant 0 : i32
    return %c0_i32, %c0_i32_0 : i32, i32
  }
  func.func @transform_9(%arg0: i32) -> (i32, i32, i32) {
    %c0_i32 = arith.constant 0 : i32
    %c0_i32_0 = arith.constant 0 : i32
    %c0_i32_1 = arith.constant 0 : i32
    %c0_i32_2 = arith.constant 0 : i32
    return %c0_i32, %c0_i32_0, %c0_i32_1 : i32, i32, i32
  }
  func.func @transform_10(%arg0: i32) -> (i32, i32) {
    %c0_i32 = arith.constant 0 : i32
    %c0_i32_0 = arith.constant 0 : i32
    %c0_i32_1 = arith.constant 0 : i32
    return %c0_i32, %c0_i32_0 : i32, i32
  }
  func.func @transform_11(%arg0: i32) -> (i32, i32, i32) {
    %c0_i32 = arith.constant 0 : i32
    %c0_i32_0 = arith.constant 0 : i32
    %c0_i32_1 = arith.constant 0 : i32
    %c0_i32_2 = arith.constant 0 : i32
    return %c0_i32, %c0_i32_0, %c0_i32_1 : i32, i32, i32
  }
  func.func @transform_12(%arg0: i32) -> (i32, i32) {
    %c0_i32 = arith.constant 0 : i32
    %c0_i32_0 = arith.constant 0 : i32
    %c0_i32_1 = arith.constant 0 : i32
    return %c0_i32, %c0_i32_0 : i32, i32
  }
  func.func @transform_13(%arg0: i32) -> (i32, i32) {
    %c0_i32 = arith.constant 0 : i32
    %c0_i32_0 = arith.constant 0 : i32
    return %arg0, %c0_i32 : i32, i32
  }
}

</mosaic_0001>

<llo_original>
// kernel: tpu_custom_call.1
$region0: #{tpu_custom_call.1}
  #allocation0 [shape = 'u32[]', space=smem, size = 0x4, offset = 0x4, fixed_abs, tag = 'smem constant byte address 0x4 - core index']
  #allocation1 [shape = 'u32[144,128]{1,0:T(1,128)}', space=vmem, size = 0x12000, scoped, tag = 'internal scratch']
  #allocation2 [shape = 'f32[80,32]{1,0:T(8,128)}', space=vmem, size = 0xa000, scoped, tag = 'scratch operand']
  #allocation3 [shape = 'f32[48,128]{1,0:T(8,128)}', space=vmem, size = 0x6000, scoped, tag = 'scratch operand']
  #allocation4 [shape = 'f32[48,128]{1,0:T(8,128)}', space=vmem, size = 0x6000, scoped, tag = 'scratch operand']
  #allocation5 [shape = 'f32[32,128]{1,0:T(8,128)}', space=vmem, size = 0x4000, scoped, tag = 'scratch operand']
  #allocation6 [shape = 'f32[32,128]{1,0:T(8,128)}', space=vmem, size = 0x4000, scoped, tag = 'scratch operand']
  #allocation7 [shape = 'f32[8,64]{1,0:T(8,128)}', space=vmem, size = 0x1000, scoped, tag = 'scratch operand']
  %s0 = inlined_call_operand.hbm [shape: s32[2,32,32], index: 0, kind: input, shape index: {}]
  %s1 = inlined_call_operand.hbm [shape: f32[3,32,128], index: 1, kind: input, shape index: {}]
  %s2 = inlined_call_operand.vmem [shape: f32[1,128], index: 2, kind: input, shape index: {}]
  %s3 = inlined_call_operand.vmem [shape: f32[3,128,128], index: 3, kind: input, shape index: {}]
  %s4 = inlined_call_operand.vmem [shape: f32[1,128], index: 4, kind: input, shape index: {}]
  %s5 = inlined_call_operand.vmem [shape: f32[3,128,128], index: 5, kind: input, shape index: {}]
  %s6 = inlined_call_operand.vmem [shape: f32[1,128], index: 6, kind: input, shape index: {}]
  %s7 = inlined_call_operand.hbm [shape: f32[3,128,128], index: 7, kind: input, shape index: {}]
  %s8 = inlined_call_operand.vmem [shape: f32[1,128], index: 8, kind: input, shape index: {}]
  %s9 = inlined_call_operand.vmem [shape: f32[3,128,64], index: 9, kind: input, shape index: {}]
  %s10 = inlined_call_operand.vmem [shape: f32[1,64], index: 10, kind: input, shape index: {}]
  %s11 = inlined_call_operand.vmem [shape: f32[4,64,32], index: 11, kind: input, shape index: {}]
  %s12 = inlined_call_operand.vmem [shape: f32[1,32], index: 12, kind: input, shape index: {}]
  %s13 = inlined_call_operand.hbm [shape: f32[2,32], index: 13, kind: output, shape index: {}]
  %s14 = sld [smem:[#allocation0]]
  $region74: #{tpu_custom_call.1} parent=0
    _
  %s16 = ssub.s32 1, %s14
  %s17 = scalar_select 0, %s16, %s14
  $region1: #{tpu_custom_call.1} parent=0
    #allocation8 [shape = 'u8[32768]{0}', space=vmem, size = 0x8000, scoped, tag = 'input window, operand 0, single buffered']
    #allocation9 [shape = 's32[1]{0}', space=sflag, size = 0x4, scoped, tag = 'scoped memory for tpu_custom_call.1']
    #allocation10 [shape = 's32[1]{0}', space=sflag, size = 0x4, scoped, tag = 'scoped memory for tpu_custom_call.1']
    #allocation11 [shape = 'u8[49152]{0}', space=vmem, size = 0xc000, scoped, tag = 'input window, operand 1, single buffered']
    #allocation12 [shape = 's32[1]{0}', space=sflag, size = 0x4, scoped, tag = 'scoped memory for tpu_custom_call.1']
    #allocation13 [shape = 'u8[196608]{0}', space=vmem, size = 0x30000, scoped, tag = 'input window, operand 7, single buffered']
    #allocation14 [shape = 'u8[1024]{0}', space=vmem, size = 0x400, scoped, tag = 'output window, operand 0, single buffered']
    %18 = vsyncpa [#allocation9], 0
    %19 = vsyncpa [#allocation12], 0
    %20 = vsyncpa [#allocation10], 0
    // Predicated region
    $region2: #{tpu_custom_call.1} parent=1 // pred_check
      _
    $region3: #{tpu_custom_call.1} parent=1 // pred_check_branch
      %22 = sbr.rel (0) target = $region5
    $region4: #{tpu_custom_call.1} parent=1 // pred_region
      %s24 = ssub.s32 1024, 1024
      %25 = vsyncadd [#allocation9], %s24
      %s26 = sshll.u32 [#allocation8], 4
      %s27 = int_to_ptr.vmem [resolvable:$true] %s26
      %32 = dma.hbm_to_vmem [thread:$0]  %s0, 1024, %s27, [#allocation9], 128, 128, 8
    $region5: #{tpu_custom_call.1} parent=1 // pred_fallthru
      _
    // Predicated region
    $region6: #{tpu_custom_call.1} parent=1 // pred_check
      _
    $region7: #{tpu_custom_call.1} parent=1 // pred_check_branch
      %34 = sbr.rel (0) target = $region9
    $region8: #{tpu_custom_call.1} parent=1 // pred_region
      %s36 = ssub.s32 1536, 1536
      %37 = vsyncadd [#allocation12], %s36
      %s38 = sshll.u32 [#allocation11], 4
      %s39 = int_to_ptr.vmem [resolvable:$true] %s38
      %44 = dma.hbm_to_vmem [thread:$0]  %s1, 1536, %s39, [#allocation12], 128, 128, 8
    $region9: #{tpu_custom_call.1} parent=1 // pred_fallthru
      _
    // Predicated region
    $region10: #{tpu_custom_call.1} parent=1 // pred_check
      _
    $region11: #{tpu_custom_call.1} parent=1 // pred_check_branch
      %46 = sbr.rel (0) target = $region13
    $region12: #{tpu_custom_call.1} parent=1 // pred_region
      _
    $region13: #{tpu_custom_call.1} parent=1 // pred_fallthru
      _
    // Predicated region
    $region14: #{tpu_custom_call.1} parent=1 // pred_check
      _
    $region15: #{tpu_custom_call.1} parent=1 // pred_check_branch
      %48 = sbr.rel (0) target = $region17
    $region16: #{tpu_custom_call.1} parent=1 // pred_region
      _
    $region17: #{tpu_custom_call.1} parent=1 // pred_fallthru
      _
    // Predicated region
    $region18: #{tpu_custom_call.1} parent=1 // pred_check
      _
    $region19: #{tpu_custom_call.1} parent=1 // pred_check_branch
      %50 = sbr.rel (0) target = $region21
    $region20: #{tpu_custom_call.1} parent=1 // pred_region
      _
    $region21: #{tpu_custom_call.1} parent=1 // pred_fallthru
      _
    // Predicated region
    $region22: #{tpu_custom_call.1} parent=1 // pred_check
      _
    $region23: #{tpu_custom_call.1} parent=1 // pred_check_branch
      %52 = sbr.rel (0) target = $region25
    $region24: #{tpu_custom_call.1} parent=1 // pred_region
      _
    $region25: #{tpu_custom_call.1} parent=1 // pred_fallthru
      _
    // Predicated region
    $region26: #{tpu_custom_call.1} parent=1 // pred_check
      _
    $region27: #{tpu_custom_call.1} parent=1 // pred_check_branch
      %54 = sbr.rel (0) target = $region29
    $region28: #{tpu_custom_call.1} parent=1 // pred_region
      _
    $region29: #{tpu_custom_call.1} parent=1 // pred_fallthru
      _
    // Predicated region
    $region30: #{tpu_custom_call.1} parent=1 // pred_check
      _
    $region31: #{tpu_custom_call.1} parent=1 // pred_check_branch
      %56 = sbr.rel (0) target = $region33
    $region32: #{tpu_custom_call.1} parent=1 // pred_region
      %s58 = ssub.s32 6144, 6144
      %59 = vsyncadd [#allocation12], %s58
      %s60 = sshll.u32 [#allocation13], 4
      %s61 = int_to_ptr.vmem [resolvable:$true] %s60
      %66 = dma.hbm_to_vmem [thread:$0]  %s7, 6144, %s61, [#allocation12], 128, 128, 8
    $region33: #{tpu_custom_call.1} parent=1 // pred_fallthru
      _
    // Predicated region
    $region34: #{tpu_custom_call.1} parent=1 // pred_check
      _
    $region35: #{tpu_custom_call.1} parent=1 // pred_check_branch
      %68 = sbr.rel (0) target = $region37
    $region36: #{tpu_custom_call.1} parent=1 // pred_region
      _
    $region37: #{tpu_custom_call.1} parent=1 // pred_fallthru
      _
    // Predicated region
    $region38: #{tpu_custom_call.1} parent=1 // pred_check
      _
    $region39: #{tpu_custom_call.1} parent=1 // pred_check_branch
      %70 = sbr.rel (0) target = $region41
    $region40: #{tpu_custom_call.1} parent=1 // pred_region
      _
    $region41: #{tpu_custom_call.1} parent=1 // pred_fallthru
      _
    // Predicated region
    $region42: #{tpu_custom_call.1} parent=1 // pred_check
      _
    $region43: #{tpu_custom_call.1} parent=1 // pred_check_branch
      %72 = sbr.rel (0) target = $region45
    $region44: #{tpu_custom_call.1} parent=1 // pred_region
      _
    $region45: #{tpu_custom_call.1} parent=1 // pred_fallthru
      _
    // Predicated region
    $region46: #{tpu_custom_call.1} parent=1 // pred_check
      _
    $region47: #{tpu_custom_call.1} parent=1 // pred_check_branch
      %74 = sbr.rel (0) target = $region49
    $region48: #{tpu_custom_call.1} parent=1 // pred_region
      _
    $region49: #{tpu_custom_call.1} parent=1 // pred_fallthru
      _
    // Predicated region
    $region50: #{tpu_custom_call.1} parent=1 // pred_check
      _
    $region51: #{tpu_custom_call.1} parent=1 // pred_check_branch
      %76 = sbr.rel (0) target = $region53
    $region52: #{tpu_custom_call.1} parent=1 // pred_region
      _
    $region53: #{tpu_custom_call.1} parent=1 // pred_fallthru
      _
    // Predicated region
    $region54: #{tpu_custom_call.1} parent=1 // pred_check
      _
    $region55: #{tpu_custom_call.1} parent=1 // pred_check_branch
      %78 = sbr.rel (0) target = $region57
    $region56: #{tpu_custom_call.1} parent=1 // pred_region
      %79 = dma.done [#allocation9], 1024
    $region57: #{tpu_custom_call.1} parent=1 // pred_fallthru
      _
    // Predicated region
    $region58: #{tpu_custom_call.1} parent=1 // pred_check
      _
    $region59: #{tpu_custom_call.1} parent=1 // pred_check_branch
      %81 = sbr.rel (0) target = $region61
    $region60: #{tpu_custom_call.1} parent=1 // pred_region
      %82 = dma.done [#allocation12], 1536
    $region61: #{tpu_custom_call.1} parent=1 // pred_fallthru
      _
    // Predicated region
    $region62: #{tpu_custom_call.1} parent=1 // pred_check
      _
    $region63: #{tpu_custom_call.1} parent=1 // pred_check_branch
      %84 = sbr.rel (0) target = $region65
    $region64: #{tpu_custom_call.1} parent=1 // pred_region
      %85 = dma.done [#allocation12], 6144
    $region65: #{tpu_custom_call.1} parent=1 // pred_fallthru
      _
    %vm86 = vcmask 261120
    %87 = vst.msk [vmem:[#allocation2] sm:$0xff] %vm86, 0.0
    %88 = vst.msk [vmem:[#allocation2 + $0x8] sm:$0xff] %vm86, 0.0
    %89 = vst.msk [vmem:[#allocation2 + $0x10] sm:$0xff] %vm86, 0.0
    %90 = vst.msk [vmem:[#allocation2 + $0x18] sm:$0xff] %vm86, 0.0
    %91 = vst.msk [vmem:[#allocation2 + $0x20] sm:$0xff] %vm86, 0.0
    %92 = vst.msk [vmem:[#allocation2 + $0x28] sm:$0xff] %vm86, 0.0
    %93 = vst.msk [vmem:[#allocation2 + $0x30] sm:$0xff] %vm86, 0.0
    %94 = vst.msk [vmem:[#allocation2 + $0x38] sm:$0xff] %vm86, 0.0
    %95 = vst.msk [vmem:[#allocation2 + $0x40] sm:$0xff] %vm86, 0.0
    %96 = vst.msk [vmem:[#allocation2 + $0x48] sm:$0xff] %vm86, 0.0
    %97 = vst [vmem:[#allocation3] sm:$0xff] 0.0
    %98 = vst [vmem:[#allocation3 + $0x8] sm:$0xff] 0.0
    %99 = vst [vmem:[#allocation3 + $0x10] sm:$0xff] 0.0
    %100 = vst [vmem:[#allocation3 + $0x18] sm:$0xff] 0.0
    %101 = vst [vmem:[#allocation3 + $0x20] sm:$0xff] 0.0
    %102 = vst [vmem:[#allocation3 + $0x28] sm:$0xff] 0.0
    %103 = vst [vmem:[#allocation4] sm:$0xff] 0.0
    %104 = vst [vmem:[#allocation4 + $0x8] sm:$0xff] 0.0
    %105 = vst [vmem:[#allocation4 + $0x10] sm:$0xff] 0.0
    %106 = vst [vmem:[#allocation4 + $0x18] sm:$0xff] 0.0
    %107 = vst [vmem:[#allocation4 + $0x20] sm:$0xff] 0.0
    %108 = vst [vmem:[#allocation4 + $0x28] sm:$0xff] 0.0
    %109 = vst [vmem:[#allocation5] sm:$0xff] 0.0
    %110 = vst [vmem:[#allocation5 + $0x8] sm:$0xff] 0.0
    %111 = vst [vmem:[#allocation5 + $0x10] sm:$0xff] 0.0
    %112 = vst [vmem:[#allocation5 + $0x18] sm:$0xff] 0.0
    %113 = vst [vmem:[#allocation6] sm:$0xff] 0.0
    %114 = vst [vmem:[#allocation6 + $0x8] sm:$0xff] 0.0
    %115 = vst [vmem:[#allocation6 + $0x10] sm:$0xff] 0.0
    %116 = vst [vmem:[#allocation6 + $0x18] sm:$0xff] 0.0
    %v117 = vld [vmem:[#allocation8] sm:$0xff]
    %v118 = vld [vmem:[#allocation8 + $0x8] sm:$0xff]
    %v119 = vld [vmem:[#allocation8 + $0x10] sm:$0xff]
    %v120 = vld [vmem:[#allocation8 + $0x18] sm:$0xff]
    %v121 = vcvt.s32.f32 %v117
    %v122 = vcvt.s32.f32 %v118
    %v123 = vcvt.s32.f32 %v119
    %v124 = vcvt.s32.f32 %v120
    %v125 = vmul.f32 %v121, 0.13333334
    %v126 = vmul.f32 %v122, 0.13333334
    %v127 = vmul.f32 %v123, 0.13333334
    %v128 = vmul.f32 %v124, 0.13333334
    %v129 = vsub.f32 %v125, 1.0
    %v130 = vsub.f32 %v126, 1.0
    %v131 = vsub.f32 %v127, 1.0
    %v132 = vsub.f32 %v128, 1.0
    %133 = vst.msk [vmem:[#allocation2 + $0x1] sm:$0xff] %vm86, %v129
    %134 = vst.msk [vmem:[#allocation2 + $0x9] sm:$0xff] %vm86, %v130
    %135 = vst.msk [vmem:[#allocation2 + $0x11] sm:$0xff] %vm86, %v131
    %136 = vst.msk [vmem:[#allocation2 + $0x19] sm:$0xff] %vm86, %v132
    %s137 = scalar_lea.vmem [#allocation8], 32
    %v138 = vld [vmem:[%s137] sm:$0xff]
    %v139 = vld [vmem:[%s137 + $0x8] sm:$0xff]
    %v140 = vld [vmem:[%s137 + $0x10] sm:$0xff]
    %v141 = vld [vmem:[%s137 + $0x18] sm:$0xff]
    %v142 = vcvt.s32.f32 %v138
    %v143 = vcvt.s32.f32 %v139
    %v144 = vcvt.s32.f32 %v140
    %v145 = vcvt.s32.f32 %v141
    %v146 = vmul.f32 %v142, 0.13333334
    %v147 = vmul.f32 %v143, 0.13333334
    %v148 = vmul.f32 %v144, 0.13333334
    %v149 = vmul.f32 %v145, 0.13333334
    %v150 = vsub.f32 %v146, 1.0
    %v151 = vsub.f32 %v147, 1.0
    %v152 = vsub.f32 %v148, 1.0
    %v153 = vsub.f32 %v149, 1.0
    %154 = vst.msk [vmem:[#allocation2 + $0x29] sm:$0xff] %vm86, %v150
    %155 = vst.msk [vmem:[#allocation2 + $0x31] sm:$0xff] %vm86, %v151
    %156 = vst.msk [vmem:[#allocation2 + $0x39] sm:$0xff] %vm86, %v152
    %157 = vst.msk [vmem:[#allocation2 + $0x41] sm:$0xff] %vm86, %v153
    %v158 = vld [vmem:[%s2] sm:$0x1]
    %v159 = vld [vmem:[#allocation2] ss:$2 sm:$0xff]
    %s160 = scalar_lea.vmem [#allocation2], 16
    %v161 = vld [vmem:[%s160] ss:$2 sm:$0xff]
    %v162 = vld [vmem:[#allocation11] sm:$0xff]
    %v163 = vld [vmem:[#allocation11 + $0x8] sm:$0xff]
    %v164 = vld [vmem:[#allocation11 + $0x10] sm:$0xff]
    %v165 = vld [vmem:[#allocation11 + $0x18] sm:$0xff]
    %s166 = scalar_lea.vmem [#allocation2], 1
    %v167 = vld [vmem:[%s166] ss:$2 sm:$0xff]
    %s168 = scalar_lea.vmem [#allocation2], 17
    %v169 = vld [vmem:[%s168] ss:$2 sm:$0xff]
    %s170 = scalar_lea.vmem [#allocation11], 32
    %v171 = vld [vmem:[%s170] sm:$0xff]
    %v172 = vld [vmem:[%s170 + $0x8] sm:$0xff]
    %v173 = vld [vmem:[%s170 + $0x10] sm:$0xff]
    %v174 = vld [vmem:[%s170 + $0x18] sm:$0xff]
    %v176 = vsel %vm86, %v167, 0
    %v179 = vsel %vm86, %v169, 0
    %181 = vmatprep.subr.mxu0 0.0
    %182 = vmatpush1.msra.mxu0 %v171
    %183 = vmatprep.subr.mxu0 0.0
    %184 = vmatpush1.msra.mxu0 %v172
    %185 = vmatprep.subr.mxu0 0.0
    %186 = vmatpush1.msra.mxu0 %v173
    %187 = vmatprep.subr.mxu0 0.0
    %188 = vmatpush1.msra.mxu0 %v174
    %189 = vmatprep.subr.mxu0 0.0
    %190 = vmatpush1.msra.mxu0 0.0
    %191 = vmatprep.subr.mxu0 0.0
    %192 = vmatpush1.msra.mxu0 0.0
    %193 = vmatprep.subr.mxu0 0.0
    %194 = vmatpush1.msra.mxu0 0.0
    %195 = vmatprep.subr.mxu0 0.0
    %196 = vmatpush1.msra.mxu0 0.0
    %197 = vmatprep.subr.mxu0 0.0
    %198 = vmatpush1.msra.mxu0 0.0
    %199 = vmatprep.subr.mxu0 0.0
    %200 = vmatpush1.msra.mxu0 0.0
    %201 = vmatprep.subr.mxu0 0.0
    %202 = vmatpush1.msra.mxu0 0.0
    %203 = vmatprep.subr.mxu0 0.0
    %204 = vmatpush1.msra.mxu0 0.0
    %205 = vmatprep.subr.mxu0 0.0
    %206 = vmatpush1.msra.mxu0 0.0
    %207 = vmatprep.subr.mxu0 0.0
    %208 = vmatpush1.msra.mxu0 0.0
    %209 = vmatprep.subr.mxu0 0.0
    %210 = vmatpush1.msra.mxu0 0.0
    %211 = vmatprep.subr.mxu0 0.0
    %212 = vmatpush1.msra.mxu0 0.0
    %213 = vmatprep.subr.mxu0 0.0
    %214 = vmatpush1.msra.mxu0 0.0
    %215 = vmatprep.subr.mxu0 0.0
    %216 = vmatpush1.msra.mxu0 0.0
    %217 = vmatprep.subr.mxu0 0.0
    %218 = vmatpush1.msra.mxu0 0.0
    %219 = vmatprep.subr.mxu0 0.0
    %220 = vmatpush1.msra.mxu0 0.0
    %221 = vmatprep.subr.mxu0 0.0
    %222 = vmatpush1.msra.mxu0 0.0
    %223 = vmatprep.subr.mxu0 0.0
    %224 = vmatpush1.msra.mxu0 0.0
    %225 = vmatprep.subr.mxu0 0.0
    %226 = vmatpush1.msra.mxu0 0.0
    %227 = vmatprep.subr.mxu0 0.0
    %228 = vmatpush1.msra.mxu0 0.0
    %229 = vmatprep.subr.mxu0 0.0
    %230 = vmatpush1.msra.mxu0 0.0
    %231 = vmatprep.subr.mxu0 0.0
    %232 = vmatpush1.msra.mxu0 0.0
    %233 = vmatprep.subr.mxu0 0.0
    %234 = vmatpush1.msra.mxu0 0.0
    %235 = vmatprep.subr.mxu0 0.0
    %236 = vmatpush1.msra.mxu0 0.0
    %237 = vmatprep.subr.mxu0 0.0
    %238 = vmatpush1.msra.mxu0 0.0
    %239 = vmatprep.subr.mxu0 0.0
    %240 = vmatpush1.msra.mxu0 0.0
    %241 = vmatprep.subr.mxu0 0.0
    %242 = vmatpush1.msra.mxu0 0.0
    %243 = vmatprep.subr.mxu0 0.0
    %244 = vmatpush1.msra.mxu0 0.0
    %245 = vmatprep.mubr.f32.mxu0 0.0
    %246 = vmatmul.mubr.f32.gmra.mrb[0].mxu0 %v176
    %v247 = vpop.f32.mrb[0].mxu0
    %v248 = vadd.f32 0.0, %v247
    %v249 = vpop.f32.mrb[0].mxu0
    %250 = vmatprep.mubr.f32.mxu0 0.0
    %251 = vmatmul.mubr.f32.gmra.mrb[0].mxu0 %v179
    %v252 = vpop.f32.mrb[0].mxu0
    %v253 = vadd.f32 0.0, %v252
    %v254 = vpop.f32.mrb[0].mxu0
    %255 = vdwg.mxu0
    %v257 = vsel %vm86, %v159, 0
    %v260 = vsel %vm86, %v161, 0
    %262 = vmatprep.subr.mxu0 0.0
    %263 = vmatpush1.msra.mxu0 %v162
    %264 = vmatprep.subr.mxu0 0.0
    %265 = vmatpush1.msra.mxu0 %v163
    %266 = vmatprep.subr.mxu0 0.0
    %267 = vmatpush1.msra.mxu0 %v164
    %268 = vmatprep.subr.mxu0 0.0
    %269 = vmatpush1.msra.mxu0 %v165
    %270 = vmatprep.subr.mxu0 0.0
    %271 = vmatpush1.msra.mxu0 0.0
    %272 = vmatprep.subr.mxu0 0.0
    %273 = vmatpush1.msra.mxu0 0.0
    %274 = vmatprep.subr.mxu0 0.0
    %275 = vmatpush1.msra.mxu0 0.0
    %276 = vmatprep.subr.mxu0 0.0
    %277 = vmatpush1.msra.mxu0 0.0
    %278 = vmatprep.subr.mxu0 0.0
    %279 = vmatpush1.msra.mxu0 0.0
    %280 = vmatprep.subr.mxu0 0.0
    %281 = vmatpush1.msra.mxu0 0.0
    %282 = vmatprep.subr.mxu0 0.0
    %283 = vmatpush1.msra.mxu0 0.0
    %284 = vmatprep.subr.mxu0 0.0
    %285 = vmatpush1.msra.mxu0 0.0
    %286 = vmatprep.subr.mxu0 0.0
    %287 = vmatpush1.msra.mxu0 0.0
    %288 = vmatprep.subr.mxu0 0.0
    %289 = vmatpush1.msra.mxu0 0.0
    %290 = vmatprep.subr.mxu0 0.0
    %291 = vmatpush1.msra.mxu0 0.0
    %292 = vmatprep.subr.mxu0 0.0
    %293 = vmatpush1.msra.mxu0 0.0
    %294 = vmatprep.subr.mxu0 0.0
    %295 = vmatpush1.msra.mxu0 0.0
    %296 = vmatprep.subr.mxu0 0.0
    %297 = vmatpush1.msra.mxu0 0.0
    %298 = vmatprep.subr.mxu0 0.0
    %299 = vmatpush1.msra.mxu0 0.0
    %300 = vmatprep.subr.mxu0 0.0
    %301 = vmatpush1.msra.mxu0 0.0
    %302 = vmatprep.subr.mxu0 0.0
    %303 = vmatpush1.msra.mxu0 0.0
    %304 = vmatprep.subr.mxu0 0.0
    %305 = vmatpush1.msra.mxu0 0.0
    %306 = vmatprep.subr.mxu0 0.0
    %307 = vmatpush1.msra.mxu0 0.0
    %308 = vmatprep.subr.mxu0 0.0
    %309 = vmatpush1.msra.mxu0 0.0
    %310 = vmatprep.subr.mxu0 0.0
    %311 = vmatpush1.msra.mxu0 0.0
    %312 = vmatprep.subr.mxu0 0.0
    %313 = vmatpush1.msra.mxu0 0.0
    %314 = vmatprep.subr.mxu0 0.0
    %315 = vmatpush1.msra.mxu0 0.0
    %316 = vmatprep.subr.mxu0 0.0
    %317 = vmatpush1.msra.mxu0 0.0
    %318 = vmatprep.subr.mxu0 0.0
    %319 = vmatpush1.msra.mxu0 0.0
    %320 = vmatprep.subr.mxu0 0.0
    %321 = vmatpush1.msra.mxu0 0.0
    %322 = vmatprep.subr.mxu0 0.0
    %323 = vmatpush1.msra.mxu0 0.0
    %324 = vmatprep.subr.mxu0 0.0
    %325 = vmatpush1.msra.mxu0 0.0
    %326 = vmatprep.mubr.f32.mxu0 0.0
    %327 = vmatmul.mubr.f32.gmra.mrb[0].mxu0 %v257
    %v328 = vpop.f32.mrb[0].mxu0
    %v329 = vadd.f32 %v248, %v328
    %v330 = vpop.f32.mrb[0].mxu0
    %331 = vmatprep.mubr.f32.mxu0 0.0
    %332 = vmatmul.mubr.f32.gmra.mrb[0].mxu0 %v260
    %v333 = vpop.f32.mrb[0].mxu0
    %v334 = vadd.f32 %v253, %v333
    %v335 = vpop.f32.mrb[0].mxu0
    %336 = vdwg.mxu0
    %s337 = scalar_lea.vmem [#allocation2], 2
    %v338 = vld [vmem:[%s337] ss:$2 sm:$0xff]
    %s339 = scalar_lea.vmem [#allocation2], 18
    %v340 = vld [vmem:[%s339] ss:$2 sm:$0xff]
    %s341 = scalar_lea.vmem [#allocation11], 64
    %v342 = vld [vmem:[%s341] sm:$0xff]
    %v343 = vld [vmem:[%s341 + $0x8] sm:$0xff]
    %v344 = vld [vmem:[%s341 + $0x10] sm:$0xff]
    %v345 = vld [vmem:[%s341 + $0x18] sm:$0xff]
    %v347 = vsel %vm86, %v338, 0
    %v350 = vsel %vm86, %v340, 0
    %352 = vmatprep.subr.mxu0 0.0
    %353 = vmatpush1.msra.mxu0 %v342
    %354 = vmatprep.subr.mxu0 0.0
    %355 = vmatpush1.msra.mxu0 %v343
    %356 = vmatprep.subr.mxu0 0.0
    %357 = vmatpush1.msra.mxu0 %v344
    %358 = vmatprep.subr.mxu0 0.0
    %359 = vmatpush1.msra.mxu0 %v345
    %360 = vmatprep.subr.mxu0 0.0
    %361 = vmatpush1.msra.mxu0 0.0
    %362 = vmatprep.subr.mxu0 0.0
    %363 = vmatpush1.msra.mxu0 0.0
    %364 = vmatprep.subr.mxu0 0.0
    %365 = vmatpush1.msra.mxu0 0.0
    %366 = vmatprep.subr.mxu0 0.0
    %367 = vmatpush1.msra.mxu0 0.0
    %368 = vmatprep.subr.mxu0 0.0
    %369 = vmatpush1.msra.mxu0 0.0
    %370 = vmatprep.subr.mxu0 0.0
    %371 = vmatpush1.msra.mxu0 0.0
    %372 = vmatprep.subr.mxu0 0.0
    %373 = vmatpush1.msra.mxu0 0.0
    %374 = vmatprep.subr.mxu0 0.0
    %375 = vmatpush1.msra.mxu0 0.0
    %376 = vmatprep.subr.mxu0 0.0
    %377 = vmatpush1.msra.mxu0 0.0
    %378 = vmatprep.subr.mxu0 0.0
    %379 = vmatpush1.msra.mxu0 0.0
    %380 = vmatprep.subr.mxu0 0.0
    %381 = vmatpush1.msra.mxu0 0.0
    %382 = vmatprep.subr.mxu0 0.0
    %383 = vmatpush1.msra.mxu0 0.0
    %384 = vmatprep.subr.mxu0 0.0
    %385 = vmatpush1.msra.mxu0 0.0
    %386 = vmatprep.subr.mxu0 0.0
    %387 = vmatpush1.msra.mxu0 0.0
    %388 = vmatprep.subr.mxu0 0.0
    %389 = vmatpush1.msra.mxu0 0.0
    %390 = vmatprep.subr.mxu0 0.0
    %391 = vmatpush1.msra.mxu0 0.0
    %392 = vmatprep.subr.mxu0 0.0
    %393 = vmatpush1.msra.mxu0 0.0
    %394 = vmatprep.subr.mxu0 0.0
    %395 = vmatpush1.msra.mxu0 0.0
    %396 = vmatprep.subr.mxu0 0.0
    %397 = vmatpush1.msra.mxu0 0.0
    %398 = vmatprep.subr.mxu0 0.0
    %399 = vmatpush1.msra.mxu0 0.0
    %400 = vmatprep.subr.mxu0 0.0
    %401 = vmatpush1.msra.mxu0 0.0
    %402 = vmatprep.subr.mxu0 0.0
    %403 = vmatpush1.msra.mxu0 0.0
    %404 = vmatprep.subr.mxu0 0.0
    %405 = vmatpush1.msra.mxu0 0.0
    %406 = vmatprep.subr.mxu0 0.0
    %407 = vmatpush1.msra.mxu0 0.0
    %408 = vmatprep.subr.mxu0 0.0
    %409 = vmatpush1.msra.mxu0 0.0
    %410 = vmatprep.subr.mxu0 0.0
    %411 = vmatpush1.msra.mxu0 0.0
    %412 = vmatprep.subr.mxu0 0.0
    %413 = vmatpush1.msra.mxu0 0.0
    %414 = vmatprep.subr.mxu0 0.0
    %415 = vmatpush1.msra.mxu0 0.0
    %416 = vmatprep.mubr.f32.mxu0 0.0
    %417 = vmatmul.mubr.f32.gmra.mrb[0].mxu0 %v347
    %v418 = vpop.f32.mrb[0].mxu0
    %v419 = vadd.f32 0.0, %v418
    %v420 = vpop.f32.mrb[0].mxu0
    %421 = vmatprep.mubr.f32.mxu0 0.0
    %422 = vmatmul.mubr.f32.gmra.mrb[0].mxu0 %v350
    %v423 = vpop.f32.mrb[0].mxu0
    %v424 = vadd.f32 0.0, %v423
    %v425 = vpop.f32.mrb[0].mxu0
    %426 = vdwg.mxu0
    %v427 = vadd.f32 %v329, %v419
    %v428 = vadd.f32 %v334, %v424
    %v430 = vlaneseq
    %v431 = vshrl.u32 %v430, 7
    %v432 = vsub.s32 0, %v431
    %v433 = vrot.slane %v158, %v432
    %v435 = vadd.f32 %v427, %v433
    %v436 = vadd.f32 %v428, %v433
    %v437 = vmul.f32 %v435, 0.5
    %v438 = vmul.f32 %v436, 0.5
    %v439 = vmul.f32 %v435, 0.70710677
    %v440 = vmul.f32 %v436, 0.70710677
    %v441 = verf.f32.pop %v439
    %v442 = verf.f32.pop %v440
    %v443 = vadd.f32 %v441, 1.0
    %v444 = vadd.f32 %v442, 1.0
    %v445 = vmul.f32 %v437, %v443
    %v446 = vmul.f32 %v438, %v444
    %447 = vst [vmem:[#allocation3 + $0x1] sm:$0xff] %v445
    %448 = vst [vmem:[#allocation3 + $0x9] sm:$0xff] %v446
    %s449 = scalar_lea.vmem [#allocation2], 40
    %v450 = vld [vmem:[%s449] ss:$2 sm:$0xff]
    %s451 = scalar_lea.vmem [#allocation2], 56
    %v452 = vld [vmem:[%s451] ss:$2 sm:$0xff]
    %v453 = vld [vmem:[#allocation11] sm:$0xff]
    %v454 = vld [vmem:[#allocation11 + $0x8] sm:$0xff]
    %v455 = vld [vmem:[#allocation11 + $0x10] sm:$0xff]
    %v456 = vld [vmem:[#allocation11 + $0x18] sm:$0xff]
    %s457 = scalar_lea.vmem [#allocation2], 41
    %v458 = vld [vmem:[%s457] ss:$2 sm:$0xff]
    %s459 = scalar_lea.vmem [#allocation2], 57
    %v460 = vld [vmem:[%s459] ss:$2 sm:$0xff]
    %v461 = vld [vmem:[%s170] sm:$0xff]
    %v462 = vld [vmem:[%s170 + $0x8] sm:$0xff]
    %v463 = vld [vmem:[%s170 + $0x10] sm:$0xff]
    %v464 = vld [vmem:[%s170 + $0x18] sm:$0xff]
    %v466 = vsel %vm86, %v458, 0
    %v469 = vsel %vm86, %v460, 0
    %471 = vmatprep.subr.mxu0 0.0
    %472 = vmatpush1.msra.mxu0 %v461
    %473 = vmatprep.subr.mxu0 0.0
    %474 = vmatpush1.msra.mxu0 %v462
    %475 = vmatprep.subr.mxu0 0.0
    %476 = vmatpush1.msra.mxu0 %v463
    %477 = vmatprep.subr.mxu0 0.0
    %478 = vmatpush1.msra.mxu0 %v464
    %479 = vmatprep.subr.mxu0 0.0
    %480 = vmatpush1.msra.mxu0 0.0
    %481 = vmatprep.subr.mxu0 0.0
    %482 = vmatpush1.msra.mxu0 0.0
    %483 = vmatprep.subr.mxu0 0.0
    %484 = vmatpush1.msra.mxu0 0.0
    %485 = vmatprep.subr.mxu0 0.0
    %486 = vmatpush1.msra.mxu0 0.0
    %487 = vmatprep.subr.mxu0 0.0
    %488 = vmatpush1.msra.mxu0 0.0
    %489 = vmatprep.subr.mxu0 0.0
    %490 = vmatpush1.msra.mxu0 0.0
    %491 = vmatprep.subr.mxu0 0.0
    %492 = vmatpush1.msra.mxu0 0.0
    %493 = vmatprep.subr.mxu0 0.0
    %494 = vmatpush1.msra.mxu0 0.0
    %495 = vmatprep.subr.mxu0 0.0
    %496 = vmatpush1.msra.mxu0 0.0
    %497 = vmatprep.subr.mxu0 0.0
    %498 = vmatpush1.msra.mxu0 0.0
    %499 = vmatprep.subr.mxu0 0.0
    %500 = vmatpush1.msra.mxu0 0.0
    %501 = vmatprep.subr.mxu0 0.0
    %502 = vmatpush1.msra.mxu0 0.0
    %503 = vmatprep.subr.mxu0 0.0
    %504 = vmatpush1.msra.mxu0 0.0
    %505 = vmatprep.subr.mxu0 0.0
    %506 = vmatpush1.msra.mxu0 0.0
    %507 = vmatprep.subr.mxu0 0.0
    %508 = vmatpush1.msra.mxu0 0.0
    %509 = vmatprep.subr.mxu0 0.0
    %510 = vmatpush1.msra.mxu0 0.0
    %511 = vmatprep.subr.mxu0 0.0
    %512 = vmatpush1.msra.mxu0 0.0
    %513 = vmatprep.subr.mxu0 0.0
    %514 = vmatpush1.msra.mxu0 0.0
    %515 = vmatprep.subr.mxu0 0.0
    %516 = vmatpush1.msra.mxu0 0.0
    %517 = vmatprep.subr.mxu0 0.0
    %518 = vmatpush1.msra.mxu0 0.0
    %519 = vmatprep.subr.mxu0 0.0
    %520 = vmatpush1.msra.mxu0 0.0
    %521 = vmatprep.subr.mxu0 0.0
    %522 = vmatpush1.msra.mxu0 0.0
    %523 = vmatprep.subr.mxu0 0.0
    %524 = vmatpush1.msra.mxu0 0.0
    %525 = vmatprep.subr.mxu0 0.0
    %526 = vmatpush1.msra.mxu0 0.0
    %527 = vmatprep.subr.mxu0 0.0
    %528 = vmatpush1.msra.mxu0 0.0
    %529 = vmatprep.subr.mxu0 0.0
    %530 = vmatpush1.msra.mxu0 0.0
    %531 = vmatprep.subr.mxu0 0.0
    %532 = vmatpush1.msra.mxu0 0.0
    %533 = vmatprep.subr.mxu0 0.0
    %534 = vmatpush1.msra.mxu0 0.0
    %535 = vmatprep.mubr.f32.mxu0 0.0
    %536 = vmatmul.mubr.f32.gmra.mrb[0].mxu0 %v466
    %v537 = vpop.f32.mrb[0].mxu0
    %v538 = vadd.f32 0.0, %v537
    %v539 = vpop.f32.mrb[0].mxu0
    %540 = vmatprep.mubr.f32.mxu0 0.0
    %541 = vmatmul.mubr.f32.gmra.mrb[0].mxu0 %v469
    %v542 = vpop.f32.mrb[0].mxu0
    %v543 = vadd.f32 0.0, %v542
    %v544 = vpop.f32.mrb[0].mxu0
    %545 = vdwg.mxu0
    %v547 = vsel %vm86, %v450, 0
    %v550 = vsel %vm86, %v452, 0
    %552 = vmatprep.subr.mxu0 0.0
    %553 = vmatpush1.msra.mxu0 %v453
    %554 = vmatprep.subr.mxu0 0.0
    %555 = vmatpush1.msra.mxu0 %v454
    %556 = vmatprep.subr.mxu0 0.0
    %557 = vmatpush1.msra.mxu0 %v455
    %558 = vmatprep.subr.mxu0 0.0
    %559 = vmatpush1.msra.mxu0 %v456
    %560 = vmatprep.subr.mxu0 0.0
    %561 = vmatpush1.msra.mxu0 0.0
    %562 = vmatprep.subr.mxu0 0.0
    %563 = vmatpush1.msra.mxu0 0.0
    %564 = vmatprep.subr.mxu0 0.0
    %565 = vmatpush1.msra.mxu0 0.0
    %566 = vmatprep.subr.mxu0 0.0
    %567 = vmatpush1.msra.mxu0 0.0
    %568 = vmatprep.subr.mxu0 0.0
    %569 = vmatpush1.msra.mxu0 0.0
    %570 = vmatprep.subr.mxu0 0.0
    %571 = vmatpush1.msra.mxu0 0.0
    %572 = vmatprep.subr.mxu0 0.0
    %573 = vmatpush1.msra.mxu0 0.0
    %574 = vmatprep.subr.mxu0 0.0
    %575 = vmatpush1.msra.mxu0 0.0
    %576 = vmatprep.subr.mxu0 0.0
    %577 = vmatpush1.msra.mxu0 0.0
    %578 = vmatprep.subr.mxu0 0.0
    %579 = vmatpush1.msra.mxu0 0.0
    %580 = vmatprep.subr.mxu0 0.0
    %581 = vmatpush1.msra.mxu0 0.0
    %582 = vmatprep.subr.mxu0 0.0
    %583 = vmatpush1.msra.mxu0 0.0
    %584 = vmatprep.subr.mxu0 0.0
    %585 = vmatpush1.msra.mxu0 0.0
    %586 = vmatprep.subr.mxu0 0.0
    %587 = vmatpush1.msra.mxu0 0.0
    %588 = vmatprep.subr.mxu0 0.0
    %589 = vmatpush1.msra.mxu0 0.0
    %590 = vmatprep.subr.mxu0 0.0
    %591 = vmatpush1.msra.mxu0 0.0
    %592 = vmatprep.subr.mxu0 0.0
    %593 = vmatpush1.msra.mxu0 0.0
    %594 = vmatprep.subr.mxu0 0.0
    %595 = vmatpush1.msra.mxu0 0.0
    %596 = vmatprep.subr.mxu0 0.0
    %597 = vmatpush1.msra.mxu0 0.0
    %598 = vmatprep.subr.mxu0 0.0
    %599 = vmatpush1.msra.mxu0 0.0
    %600 = vmatprep.subr.mxu0 0.0
    %601 = vmatpush1.msra.mxu0 0.0
    %602 = vmatprep.subr.mxu0 0.0
    %603 = vmatpush1.msra.mxu0 0.0
    %604 = vmatprep.subr.mxu0 0.0
    %605 = vmatpush1.msra.mxu0 0.0
    %606 = vmatprep.subr.mxu0 0.0
    %607 = vmatpush1.msra.mxu0 0.0
    %608 = vmatprep.subr.mxu0 0.0
    %609 = vmatpush1.msra.mxu0 0.0
    %610 = vmatprep.subr.mxu0 0.0
    %611 = vmatpush1.msra.mxu0 0.0
    %612 = vmatprep.subr.mxu0 0.0
    %613 = vmatpush1.msra.mxu0 0.0
    %614 = vmatprep.subr.mxu0 0.0
    %615 = vmatpush1.msra.mxu0 0.0
    %616 = vmatprep.mubr.f32.mxu0 0.0
    %617 = vmatmul.mubr.f32.gmra.mrb[0].mxu0 %v547
    %v618 = vpop.f32.mrb[0].mxu0
    %v619 = vadd.f32 %v538, %v618
    %v620 = vpop.f32.mrb[0].mxu0
    %621 = vmatprep.mubr.f32.mxu0 0.0
    %622 = vmatmul.mubr.f32.gmra.mrb[0].mxu0 %v550
    %v623 = vpop.f32.mrb[0].mxu0
    %v624 = vadd.f32 %v543, %v623
    %v625 = vpop.f32.mrb[0].mxu0
    %626 = vdwg.mxu0
    %s627 = scalar_lea.vmem [#allocation2], 42
    %v628 = vld [vmem:[%s627] ss:$2 sm:$0xff]
    %s629 = scalar_lea.vmem [#allocation2], 58
    %v630 = vld [vmem:[%s629] ss:$2 sm:$0xff]
    %v631 = vld [vmem:[%s341] sm:$0xff]
    %v632 = vld [vmem:[%s341 + $0x8] sm:$0xff]
    %v633 = vld [vmem:[%s341 + $0x10] sm:$0xff]
    %v634 = vld [vmem:[%s341 + $0x18] sm:$0xff]
    %v636 = vsel %vm86, %v628, 0
    %v639 = vsel %vm86, %v630, 0
    %641 = vmatprep.subr.mxu0 0.0
    %642 = vmatpush1.msra.mxu0 %v631
    %643 = vmatprep.subr.mxu0 0.0
    %644 = vmatpush1.msra.mxu0 %v632
    %645 = vmatprep.subr.mxu0 0.0
    %646 = vmatpush1.msra.mxu0 %v633
    %647 = vmatprep.subr.mxu0 0.0
    %648 = vmatpush1.msra.mxu0 %v634
    %649 = vmatprep.subr.mxu0 0.0
    %650 = vmatpush1.msra.mxu0 0.0
    %651 = vmatprep.subr.mxu0 0.0
    %652 = vmatpush1.msra.mxu0 0.0
    %653 = vmatprep.subr.mxu0 0.0
    %654 = vmatpush1.msra.mxu0 0.0
    %655 = vmatprep.subr.mxu0 0.0
    %656 = vmatpush1.msra.mxu0 0.0
    %657 = vmatprep.subr.mxu0 0.0
    %658 = vmatpush1.msra.mxu0 0.0
    %659 = vmatprep.subr.mxu0 0.0
    %660 = vmatpush1.msra.mxu0 0.0
    %661 = vmatprep.subr.mxu0 0.0
    %662 = vmatpush1.msra.mxu0 0.0
    %663 = vmatprep.subr.mxu0 0.0
    %664 = vmatpush1.msra.mxu0 0.0
    %665 = vmatprep.subr.mxu0 0.0
    %666 = vmatpush1.msra.mxu0 0.0
    %667 = vmatprep.subr.mxu0 0.0
    %668 = vmatpush1.msra.mxu0 0.0
    %669 = vmatprep.subr.mxu0 0.0
    %670 = vmatpush1.msra.mxu0 0.0
    %671 = vmatprep.subr.mxu0 0.0
    %672 = vmatpush1.msra.mxu0 0.0
    %673 = vmatprep.subr.mxu0 0.0
    %674 = vmatpush1.msra.mxu0 0.0
    %675 = vmatprep.subr.mxu0 0.0
    %676 = vmatpush1.msra.mxu0 0.0
    %677 = vmatprep.subr.mxu0 0.0
    %678 = vmatpush1.msra.mxu0 0.0
    %679 = vmatprep.subr.mxu0 0.0
    %680 = vmatpush1.msra.mxu0 0.0
    %681 = vmatprep.subr.mxu0 0.0
    %682 = vmatpush1.msra.mxu0 0.0
    %683 = vmatprep.subr.mxu0 0.0
    %684 = vmatpush1.msra.mxu0 0.0
    %685 = vmatprep.subr.mxu0 0.0
    %686 = vmatpush1.msra.mxu0 0.0
    %687 = vmatprep.subr.mxu0 0.0
    %688 = vmatpush1.msra.mxu0 0.0
    %689 = vmatprep.subr.mxu0 0.0
    %690 = vmatpush1.msra.mxu0 0.0
    %691 = vmatprep.subr.mxu0 0.0
    %692 = vmatpush1.msra.mxu0 0.0
    %693 = vmatprep.subr.mxu0 0.0
    %694 = vmatpush1.msra.mxu0 0.0
    %695 = vmatprep.subr.mxu0 0.0
    %696 = vmatpush1.msra.mxu0 0.0
    %697 = vmatprep.subr.mxu0 0.0
    %698 = vmatpush1.msra.mxu0 0.0
    %699 = vmatprep.subr.mxu0 0.0
    %700 = vmatpush1.msra.mxu0 0.0
    %701 = vmatprep.subr.mxu0 0.0
    %702 = vmatpush1.msra.mxu0 0.0
    %703 = vmatprep.subr.mxu0 0.0
    %704 = vmatpush1.msra.mxu0 0.0
    %705 = vmatprep.mubr.f32.mxu0 0.0
    %706 = vmatmul.mubr.f32.gmra.mrb[0].mxu0 %v636
    %v707 = vpop.f32.mrb[0].mxu0
    %v708 = vadd.f32 0.0, %v707
    %v709 = vpop.f32.mrb[0].mxu0
    %710 = vmatprep.mubr.f32.mxu0 0.0
    %711 = vmatmul.mubr.f32.gmra.mrb[0].mxu0 %v639
    %v712 = vpop.f32.mrb[0].mxu0
    %v713 = vadd.f32 0.0, %v712
    %v714 = vpop.f32.mrb[0].mxu0
    %715 = vdwg.mxu0
    %v716 = vadd.f32 %v619, %v708
    %v717 = vadd.f32 %v624, %v713
    %v718 = vadd.f32 %v716, %v433
    %v719 = vadd.f32 %v717, %v433
    %v720 = vmul.f32 %v718, 0.5
    %v721 = vmul.f32 %v719, 0.5
    %v722 = vmul.f32 %v718, 0.70710677
    %v723 = vmul.f32 %v719, 0.70710677
    %v724 = verf.f32.pop %v722
    %v725 = verf.f32.pop %v723
    %v726 = vadd.f32 %v724, 1.0
    %v727 = vadd.f32 %v725, 1.0
    %v728 = vmul.f32 %v720, %v726
    %v729 = vmul.f32 %v721, %v727
    %730 = vst [vmem:[#allocation3 + $0x19] sm:$0xff] %v728
    %731 = vst [vmem:[#allocation3 + $0x21] sm:$0xff] %v729
    %v732 = vld [vmem:[%s4] sm:$0x1]
    %v733 = vld [vmem:[#allocation3] sm:$0xff]
    %v734 = vld [vmem:[#allocation3 + $0x8] sm:$0xff]
    %v735 = vld [vmem:[%s3] sm:$0xff]
    %v736 = vld [vmem:[%s3 + $0x8] sm:$0xff]
    %v737 = vld [vmem:[%s3 + $0x10] sm:$0xff]
    %v738 = vld [vmem:[%s3 + $0x18] sm:$0xff]
    %v739 = vld [vmem:[%s3 + $0x20] sm:$0xff]
    %v740 = vld [vmem:[%s3 + $0x28] sm:$0xff]
    %v741 = vld [vmem:[%s3 + $0x30] sm:$0xff]
    %v742 = vld [vmem:[%s3 + $0x38] sm:$0xff]
    %v743 = vld [vmem:[%s3 + $0x40] sm:$0xff]
    %v744 = vld [vmem:[%s3 + $0x48] sm:$0xff]
    %v745 = vld [vmem:[%s3 + $0x50] sm:$0xff]
    %v746 = vld [vmem:[%s3 + $0x58] sm:$0xff]
    %v747 = vld [vmem:[%s3 + $0x60] sm:$0xff]
    %v748 = vld [vmem:[%s3 + $0x68] sm:$0xff]
    %v749 = vld [vmem:[%s3 + $0x70] sm:$0xff]
    %v750 = vld [vmem:[%s3 + $0x78] sm:$0xff]
    %v751 = vld [vmem:[#allocation3 + $0x1] sm:$0xff]
    %v752 = vld [vmem:[#allocation3 + $0x9] sm:$0xff]
    %s753 = scalar_lea.vmem %s3, 128
    %v754 = vld [vmem:[%s753] sm:$0xff]
    %v755 = vld [vmem:[%s753 + $0x8] sm:$0xff]
    %v756 = vld [vmem:[%s753 + $0x10] sm:$0xff]
    %v757 = vld [vmem:[%s753 + $0x18] sm:$0xff]
    %v758 = vld [vmem:[%s753 + $0x20] sm:$0xff]
    %v759 = vld [vmem:[%s753 + $0x28] sm:$0xff]
    %v760 = vld [vmem:[%s753 + $0x30] sm:$0xff]
    %v761 = vld [vmem:[%s753 + $0x38] sm:$0xff]
    %v762 = vld [vmem:[%s753 + $0x40] sm:$0xff]
    %v763 = vld [vmem:[%s753 + $0x48] sm:$0xff]
    %v764 = vld [vmem:[%s753 + $0x50] sm:$0xff]
    %v765 = vld [vmem:[%s753 + $0x58] sm:$0xff]
    %v766 = vld [vmem:[%s753 + $0x60] sm:$0xff]
    %v767 = vld [vmem:[%s753 + $0x68] sm:$0xff]
    %v768 = vld [vmem:[%s753 + $0x70] sm:$0xff]
    %v769 = vld [vmem:[%s753 + $0x78] sm:$0xff]
    %770 = vmatprep.subr.mxu0 0.0
    %771 = vmatpush1.msra.mxu0 %v754
    %772 = vmatprep.subr.mxu0 0.0
    %773 = vmatpush1.msra.mxu0 %v755
    %774 = vmatprep.subr.mxu0 0.0
    %775 = vmatpush1.msra.mxu0 %v756
    %776 = vmatprep.subr.mxu0 0.0
    %777 = vmatpush1.msra.mxu0 %v757
    %778 = vmatprep.subr.mxu0 0.0
    %779 = vmatpush1.msra.mxu0 %v758
    %780 = vmatprep.subr.mxu0 0.0
    %781 = vmatpush1.msra.mxu0 %v759
    %782 = vmatprep.subr.mxu0 0.0
    %783 = vmatpush1.msra.mxu0 %v760
    %784 = vmatprep.subr.mxu0 0.0
    %785 = vmatpush1.msra.mxu0 %v761
    %786 = vmatprep.subr.mxu0 0.0
    %787 = vmatpush1.msra.mxu0 %v762
    %788 = vmatprep.subr.mxu0 0.0
    %789 = vmatpush1.msra.mxu0 %v763
    %790 = vmatprep.subr.mxu0 0.0
    %791 = vmatpush1.msra.mxu0 %v764
    %792 = vmatprep.subr.mxu0 0.0
    %793 = vmatpush1.msra.mxu0 %v765
    %794 = vmatprep.subr.mxu0 0.0
    %795 = vmatpush1.msra.mxu0 %v766
    %796 = vmatprep.subr.mxu0 0.0
    %797 = vmatpush1.msra.mxu0 %v767
    %798 = vmatprep.subr.mxu0 0.0
    %799 = vmatpush1.msra.mxu0 %v768
    %800 = vmatprep.subr.mxu0 0.0
    %801 = vmatpush1.msra.mxu0 %v769
    %802 = vmatprep.subr.mxu0 0.0
    %803 = vmatpush1.msra.mxu0 0.0
    %804 = vmatprep.subr.mxu0 0.0
    %805 = vmatpush1.msra.mxu0 0.0
    %806 = vmatprep.subr.mxu0 0.0
    %807 = vmatpush1.msra.mxu0 0.0
    %808 = vmatprep.subr.mxu0 0.0
    %809 = vmatpush1.msra.mxu0 0.0
    %810 = vmatprep.subr.mxu0 0.0
    %811 = vmatpush1.msra.mxu0 0.0
    %812 = vmatprep.subr.mxu0 0.0
    %813 = vmatpush1.msra.mxu0 0.0
    %814 = vmatprep.subr.mxu0 0.0
    %815 = vmatpush1.msra.mxu0 0.0
    %816 = vmatprep.subr.mxu0 0.0
    %817 = vmatpush1.msra.mxu0 0.0
    %818 = vmatprep.subr.mxu0 0.0
    %819 = vmatpush1.msra.mxu0 0.0
    %820 = vmatprep.subr.mxu0 0.0
    %821 = vmatpush1.msra.mxu0 0.0
    %822 = vmatprep.subr.mxu0 0.0
    %823 = vmatpush1.msra.mxu0 0.0
    %824 = vmatprep.subr.mxu0 0.0
    %825 = vmatpush1.msra.mxu0 0.0
    %826 = vmatprep.subr.mxu0 0.0
    %827 = vmatpush1.msra.mxu0 0.0
    %828 = vmatprep.subr.mxu0 0.0
    %829 = vmatpush1.msra.mxu0 0.0
    %830 = vmatprep.subr.mxu0 0.0
    %831 = vmatpush1.msra.mxu0 0.0
    %832 = vmatprep.subr.mxu0 0.0
    %833 = vmatpush1.msra.mxu0 0.0
    %834 = vmatprep.mubr.f32.mxu0 0.0
    %835 = vmatmul.mubr.f32.gmra.mrb[0].mxu0 %v751
    %v836 = vpop.f32.mrb[0].mxu0
    %v837 = vadd.f32 0.0, %v836
    %v838 = vpop.f32.mrb[0].mxu0
    %839 = vmatprep.mubr.f32.mxu0 0.0
    %840 = vmatmul.mubr.f32.gmra.mrb[0].mxu0 %v752
    %v841 = vpop.f32.mrb[0].mxu0
    %v842 = vadd.f32 0.0, %v841
    %v843 = vpop.f32.mrb[0].mxu0
    %844 = vdwg.mxu0
    %845 = vmatprep.subr.mxu0 0.0
    %846 = vmatpush1.msra.mxu0 %v735
    %847 = vmatprep.subr.mxu0 0.0
    %848 = vmatpush1.msra.mxu0 %v736
    %849 = vmatprep.subr.mxu0 0.0
    %850 = vmatpush1.msra.mxu0 %v737
    %851 = vmatprep.subr.mxu0 0.0
    %852 = vmatpush1.msra.mxu0 %v738
    %853 = vmatprep.subr.mxu0 0.0
    %854 = vmatpush1.msra.mxu0 %v739
    %855 = vmatprep.subr.mxu0 0.0
    %856 = vmatpush1.msra.mxu0 %v740
    %857 = vmatprep.subr.mxu0 0.0
    %858 = vmatpush1.msra.mxu0 %v741
    %859 = vmatprep.subr.mxu0 0.0
    %860 = vmatpush1.msra.mxu0 %v742
    %861 = vmatprep.subr.mxu0 0.0
    %862 = vmatpush1.msra.mxu0 %v743
    %863 = vmatprep.subr.mxu0 0.0
    %864 = vmatpush1.msra.mxu0 %v744
    %865 = vmatprep.subr.mxu0 0.0
    %866 = vmatpush1.msra.mxu0 %v745
    %867 = vmatprep.subr.mxu0 0.0
    %868 = vmatpush1.msra.mxu0 %v746
    %869 = vmatprep.subr.mxu0 0.0
    %870 = vmatpush1.msra.mxu0 %v747
    %871 = vmatprep.subr.mxu0 0.0
    %872 = vmatpush1.msra.mxu0 %v748
    %873 = vmatprep.subr.mxu0 0.0
    %874 = vmatpush1.msra.mxu0 %v749
    %875 = vmatprep.subr.mxu0 0.0
    %876 = vmatpush1.msra.mxu0 %v750
    %877 = vmatprep.subr.mxu0 0.0
    %878 = vmatpush1.msra.mxu0 0.0
    %879 = vmatprep.subr.mxu0 0.0
    %880 = vmatpush1.msra.mxu0 0.0
    %881 = vmatprep.subr.mxu0 0.0
    %882 = vmatpush1.msra.mxu0 0.0
    %883 = vmatprep.subr.mxu0 0.0
    %884 = vmatpush1.msra.mxu0 0.0
    %885 = vmatprep.subr.mxu0 0.0
    %886 = vmatpush1.msra.mxu0 0.0
    %887 = vmatprep.subr.mxu0 0.0
    %888 = vmatpush1.msra.mxu0 0.0
    %889 = vmatprep.subr.mxu0 0.0
    %890 = vmatpush1.msra.mxu0 0.0
    %891 = vmatprep.subr.mxu0 0.0
    %892 = vmatpush1.msra.mxu0 0.0
    %893 = vmatprep.subr.mxu0 0.0
    %894 = vmatpush1.msra.mxu0 0.0
    %895 = vmatprep.subr.mxu0 0.0
    %896 = vmatpush1.msra.mxu0 0.0
    %897 = vmatprep.subr.mxu0 0.0
    %898 = vmatpush1.msra.mxu0 0.0
    %899 = vmatprep.subr.mxu0 0.0
    %900 = vmatpush1.msra.mxu0 0.0
    %901 = vmatprep.subr.mxu0 0.0
    %902 = vmatpush1.msra.mxu0 0.0
    %903 = vmatprep.subr.mxu0 0.0
    %904 = vmatpush1.msra.mxu0 0.0
    %905 = vmatprep.subr.mxu0 0.0
    %906 = vmatpush1.msra.mxu0 0.0
    %907 = vmatprep.subr.mxu0 0.0
    %908 = vmatpush1.msra.mxu0 0.0
    %909 = vmatprep.mubr.f32.mxu0 0.0
    %910 = vmatmul.mubr.f32.gmra.mrb[0].mxu0 %v733
    %v911 = vpop.f32.mrb[0].mxu0
    %v912 = vadd.f32 %v837, %v911
    %v913 = vpop.f32.mrb[0].mxu0
    %914 = vmatprep.mubr.f32.mxu0 0.0
    %915 = vmatmul.mubr.f32.gmra.mrb[0].mxu0 %v734
    %v916 = vpop.f32.mrb[0].mxu0
    %v917 = vadd.f32 %v842, %v916
    %v918 = vpop.f32.mrb[0].mxu0
    %919 = vdwg.mxu0
    %v920 = vld [vmem:[#allocation3 + $0x2] sm:$0xff]
    %v921 = vld [vmem:[#allocation3 + $0xa] sm:$0xff]
    %s922 = scalar_lea.vmem %s3, 256
    %v923 = vld [vmem:[%s922] sm:$0xff]
    %v924 = vld [vmem:[%s922 + $0x8] sm:$0xff]
    %v925 = vld [vmem:[%s922 + $0x10] sm:$0xff]
    %v926 = vld [vmem:[%s922 + $0x18] sm:$0xff]
    %v927 = vld [vmem:[%s922 + $0x20] sm:$0xff]
    %v928 = vld [vmem:[%s922 + $0x28] sm:$0xff]
    %v929 = vld [vmem:[%s922 + $0x30] sm:$0xff]
    %v930 = vld [vmem:[%s922 + $0x38] sm:$0xff]
    %v931 = vld [vmem:[%s922 + $0x40] sm:$0xff]
    %v932 = vld [vmem:[%s922 + $0x48] sm:$0xff]
    %v933 = vld [vmem:[%s922 + $0x50] sm:$0xff]
    %v934 = vld [vmem:[%s922 + $0x58] sm:$0xff]
    %v935 = vld [vmem:[%s922 + $0x60] sm:$0xff]
    %v936 = vld [vmem:[%s922 + $0x68] sm:$0xff]
    %v937 = vld [vmem:[%s922 + $0x70] sm:$0xff]
    %v938 = vld [vmem:[%s922 + $0x78] sm:$0xff]
    %939 = vmatprep.subr.mxu0 0.0
    %940 = vmatpush1.msra.mxu0 %v923
    %941 = vmatprep.subr.mxu0 0.0
    %942 = vmatpush1.msra.mxu0 %v924
    %943 = vmatprep.subr.mxu0 0.0
    %944 = vmatpush1.msra.mxu0 %v925
    %945 = vmatprep.subr.mxu0 0.0
    %946 = vmatpush1.msra.mxu0 %v926
    %947 = vmatprep.subr.mxu0 0.0
    %948 = vmatpush1.msra.mxu0 %v927
    %949 = vmatprep.subr.mxu0 0.0
    %950 = vmatpush1.msra.mxu0 %v928
    %951 = vmatprep.subr.mxu0 0.0
    %952 = vmatpush1.msra.mxu0 %v929
    %953 = vmatprep.subr.mxu0 0.0
    %954 = vmatpush1.msra.mxu0 %v930
    %955 = vmatprep.subr.mxu0 0.0
    %956 = vmatpush1.msra.mxu0 %v931
    %957 = vmatprep.subr.mxu0 0.0
    %958 = vmatpush1.msra.mxu0 %v932
    %959 = vmatprep.subr.mxu0 0.0
    %960 = vmatpush1.msra.mxu0 %v933
    %961 = vmatprep.subr.mxu0 0.0
    %962 = vmatpush1.msra.mxu0 %v934
    %963 = vmatprep.subr.mxu0 0.0
    %964 = vmatpush1.msra.mxu0 %v935
    %965 = vmatprep.subr.mxu0 0.0
    %966 = vmatpush1.msra.mxu0 %v936
    %967 = vmatprep.subr.mxu0 0.0
    %968 = vmatpush1.msra.mxu0 %v937
    %969 = vmatprep.subr.mxu0 0.0
    %970 = vmatpush1.msra.mxu0 %v938
    %971 = vmatprep.subr.mxu0 0.0
    %972 = vmatpush1.msra.mxu0 0.0
    %973 = vmatprep.subr.mxu0 0.0
    %974 = vmatpush1.msra.mxu0 0.0
    %975 = vmatprep.subr.mxu0 0.0
    %976 = vmatpush1.msra.mxu0 0.0
    %977 = vmatprep.subr.mxu0 0.0
    %978 = vmatpush1.msra.mxu0 0.0
    %979 = vmatprep.subr.mxu0 0.0
    %980 = vmatpush1.msra.mxu0 0.0
    %981 = vmatprep.subr.mxu0 0.0
    %982 = vmatpush1.msra.mxu0 0.0
    %983 = vmatprep.subr.mxu0 0.0
    %984 = vmatpush1.msra.mxu0 0.0
    %985 = vmatprep.subr.mxu0 0.0
    %986 = vmatpush1.msra.mxu0 0.0
    %987 = vmatprep.subr.mxu0 0.0
    %988 = vmatpush1.msra.mxu0 0.0
    %989 = vmatprep.subr.mxu0 0.0
    %990 = vmatpush1.msra.mxu0 0.0
    %991 = vmatprep.subr.mxu0 0.0
    %992 = vmatpush1.msra.mxu0 0.0
    %993 = vmatprep.subr.mxu0 0.0
    %994 = vmatpush1.msra.mxu0 0.0
    %995 = vmatprep.subr.mxu0 0.0
    %996 = vmatpush1.msra.mxu0 0.0
    %997 = vmatprep.subr.mxu0 0.0
    %998 = vmatpush1.msra.mxu0 0.0
    %999 = vmatprep.subr.mxu0 0.0
    %1000 = vmatpush1.msra.mxu0 0.0
    %1001 = vmatprep.subr.mxu0 0.0
    %1002 = vmatpush1.msra.mxu0 0.0
    %1003 = vmatprep.mubr.f32.mxu0 0.0
    %1004 = vmatmul.mubr.f32.gmra.mrb[0].mxu0 %v920
    %v1005 = vpop.f32.mrb[0].mxu0
    %v1006 = vadd.f32 0.0, %v1005
    %v1007 = vpop.f32.mrb[0].mxu0
    %1008 = vmatprep.mubr.f32.mxu0 0.0
    %1009 = vmatmul.mubr.f32.gmra.mrb[0].mxu0 %v921
    %v1010 = vpop.f32.mrb[0].mxu0
    %v1011 = vadd.f32 0.0, %v1010
    %v1012 = vpop.f32.mrb[0].mxu0
    %1013 = vdwg.mxu0
    %v1014 = vadd.f32 %v912, %v1006
    %v1015 = vadd.f32 %v917, %v1011
    %v1017 = vlaneseq
    %v1018 = vshrl.u32 %v1017, 7
    %v1019 = vsub.s32 0, %v1018
    %v1020 = vrot.slane %v732, %v1019
    %v1022 = vadd.f32 %v1014, %v1020
    %v1023 = vadd.f32 %v1015, %v1020
    %v1024 = vmul.f32 %v1022, 0.5
    %v1025 = vmul.f32 %v1023, 0.5
    %v1026 = vmul.f32 %v1022, 0.70710677
    %v1027 = vmul.f32 %v1023, 0.70710677
    %v1028 = verf.f32.pop %v1026
    %v1029 = verf.f32.pop %v1027
    %v1030 = vadd.f32 %v1028, 1.0
    %v1031 = vadd.f32 %v1029, 1.0
    %v1032 = vmul.f32 %v1024, %v1030
    %v1033 = vmul.f32 %v1025, %v1031
    %1034 = vst [vmem:[#allocation4 + $0x1] sm:$0xff] %v1032
    %1035 = vst [vmem:[#allocation4 + $0x9] sm:$0xff] %v1033
    %v1036 = vld [vmem:[#allocation3 + $0x18] sm:$0xff]
    %v1037 = vld [vmem:[#allocation3 + $0x20] sm:$0xff]
    %v1038 = vld [vmem:[%s3] sm:$0xff]
    %v1039 = vld [vmem:[%s3 + $0x8] sm:$0xff]
    %v1040 = vld [vmem:[%s3 + $0x10] sm:$0xff]
    %v1041 = vld [vmem:[%s3 + $0x18] sm:$0xff]
    %v1042 = vld [vmem:[%s3 + $0x20] sm:$0xff]
    %v1043 = vld [vmem:[%s3 + $0x28] sm:$0xff]
    %v1044 = vld [vmem:[%s3 + $0x30] sm:$0xff]
    %v1045 = vld [vmem:[%s3 + $0x38] sm:$0xff]
    %v1046 = vld [vmem:[%s3 + $0x40] sm:$0xff]
    %v1047 = vld [vmem:[%s3 + $0x48] sm:$0xff]
    %v1048 = vld [vmem:[%s3 + $0x50] sm:$0xff]
    %v1049 = vld [vmem:[%s3 + $0x58] sm:$0xff]
    %v1050 = vld [vmem:[%s3 + $0x60] sm:$0xff]
    %v1051 = vld [vmem:[%s3 + $0x68] sm:$0xff]
    %v1052 = vld [vmem:[%s3 + $0x70] sm:$0xff]
    %v1053 = vld [vmem:[%s3 + $0x78] sm:$0xff]
    %v1054 = vld [vmem:[#allocation3 + $0x19] sm:$0xff]
    %v1055 = vld [vmem:[#allocation3 + $0x21] sm:$0xff]
    %v1056 = vld [vmem:[%s753] sm:$0xff]
    %v1057 = vld [vmem:[%s753 + $0x8] sm:$0xff]
    %v1058 = vld [vmem:[%s753 + $0x10] sm:$0xff]
    %v1059 = vld [vmem:[%s753 + $0x18] sm:$0xff]
    %v1060 = vld [vmem:[%s753 + $0x20] sm:$0xff]
    %v1061 = vld [vmem:[%s753 + $0x28] sm:$0xff]
    %v1062 = vld [vmem:[%s753 + $0x30] sm:$0xff]
    %v1063 = vld [vmem:[%s753 + $0x38] sm:$0xff]
    %v1064 = vld [vmem:[%s753 + $0x40] sm:$0xff]
    %v1065 = vld [vmem:[%s753 + $0x48] sm:$0xff]
    %v1066 = vld [vmem:[%s753 + $0x50] sm:$0xff]
    %v1067 = vld [vmem:[%s753 + $0x58] sm:$0xff]
    %v1068 = vld [vmem:[%s753 + $0x60] sm:$0xff]
    %v1069 = vld [vmem:[%s753 + $0x68] sm:$0xff]
    %v1070 = vld [vmem:[%s753 + $0x70] sm:$0xff]
    %v1071 = vld [vmem:[%s753 + $0x78] sm:$0xff]
    %1072 = vmatprep.subr.mxu0 0.0
    %1073 = vmatpush1.msra.mxu0 %v1056
    %1074 = vmatprep.subr.mxu0 0.0
    %1075 = vmatpush1.msra.mxu0 %v1057
    %1076 = vmatprep.subr.mxu0 0.0
    %1077 = vmatpush1.msra.mxu0 %v1058
    %1078 = vmatprep.subr.mxu0 0.0
    %1079 = vmatpush1.msra.mxu0 %v1059
    %1080 = vmatprep.subr.mxu0 0.0
    %1081 = vmatpush1.msra.mxu0 %v1060
    %1082 = vmatprep.subr.mxu0 0.0
    %1083 = vmatpush1.msra.mxu0 %v1061
    %1084 = vmatprep.subr.mxu0 0.0
    %1085 = vmatpush1.msra.mxu0 %v1062
    %1086 = vmatprep.subr.mxu0 0.0
    %1087 = vmatpush1.msra.mxu0 %v1063
    %1088 = vmatprep.subr.mxu0 0.0
    %1089 = vmatpush1.msra.mxu0 %v1064
    %1090 = vmatprep.subr.mxu0 0.0
    %1091 = vmatpush1.msra.mxu0 %v1065
    %1092 = vmatprep.subr.mxu0 0.0
    %1093 = vmatpush1.msra.mxu0 %v1066
    %1094 = vmatprep.subr.mxu0 0.0
    %1095 = vmatpush1.msra.mxu0 %v1067
    %1096 = vmatprep.subr.mxu0 0.0
    %1097 = vmatpush1.msra.mxu0 %v1068
    %1098 = vmatprep.subr.mxu0 0.0
    %1099 = vmatpush1.msra.mxu0 %v1069
    %1100 = vmatprep.subr.mxu0 0.0
    %1101 = vmatpush1.msra.mxu0 %v1070
    %1102 = vmatprep.subr.mxu0 0.0
    %1103 = vmatpush1.msra.mxu0 %v1071
    %1104 = vmatprep.subr.mxu0 0.0
    %1105 = vmatpush1.msra.mxu0 0.0
    %1106 = vmatprep.subr.mxu0 0.0
    %1107 = vmatpush1.msra.mxu0 0.0
    %1108 = vmatprep.subr.mxu0 0.0
    %1109 = vmatpush1.msra.mxu0 0.0
    %1110 = vmatprep.subr.mxu0 0.0
    %1111 = vmatpush1.msra.mxu0 0.0
    %1112 = vmatprep.subr.mxu0 0.0
    %1113 = vmatpush1.msra.mxu0 0.0
    %1114 = vmatprep.subr.mxu0 0.0
    %1115 = vmatpush1.msra.mxu0 0.0
    %1116 = vmatprep.subr.mxu0 0.0
    %1117 = vmatpush1.msra.mxu0 0.0
    %1118 = vmatprep.subr.mxu0 0.0
    %1119 = vmatpush1.msra.mxu0 0.0
    %1120 = vmatprep.subr.mxu0 0.0
    %1121 = vmatpush1.msra.mxu0 0.0
    %1122 = vmatprep.subr.mxu0 0.0
    %1123 = vmatpush1.msra.mxu0 0.0
    %1124 = vmatprep.subr.mxu0 0.0
    %1125 = vmatpush1.msra.mxu0 0.0
    %1126 = vmatprep.subr.mxu0 0.0
    %1127 = vmatpush1.msra.mxu0 0.0
    %1128 = vmatprep.subr.mxu0 0.0
    %1129 = vmatpush1.msra.mxu0 0.0
    %1130 = vmatprep.subr.mxu0 0.0
    %1131 = vmatpush1.msra.mxu0 0.0
    %1132 = vmatprep.subr.mxu0 0.0
    %1133 = vmatpush1.msra.mxu0 0.0
    %1134 = vmatprep.subr.mxu0 0.0
    %1135 = vmatpush1.msra.mxu0 0.0
    %1136 = vmatprep.mubr.f32.mxu0 0.0
    %1137 = vmatmul.mubr.f32.gmra.mrb[0].mxu0 %v1054
    %v1138 = vpop.f32.mrb[0].mxu0
    %v1139 = vadd.f32 0.0, %v1138
    %v1140 = vpop.f32.mrb[0].mxu0
    %1141 = vmatprep.mubr.f32.mxu0 0.0
    %1142 = vmatmul.mubr.f32.gmra.mrb[0].mxu0 %v1055
    %v1143 = vpop.f32.mrb[0].mxu0
    %v1144 = vadd.f32 0.0, %v1143
    %v1145 = vpop.f32.mrb[0].mxu0
    %1146 = vdwg.mxu0
    %1147 = vmatprep.subr.mxu0 0.0
    %1148 = vmatpush1.msra.mxu0 %v1038
    %1149 = vmatprep.subr.mxu0 0.0
    %1150 = vmatpush1.msra.mxu0 %v1039
    %1151 = vmatprep.subr.mxu0 0.0
    %1152 = vmatpush1.msra.mxu0 %v1040
    %1153 = vmatprep.subr.mxu0 0.0
    %1154 = vmatpush1.msra.mxu0 %v1041
    %1155 = vmatprep.subr.mxu0 0.0
    %1156 = vmatpush1.msra.mxu0 %v1042
    %1157 = vmatprep.subr.mxu0 0.0
    %1158 = vmatpush1.msra.mxu0 %v1043
    %1159 = vmatprep.subr.mxu0 0.0
    %1160 = vmatpush1.msra.mxu0 %v1044
    %1161 = vmatprep.subr.mxu0 0.0
    %1162 = vmatpush1.msra.mxu0 %v1045
    %1163 = vmatprep.subr.mxu0 0.0
    %1164 = vmatpush1.msra.mxu0 %v1046
    %1165 = vmatprep.subr.mxu0 0.0
    %1166 = vmatpush1.msra.mxu0 %v1047
    %1167 = vmatprep.subr.mxu0 0.0
    %1168 = vmatpush1.msra.mxu0 %v1048
    %1169 = vmatprep.subr.mxu0 0.0
    %1170 = vmatpush1.msra.mxu0 %v1049
    %1171 = vmatprep.subr.mxu0 0.0
    %1172 = vmatpush1.msra.mxu0 %v1050
    %1173 = vmatprep.subr.mxu0 0.0
    %1174 = vmatpush1.msra.mxu0 %v1051
    %1175 = vmatprep.subr.mxu0 0.0
    %1176 = vmatpush1.msra.mxu0 %v1052
    %1177 = vmatprep.subr.mxu0 0.0
    %1178 = vmatpush1.msra.mxu0 %v1053
    %1179 = vmatprep.subr.mxu0 0.0
    %1180 = vmatpush1.msra.mxu0 0.0
    %1181 = vmatprep.subr.mxu0 0.0
    %1182 = vmatpush1.msra.mxu0 0.0
    %1183 = vmatprep.subr.mxu0 0.0
    %1184 = vmatpush1.msra.mxu0 0.0
    %1185 = vmatprep.subr.mxu0 0.0
    %1186 = vmatpush1.msra.mxu0 0.0
    %1187 = vmatprep.subr.mxu0 0.0
    %1188 = vmatpush1.msra.mxu0 0.0
    %1189 = vmatprep.subr.mxu0 0.0
    %1190 = vmatpush1.msra.mxu0 0.0
    %1191 = vmatprep.subr.mxu0 0.0
    %1192 = vmatpush1.msra.mxu0 0.0
    %1193 = vmatprep.subr.mxu0 0.0
    %1194 = vmatpush1.msra.mxu0 0.0
    %1195 = vmatprep.subr.mxu0 0.0
    %1196 = vmatpush1.msra.mxu0 0.0
    %1197 = vmatprep.subr.mxu0 0.0
    %1198 = vmatpush1.msra.mxu0 0.0
    %1199 = vmatprep.subr.mxu0 0.0
    %1200 = vmatpush1.msra.mxu0 0.0
    %1201 = vmatprep.subr.mxu0 0.0
    %1202 = vmatpush1.msra.mxu0 0.0
    %1203 = vmatprep.subr.mxu0 0.0
    %1204 = vmatpush1.msra.mxu0 0.0
    %1205 = vmatprep.subr.mxu0 0.0
    %1206 = vmatpush1.msra.mxu0 0.0
    %1207 = vmatprep.subr.mxu0 0.0
    %1208 = vmatpush1.msra.mxu0 0.0
    %1209 = vmatprep.subr.mxu0 0.0
    %1210 = vmatpush1.msra.mxu0 0.0
    %1211 = vmatprep.mubr.f32.mxu0 0.0
    %1212 = vmatmul.mubr.f32.gmra.mrb[0].mxu0 %v1036
    %v1213 = vpop.f32.mrb[0].mxu0
    %v1214 = vadd.f32 %v1139, %v1213
    %v1215 = vpop.f32.mrb[0].mxu0
    %1216 = vmatprep.mubr.f32.mxu0 0.0
    %1217 = vmatmul.mubr.f32.gmra.mrb[0].mxu0 %v1037
    %v1218 = vpop.f32.mrb[0].mxu0
    %v1219 = vadd.f32 %v1144, %v1218
    %v1220 = vpop.f32.mrb[0].mxu0
    %1221 = vdwg.mxu0
    %v1222 = vld [vmem:[#allocation3 + $0x1a] sm:$0xff]
    %v1223 = vld [vmem:[#allocation3 + $0x22] sm:$0xff]
    %v1224 = vld [vmem:[%s922] sm:$0xff]
    %v1225 = vld [vmem:[%s922 + $0x8] sm:$0xff]
    %v1226 = vld [vmem:[%s922 + $0x10] sm:$0xff]
    %v1227 = vld [vmem:[%s922 + $0x18] sm:$0xff]
    %v1228 = vld [vmem:[%s922 + $0x20] sm:$0xff]
    %v1229 = vld [vmem:[%s922 + $0x28] sm:$0xff]
    %v1230 = vld [vmem:[%s922 + $0x30] sm:$0xff]
    %v1231 = vld [vmem:[%s922 + $0x38] sm:$0xff]
    %v1232 = vld [vmem:[%s922 + $0x40] sm:$0xff]
    %v1233 = vld [vmem:[%s922 + $0x48] sm:$0xff]
    %v1234 = vld [vmem:[%s922 + $0x50] sm:$0xff]
    %v1235 = vld [vmem:[%s922 + $0x58] sm:$0xff]
    %v1236 = vld [vmem:[%s922 + $0x60] sm:$0xff]
    %v1237 = vld [vmem:[%s922 + $0x68] sm:$0xff]
    %v1238 = vld [vmem:[%s922 + $0x70] sm:$0xff]
    %v1239 = vld [vmem:[%s922 + $0x78] sm:$0xff]
    %1240 = vmatprep.subr.mxu0 0.0
    %1241 = vmatpush1.msra.mxu0 %v1224
    %1242 = vmatprep.subr.mxu0 0.0
    %1243 = vmatpush1.msra.mxu0 %v1225
    %1244 = vmatprep.subr.mxu0 0.0
    %1245 = vmatpush1.msra.mxu0 %v1226
    %1246 = vmatprep.subr.mxu0 0.0
    %1247 = vmatpush1.msra.mxu0 %v1227
    %1248 = vmatprep.subr.mxu0 0.0
    %1249 = vmatpush1.msra.mxu0 %v1228
    %1250 = vmatprep.subr.mxu0 0.0
    %1251 = vmatpush1.msra.mxu0 %v1229
    %1252 = vmatprep.subr.mxu0 0.0
    %1253 = vmatpush1.msra.mxu0 %v1230
    %1254 = vmatprep.subr.mxu0 0.0
    %1255 = vmatpush1.msra.mxu0 %v1231
    %1256 = vmatprep.subr.mxu0 0.0
    %1257 = vmatpush1.msra.mxu0 %v1232
    %1258 = vmatprep.subr.mxu0 0.0
    %1259 = vmatpush1.msra.mxu0 %v1233
    %1260 = vmatprep.subr.mxu0 0.0
    %1261 = vmatpush1.msra.mxu0 %v1234
    %1262 = vmatprep.subr.mxu0 0.0
    %1263 = vmatpush1.msra.mxu0 %v1235
    %1264 = vmatprep.subr.mxu0 0.0
    %1265 = vmatpush1.msra.mxu0 %v1236
    %1266 = vmatprep.subr.mxu0 0.0
    %1267 = vmatpush1.msra.mxu0 %v1237
    %1268 = vmatprep.subr.mxu0 0.0
    %1269 = vmatpush1.msra.mxu0 %v1238
    %1270 = vmatprep.subr.mxu0 0.0
    %1271 = vmatpush1.msra.mxu0 %v1239
    %1272 = vmatprep.subr.mxu0 0.0
    %1273 = vmatpush1.msra.mxu0 0.0
    %1274 = vmatprep.subr.mxu0 0.0
    %1275 = vmatpush1.msra.mxu0 0.0
    %1276 = vmatprep.subr.mxu0 0.0
    %1277 = vmatpush1.msra.mxu0 0.0
    %1278 = vmatprep.subr.mxu0 0.0
    %1279 = vmatpush1.msra.mxu0 0.0
    %1280 = vmatprep.subr.mxu0 0.0
    %1281 = vmatpush1.msra.mxu0 0.0
    %1282 = vmatprep.subr.mxu0 0.0
    %1283 = vmatpush1.msra.mxu0 0.0
    %1284 = vmatprep.subr.mxu0 0.0
    %1285 = vmatpush1.msra.mxu0 0.0
    %1286 = vmatprep.subr.mxu0 0.0
    %1287 = vmatpush1.msra.mxu0 0.0
    %1288 = vmatprep.subr.mxu0 0.0
    %1289 = vmatpush1.msra.mxu0 0.0
    %1290 = vmatprep.subr.mxu0 0.0
    %1291 = vmatpush1.msra.mxu0 0.0
    %1292 = vmatprep.subr.mxu0 0.0
    %1293 = vmatpush1.msra.mxu0 0.0
    %1294 = vmatprep.subr.mxu0 0.0
    %1295 = vmatpush1.msra.mxu0 0.0
    %1296 = vmatprep.subr.mxu0 0.0
    %1297 = vmatpush1.msra.mxu0 0.0
    %1298 = vmatprep.subr.mxu0 0.0
    %1299 = vmatpush1.msra.mxu0 0.0
    %1300 = vmatprep.subr.mxu0 0.0
    %1301 = vmatpush1.msra.mxu0 0.0
    %1302 = vmatprep.subr.mxu0 0.0
    %1303 = vmatpush1.msra.mxu0 0.0
    %1304 = vmatprep.mubr.f32.mxu0 0.0
    %1305 = vmatmul.mubr.f32.gmra.mrb[0].mxu0 %v1222
    %v1306 = vpop.f32.mrb[0].mxu0
    %v1307 = vadd.f32 0.0, %v1306
    %v1308 = vpop.f32.mrb[0].mxu0
    %1309 = vmatprep.mubr.f32.mxu0 0.0
    %1310 = vmatmul.mubr.f32.gmra.mrb[0].mxu0 %v1223
    %v1311 = vpop.f32.mrb[0].mxu0
    %v1312 = vadd.f32 0.0, %v1311
    %v1313 = vpop.f32.mrb[0].mxu0
    %1314 = vdwg.mxu0
    %v1315 = vadd.f32 %v1214, %v1307
    %v1316 = vadd.f32 %v1219, %v1312
    %v1317 = vadd.f32 %v1315, %v1020
    %v1318 = vadd.f32 %v1316, %v1020
    %v1319 = vmul.f32 %v1317, 0.5
    %v1320 = vmul.f32 %v1318, 0.5
    %v1321 = vmul.f32 %v1317, 0.70710677
    %v1322 = vmul.f32 %v1318, 0.70710677
    %v1323 = verf.f32.pop %v1321
    %v1324 = verf.f32.pop %v1322
    %v1325 = vadd.f32 %v1323, 1.0
    %v1326 = vadd.f32 %v1324, 1.0
    %v1327 = vmul.f32 %v1319, %v1325
    %v1328 = vmul.f32 %v1320, %v1326
    %1329 = vst [vmem:[#allocation4 + $0x19] sm:$0xff] %v1327
    %1330 = vst [vmem:[#allocation4 + $0x21] sm:$0xff] %v1328
    %v1331 = vld [vmem:[%s6] sm:$0x1]
    %v1332 = vld [vmem:[#allocation4] ss:$2 sm:$0xff]
    %v1333 = vld [vmem:[%s5] sm:$0xff]
    %v1334 = vld [vmem:[%s5 + $0x8] sm:$0xff]
    %v1335 = vld [vmem:[%s5 + $0x10] sm:$0xff]
    %v1336 = vld [vmem:[%s5 + $0x18] sm:$0xff]
    %v1337 = vld [vmem:[%s5 + $0x20] sm:$0xff]
    %v1338 = vld [vmem:[%s5 + $0x28] sm:$0xff]
    %v1339 = vld [vmem:[%s5 + $0x30] sm:$0xff]
    %v1340 = vld [vmem:[%s5 + $0x38] sm:$0xff]
    %v1341 = vld [vmem:[%s5 + $0x40] sm:$0xff]
    %v1342 = vld [vmem:[%s5 + $0x48] sm:$0xff]
    %v1343 = vld [vmem:[%s5 + $0x50] sm:$0xff]
    %v1344 = vld [vmem:[%s5 + $0x58] sm:$0xff]
    %v1345 = vld [vmem:[%s5 + $0x60] sm:$0xff]
    %v1346 = vld [vmem:[%s5 + $0x68] sm:$0xff]
    %v1347 = vld [vmem:[%s5 + $0x70] sm:$0xff]
    %v1348 = vld [vmem:[%s5 + $0x78] sm:$0xff]
    %s1349 = scalar_lea.vmem [#allocation4], 1
    %v1350 = vld [vmem:[%s1349] ss:$2 sm:$0xff]
    %s1351 = scalar_lea.vmem %s5, 128
    %v1352 = vld [vmem:[%s1351] sm:$0xff]
    %v1353 = vld [vmem:[%s1351 + $0x8] sm:$0xff]
    %v1354 = vld [vmem:[%s1351 + $0x10] sm:$0xff]
    %v1355 = vld [vmem:[%s1351 + $0x18] sm:$0xff]
    %v1356 = vld [vmem:[%s1351 + $0x20] sm:$0xff]
    %v1357 = vld [vmem:[%s1351 + $0x28] sm:$0xff]
    %v1358 = vld [vmem:[%s1351 + $0x30] sm:$0xff]
    %v1359 = vld [vmem:[%s1351 + $0x38] sm:$0xff]
    %v1360 = vld [vmem:[%s1351 + $0x40] sm:$0xff]
    %v1361 = vld [vmem:[%s1351 + $0x48] sm:$0xff]
    %v1362 = vld [vmem:[%s1351 + $0x50] sm:$0xff]
    %v1363 = vld [vmem:[%s1351 + $0x58] sm:$0xff]
    %v1364 = vld [vmem:[%s1351 + $0x60] sm:$0xff]
    %v1365 = vld [vmem:[%s1351 + $0x68] sm:$0xff]
    %v1366 = vld [vmem:[%s1351 + $0x70] sm:$0xff]
    %v1367 = vld [vmem:[%s1351 + $0x78] sm:$0xff]
    %1368 = vmatprep.subr.mxu0 0.0
    %1369 = vmatpush1.msra.mxu0 %v1352
    %1370 = vmatprep.subr.mxu0 0.0
    %1371 = vmatpush1.msra.mxu0 %v1353
    %1372 = vmatprep.subr.mxu0 0.0
    %1373 = vmatpush1.msra.mxu0 %v1354
    %1374 = vmatprep.subr.mxu0 0.0
    %1375 = vmatpush1.msra.mxu0 %v1355
    %1376 = vmatprep.subr.mxu0 0.0
    %1377 = vmatpush1.msra.mxu0 %v1356
    %1378 = vmatprep.subr.mxu0 0.0
    %1379 = vmatpush1.msra.mxu0 %v1357
    %1380 = vmatprep.subr.mxu0 0.0
    %1381 = vmatpush1.msra.mxu0 %v1358
    %1382 = vmatprep.subr.mxu0 0.0
    %1383 = vmatpush1.msra.mxu0 %v1359
    %1384 = vmatprep.subr.mxu0 0.0
    %1385 = vmatpush1.msra.mxu0 %v1360
    %1386 = vmatprep.subr.mxu0 0.0
    %1387 = vmatpush1.msra.mxu0 %v1361
    %1388 = vmatprep.subr.mxu0 0.0
    %1389 = vmatpush1.msra.mxu0 %v1362
    %1390 = vmatprep.subr.mxu0 0.0
    %1391 = vmatpush1.msra.mxu0 %v1363
    %1392 = vmatprep.subr.mxu0 0.0
    %1393 = vmatpush1.msra.mxu0 %v1364
    %1394 = vmatprep.subr.mxu0 0.0
    %1395 = vmatpush1.msra.mxu0 %v1365
    %1396 = vmatprep.subr.mxu0 0.0
    %1397 = vmatpush1.msra.mxu0 %v1366
    %1398 = vmatprep.subr.mxu0 0.0
    %1399 = vmatpush1.msra.mxu0 %v1367
    %1400 = vmatprep.subr.mxu0 0.0
    %1401 = vmatpush1.msra.mxu0 0.0
    %1402 = vmatprep.subr.mxu0 0.0
    %1403 = vmatpush1.msra.mxu0 0.0
    %1404 = vmatprep.subr.mxu0 0.0
    %1405 = vmatpush1.msra.mxu0 0.0
    %1406 = vmatprep.subr.mxu0 0.0
    %1407 = vmatpush1.msra.mxu0 0.0
    %1408 = vmatprep.subr.mxu0 0.0
    %1409 = vmatpush1.msra.mxu0 0.0
    %1410 = vmatprep.subr.mxu0 0.0
    %1411 = vmatpush1.msra.mxu0 0.0
    %1412 = vmatprep.subr.mxu0 0.0
    %1413 = vmatpush1.msra.mxu0 0.0
    %1414 = vmatprep.subr.mxu0 0.0
    %1415 = vmatpush1.msra.mxu0 0.0
    %1416 = vmatprep.subr.mxu0 0.0
    %1417 = vmatpush1.msra.mxu0 0.0
    %1418 = vmatprep.subr.mxu0 0.0
    %1419 = vmatpush1.msra.mxu0 0.0
    %1420 = vmatprep.subr.mxu0 0.0
    %1421 = vmatpush1.msra.mxu0 0.0
    %1422 = vmatprep.subr.mxu0 0.0
    %1423 = vmatpush1.msra.mxu0 0.0
    %1424 = vmatprep.subr.mxu0 0.0
    %1425 = vmatpush1.msra.mxu0 0.0
    %1426 = vmatprep.subr.mxu0 0.0
    %1427 = vmatpush1.msra.mxu0 0.0
    %1428 = vmatprep.subr.mxu0 0.0
    %1429 = vmatpush1.msra.mxu0 0.0
    %1430 = vmatprep.subr.mxu0 0.0
    %1431 = vmatpush1.msra.mxu0 0.0
    %1432 = vmatprep.mubr.f32.mxu0 0.0
    %1433 = vmatmul.mubr.f32.gmra.mrb[0].mxu0 %v1350
    %v1434 = vpop.f32.mrb[0].mxu0
    %v1435 = vadd.f32 0.0, %v1434
    %v1436 = vpop.f32.mrb[0].mxu0
    %1437 = vdwg.mxu0
    %1438 = vmatprep.subr.mxu0 0.0
    %1439 = vmatpush1.msra.mxu0 %v1333
    %1440 = vmatprep.subr.mxu0 0.0
    %1441 = vmatpush1.msra.mxu0 %v1334
    %1442 = vmatprep.subr.mxu0 0.0
    %1443 = vmatpush1.msra.mxu0 %v1335
    %1444 = vmatprep.subr.mxu0 0.0
    %1445 = vmatpush1.msra.mxu0 %v1336
    %1446 = vmatprep.subr.mxu0 0.0
    %1447 = vmatpush1.msra.mxu0 %v1337
    %1448 = vmatprep.subr.mxu0 0.0
    %1449 = vmatpush1.msra.mxu0 %v1338
    %1450 = vmatprep.subr.mxu0 0.0
    %1451 = vmatpush1.msra.mxu0 %v1339
    %1452 = vmatprep.subr.mxu0 0.0
    %1453 = vmatpush1.msra.mxu0 %v1340
    %1454 = vmatprep.subr.mxu0 0.0
    %1455 = vmatpush1.msra.mxu0 %v1341
    %1456 = vmatprep.subr.mxu0 0.0
    %1457 = vmatpush1.msra.mxu0 %v1342
    %1458 = vmatprep.subr.mxu0 0.0
    %1459 = vmatpush1.msra.mxu0 %v1343
    %1460 = vmatprep.subr.mxu0 0.0
    %1461 = vmatpush1.msra.mxu0 %v1344
    %1462 = vmatprep.subr.mxu0 0.0
    %1463 = vmatpush1.msra.mxu0 %v1345
    %1464 = vmatprep.subr.mxu0 0.0
    %1465 = vmatpush1.msra.mxu0 %v1346
    %1466 = vmatprep.subr.mxu0 0.0
    %1467 = vmatpush1.msra.mxu0 %v1347
    %1468 = vmatprep.subr.mxu0 0.0
    %1469 = vmatpush1.msra.mxu0 %v1348
    %1470 = vmatprep.subr.mxu0 0.0
    %1471 = vmatpush1.msra.mxu0 0.0
    %1472 = vmatprep.subr.mxu0 0.0
    %1473 = vmatpush1.msra.mxu0 0.0
    %1474 = vmatprep.subr.mxu0 0.0
    %1475 = vmatpush1.msra.mxu0 0.0
    %1476 = vmatprep.subr.mxu0 0.0
    %1477 = vmatpush1.msra.mxu0 0.0
    %1478 = vmatprep.subr.mxu0 0.0
    %1479 = vmatpush1.msra.mxu0 0.0
    %1480 = vmatprep.subr.mxu0 0.0
    %1481 = vmatpush1.msra.mxu0 0.0
    %1482 = vmatprep.subr.mxu0 0.0
    %1483 = vmatpush1.msra.mxu0 0.0
    %1484 = vmatprep.subr.mxu0 0.0
    %1485 = vmatpush1.msra.mxu0 0.0
    %1486 = vmatprep.subr.mxu0 0.0
    %1487 = vmatpush1.msra.mxu0 0.0
    %1488 = vmatprep.subr.mxu0 0.0
    %1489 = vmatpush1.msra.mxu0 0.0
    %1490 = vmatprep.subr.mxu0 0.0
    %1491 = vmatpush1.msra.mxu0 0.0
    %1492 = vmatprep.subr.mxu0 0.0
    %1493 = vmatpush1.msra.mxu0 0.0
    %1494 = vmatprep.subr.mxu0 0.0
    %1495 = vmatpush1.msra.mxu0 0.0
    %1496 = vmatprep.subr.mxu0 0.0
    %1497 = vmatpush1.msra.mxu0 0.0
    %1498 = vmatprep.subr.mxu0 0.0
    %1499 = vmatpush1.msra.mxu0 0.0
    %1500 = vmatprep.subr.mxu0 0.0
    %1501 = vmatpush1.msra.mxu0 0.0
    %1502 = vmatprep.mubr.f32.mxu0 0.0
    %1503 = vmatmul.mubr.f32.gmra.mrb[0].mxu0 %v1332
    %v1504 = vpop.f32.mrb[0].mxu0
    %v1505 = vadd.f32 %v1435, %v1504
    %v1506 = vpop.f32.mrb[0].mxu0
    %1507 = vdwg.mxu0
    %s1508 = scalar_lea.vmem [#allocation4], 2
    %v1509 = vld [vmem:[%s1508] ss:$2 sm:$0xff]
    %s1510 = scalar_lea.vmem %s5, 256
    %v1511 = vld [vmem:[%s1510] sm:$0xff]
    %v1512 = vld [vmem:[%s1510 + $0x8] sm:$0xff]
    %v1513 = vld [vmem:[%s1510 + $0x10] sm:$0xff]
    %v1514 = vld [vmem:[%s1510 + $0x18] sm:$0xff]
    %v1515 = vld [vmem:[%s1510 + $0x20] sm:$0xff]
    %v1516 = vld [vmem:[%s1510 + $0x28] sm:$0xff]
    %v1517 = vld [vmem:[%s1510 + $0x30] sm:$0xff]
    %v1518 = vld [vmem:[%s1510 + $0x38] sm:$0xff]
    %v1519 = vld [vmem:[%s1510 + $0x40] sm:$0xff]
    %v1520 = vld [vmem:[%s1510 + $0x48] sm:$0xff]
    %v1521 = vld [vmem:[%s1510 + $0x50] sm:$0xff]
    %v1522 = vld [vmem:[%s1510 + $0x58] sm:$0xff]
    %v1523 = vld [vmem:[%s1510 + $0x60] sm:$0xff]
    %v1524 = vld [vmem:[%s1510 + $0x68] sm:$0xff]
    %v1525 = vld [vmem:[%s1510 + $0x70] sm:$0xff]
    %v1526 = vld [vmem:[%s1510 + $0x78] sm:$0xff]
    %1527 = vmatprep.subr.mxu0 0.0
    %1528 = vmatpush1.msra.mxu0 %v1511
    %1529 = vmatprep.subr.mxu0 0.0
    %1530 = vmatpush1.msra.mxu0 %v1512
    %1531 = vmatprep.subr.mxu0 0.0
    %1532 = vmatpush1.msra.mxu0 %v1513
    %1533 = vmatprep.subr.mxu0 0.0
    %1534 = vmatpush1.msra.mxu0 %v1514
    %1535 = vmatprep.subr.mxu0 0.0
    %1536 = vmatpush1.msra.mxu0 %v1515
    %1537 = vmatprep.subr.mxu0 0.0
    %1538 = vmatpush1.msra.mxu0 %v1516
    %1539 = vmatprep.subr.mxu0 0.0
    %1540 = vmatpush1.msra.mxu0 %v1517
    %1541 = vmatprep.subr.mxu0 0.0
    %1542 = vmatpush1.msra.mxu0 %v1518
    %1543 = vmatprep.subr.mxu0 0.0
    %1544 = vmatpush1.msra.mxu0 %v1519
    %1545 = vmatprep.subr.mxu0 0.0
    %1546 = vmatpush1.msra.mxu0 %v1520
    %1547 = vmatprep.subr.mxu0 0.0
    %1548 = vmatpush1.msra.mxu0 %v1521
    %1549 = vmatprep.subr.mxu0 0.0
    %1550 = vmatpush1.msra.mxu0 %v1522
    %1551 = vmatprep.subr.mxu0 0.0
    %1552 = vmatpush1.msra.mxu0 %v1523
    %1553 = vmatprep.subr.mxu0 0.0
    %1554 = vmatpush1.msra.mxu0 %v1524
    %1555 = vmatprep.subr.mxu0 0.0
    %1556 = vmatpush1.msra.mxu0 %v1525
    %1557 = vmatprep.subr.mxu0 0.0
    %1558 = vmatpush1.msra.mxu0 %v1526
    %1559 = vmatprep.subr.mxu0 0.0
    %1560 = vmatpush1.msra.mxu0 0.0
    %1561 = vmatprep.subr.mxu0 0.0
    %1562 = vmatpush1.msra.mxu0 0.0
    %1563 = vmatprep.subr.mxu0 0.0
    %1564 = vmatpush1.msra.mxu0 0.0
    %1565 = vmatprep.subr.mxu0 0.0
    %1566 = vmatpush1.msra.mxu0 0.0
    %1567 = vmatprep.subr.mxu0 0.0
    %1568 = vmatpush1.msra.mxu0 0.0
    %1569 = vmatprep.subr.mxu0 0.0
    %1570 = vmatpush1.msra.mxu0 0.0
    %1571 = vmatprep.subr.mxu0 0.0
    %1572 = vmatpush1.msra.mxu0 0.0
    %1573 = vmatprep.subr.mxu0 0.0
    %1574 = vmatpush1.msra.mxu0 0.0
    %1575 = vmatprep.subr.mxu0 0.0
    %1576 = vmatpush1.msra.mxu0 0.0
    %1577 = vmatprep.subr.mxu0 0.0
    %1578 = vmatpush1.msra.mxu0 0.0
    %1579 = vmatprep.subr.mxu0 0.0
    %1580 = vmatpush1.msra.mxu0 0.0
    %1581 = vmatprep.subr.mxu0 0.0
    %1582 = vmatpush1.msra.mxu0 0.0
    %1583 = vmatprep.subr.mxu0 0.0
    %1584 = vmatpush1.msra.mxu0 0.0
    %1585 = vmatprep.subr.mxu0 0.0
    %1586 = vmatpush1.msra.mxu0 0.0
    %1587 = vmatprep.subr.mxu0 0.0
    %1588 = vmatpush1.msra.mxu0 0.0
    %1589 = vmatprep.subr.mxu0 0.0
    %1590 = vmatpush1.msra.mxu0 0.0
    %1591 = vmatprep.mubr.f32.mxu0 0.0
    %1592 = vmatmul.mubr.f32.gmra.mrb[0].mxu0 %v1509
    %v1593 = vpop.f32.mrb[0].mxu0
    %v1594 = vadd.f32 0.0, %v1593
    %v1595 = vpop.f32.mrb[0].mxu0
    %1596 = vdwg.mxu0
    %v1597 = vadd.f32 %v1505, %v1594
    %v1599 = vlaneseq
    %v1600 = vshrl.u32 %v1599, 7
    %v1601 = vsub.s32 0, %v1600
    %v1602 = vrot.slane %v1331, %v1601
    %v1604 = vadd.f32 %v1597, %v1602
    %v1605 = vmul.f32 %v1604, 0.5
    %v1606 = vmul.f32 %v1604, 0.70710677
    %v1607 = verf.f32.pop %v1606
    %v1608 = vadd.f32 %v1607, 1.0
    %v1609 = vmul.f32 %v1605, %v1608
    %1610 = vst [vmem:[#allocation5 + $0x1] sm:$0xff] %v1609
    %s1611 = scalar_lea.vmem [#allocation4], 24
    %v1612 = vld [vmem:[%s1611] ss:$2 sm:$0xff]
    %v1613 = vld [vmem:[%s5] sm:$0xff]
    %v1614 = vld [vmem:[%s5 + $0x8] sm:$0xff]
    %v1615 = vld [vmem:[%s5 + $0x10] sm:$0xff]
    %v1616 = vld [vmem:[%s5 + $0x18] sm:$0xff]
    %v1617 = vld [vmem:[%s5 + $0x20] sm:$0xff]
    %v1618 = vld [vmem:[%s5 + $0x28] sm:$0xff]
    %v1619 = vld [vmem:[%s5 + $0x30] sm:$0xff]
    %v1620 = vld [vmem:[%s5 + $0x38] sm:$0xff]
    %v1621 = vld [vmem:[%s5 + $0x40] sm:$0xff]
    %v1622 = vld [vmem:[%s5 + $0x48] sm:$0xff]
    %v1623 = vld [vmem:[%s5 + $0x50] sm:$0xff]
    %v1624 = vld [vmem:[%s5 + $0x58] sm:$0xff]
    %v1625 = vld [vmem:[%s5 + $0x60] sm:$0xff]
    %v1626 = vld [vmem:[%s5 + $0x68] sm:$0xff]
    %v1627 = vld [vmem:[%s5 + $0x70] sm:$0xff]
    %v1628 = vld [vmem:[%s5 + $0x78] sm:$0xff]
    %s1629 = scalar_lea.vmem [#allocation4], 25
    %v1630 = vld [vmem:[%s1629] ss:$2 sm:$0xff]
    %v1631 = vld [vmem:[%s1351] sm:$0xff]
    %v1632 = vld [vmem:[%s1351 + $0x8] sm:$0xff]
    %v1633 = vld [vmem:[%s1351 + $0x10] sm:$0xff]
    %v1634 = vld [vmem:[%s1351 + $0x18] sm:$0xff]
    %v1635 = vld [vmem:[%s1351 + $0x20] sm:$0xff]
    %v1636 = vld [vmem:[%s1351 + $0x28] sm:$0xff]
    %v1637 = vld [vmem:[%s1351 + $0x30] sm:$0xff]
    %v1638 = vld [vmem:[%s1351 + $0x38] sm:$0xff]
    %v1639 = vld [vmem:[%s1351 + $0x40] sm:$0xff]
    %v1640 = vld [vmem:[%s1351 + $0x48] sm:$0xff]
    %v1641 = vld [vmem:[%s1351 + $0x50] sm:$0xff]
    %v1642 = vld [vmem:[%s1351 + $0x58] sm:$0xff]
    %v1643 = vld [vmem:[%s1351 + $0x60] sm:$0xff]
    %v1644 = vld [vmem:[%s1351 + $0x68] sm:$0xff]
    %v1645 = vld [vmem:[%s1351 + $0x70] sm:$0xff]
    %v1646 = vld [vmem:[%s1351 + $0x78] sm:$0xff]
    %1647 = vmatprep.subr.mxu0 0.0
    %1648 = vmatpush1.msra.mxu0 %v1631
    %1649 = vmatprep.subr.mxu0 0.0
    %1650 = vmatpush1.msra.mxu0 %v1632
    %1651 = vmatprep.subr.mxu0 0.0
    %1652 = vmatpush1.msra.mxu0 %v1633
    %1653 = vmatprep.subr.mxu0 0.0
    %1654 = vmatpush1.msra.mxu0 %v1634
    %1655 = vmatprep.subr.mxu0 0.0
    %1656 = vmatpush1.msra.mxu0 %v1635
    %1657 = vmatprep.subr.mxu0 0.0
    %1658 = vmatpush1.msra.mxu0 %v1636
    %1659 = vmatprep.subr.mxu0 0.0
    %1660 = vmatpush1.msra.mxu0 %v1637
    %1661 = vmatprep.subr.mxu0 0.0
    %1662 = vmatpush1.msra.mxu0 %v1638
    %1663 = vmatprep.subr.mxu0 0.0
    %1664 = vmatpush1.msra.mxu0 %v1639
    %1665 = vmatprep.subr.mxu0 0.0
    %1666 = vmatpush1.msra.mxu0 %v1640
    %1667 = vmatprep.subr.mxu0 0.0
    %1668 = vmatpush1.msra.mxu0 %v1641
    %1669 = vmatprep.subr.mxu0 0.0
    %1670 = vmatpush1.msra.mxu0 %v1642
    %1671 = vmatprep.subr.mxu0 0.0
    %1672 = vmatpush1.msra.mxu0 %v1643
    %1673 = vmatprep.subr.mxu0 0.0
    %1674 = vmatpush1.msra.mxu0 %v1644
    %1675 = vmatprep.subr.mxu0 0.0
    %1676 = vmatpush1.msra.mxu0 %v1645
    %1677 = vmatprep.subr.mxu0 0.0
    %1678 = vmatpush1.msra.mxu0 %v1646
    %1679 = vmatprep.subr.mxu0 0.0
    %1680 = vmatpush1.msra.mxu0 0.0
    %1681 = vmatprep.subr.mxu0 0.0
    %1682 = vmatpush1.msra.mxu0 0.0
    %1683 = vmatprep.subr.mxu0 0.0
    %1684 = vmatpush1.msra.mxu0 0.0
    %1685 = vmatprep.subr.mxu0 0.0
    %1686 = vmatpush1.msra.mxu0 0.0
    %1687 = vmatprep.subr.mxu0 0.0
    %1688 = vmatpush1.msra.mxu0 0.0
    %1689 = vmatprep.subr.mxu0 0.0
    %1690 = vmatpush1.msra.mxu0 0.0
    %1691 = vmatprep.subr.mxu0 0.0
    %1692 = vmatpush1.msra.mxu0 0.0
    %1693 = vmatprep.subr.mxu0 0.0
    %1694 = vmatpush1.msra.mxu0 0.0
    %1695 = vmatprep.subr.mxu0 0.0
    %1696 = vmatpush1.msra.mxu0 0.0
    %1697 = vmatprep.subr.mxu0 0.0
    %1698 = vmatpush1.msra.mxu0 0.0
    %1699 = vmatprep.subr.mxu0 0.0
    %1700 = vmatpush1.msra.mxu0 0.0
    %1701 = vmatprep.subr.mxu0 0.0
    %1702 = vmatpush1.msra.mxu0 0.0
    %1703 = vmatprep.subr.mxu0 0.0
    %1704 = vmatpush1.msra.mxu0 0.0
    %1705 = vmatprep.subr.mxu0 0.0
    %1706 = vmatpush1.msra.mxu0 0.0
    %1707 = vmatprep.subr.mxu0 0.0
    %1708 = vmatpush1.msra.mxu0 0.0
    %1709 = vmatprep.subr.mxu0 0.0
    %1710 = vmatpush1.msra.mxu0 0.0
    %1711 = vmatprep.mubr.f32.mxu0 0.0
    %1712 = vmatmul.mubr.f32.gmra.mrb[0].mxu0 %v1630
    %v1713 = vpop.f32.mrb[0].mxu0
    %v1714 = vadd.f32 0.0, %v1713
    %v1715 = vpop.f32.mrb[0].mxu0
    %1716 = vdwg.mxu0
    %1717 = vmatprep.subr.mxu0 0.0
    %1718 = vmatpush1.msra.mxu0 %v1613
    %1719 = vmatprep.subr.mxu0 0.0
    %1720 = vmatpush1.msra.mxu0 %v1614
    %1721 = vmatprep.subr.mxu0 0.0
    %1722 = vmatpush1.msra.mxu0 %v1615
    %1723 = vmatprep.subr.mxu0 0.0
    %1724 = vmatpush1.msra.mxu0 %v1616
    %1725 = vmatprep.subr.mxu0 0.0
    %1726 = vmatpush1.msra.mxu0 %v1617
    %1727 = vmatprep.subr.mxu0 0.0
    %1728 = vmatpush1.msra.mxu0 %v1618
    %1729 = vmatprep.subr.mxu0 0.0
    %1730 = vmatpush1.msra.mxu0 %v1619
    %1731 = vmatprep.subr.mxu0 0.0
    %1732 = vmatpush1.msra.mxu0 %v1620
    %1733 = vmatprep.subr.mxu0 0.0
    %1734 = vmatpush1.msra.mxu0 %v1621
    %1735 = vmatprep.subr.mxu0 0.0
    %1736 = vmatpush1.msra.mxu0 %v1622
    %1737 = vmatprep.subr.mxu0 0.0
    %1738 = vmatpush1.msra.mxu0 %v1623
    %1739 = vmatprep.subr.mxu0 0.0
    %1740 = vmatpush1.msra.mxu0 %v1624
    %1741 = vmatprep.subr.mxu0 0.0
    %1742 = vmatpush1.msra.mxu0 %v1625
    %1743 = vmatprep.subr.mxu0 0.0
    %1744 = vmatpush1.msra.mxu0 %v1626
    %1745 = vmatprep.subr.mxu0 0.0
    %1746 = vmatpush1.msra.mxu0 %v1627
    %1747 = vmatprep.subr.mxu0 0.0
    %1748 = vmatpush1.msra.mxu0 %v1628
    %1749 = vmatprep.subr.mxu0 0.0
    %1750 = vmatpush1.msra.mxu0 0.0
    %1751 = vmatprep.subr.mxu0 0.0
    %1752 = vmatpush1.msra.mxu0 0.0
    %1753 = vmatprep.subr.mxu0 0.0
    %1754 = vmatpush1.msra.mxu0 0.0
    %1755 = vmatprep.subr.mxu0 0.0
    %1756 = vmatpush1.msra.mxu0 0.0
    %1757 = vmatprep.subr.mxu0 0.0
    %1758 = vmatpush1.msra.mxu0 0.0
    %1759 = vmatprep.subr.mxu0 0.0
    %1760 = vmatpush1.msra.mxu0 0.0
    %1761 = vmatprep.subr.mxu0 0.0
    %1762 = vmatpush1.msra.mxu0 0.0
    %1763 = vmatprep.subr.mxu0 0.0
    %1764 = vmatpush1.msra.mxu0 0.0
    %1765 = vmatprep.subr.mxu0 0.0
    %1766 = vmatpush1.msra.mxu0 0.0
    %1767 = vmatprep.subr.mxu0 0.0
    %1768 = vmatpush1.msra.mxu0 0.0
    %1769 = vmatprep.subr.mxu0 0.0
    %1770 = vmatpush1.msra.mxu0 0.0
    %1771 = vmatprep.subr.mxu0 0.0
    %1772 = vmatpush1.msra.mxu0 0.0
    %1773 = vmatprep.subr.mxu0 0.0
    %1774 = vmatpush1.msra.mxu0 0.0
    %1775 = vmatprep.subr.mxu0 0.0
    %1776 = vmatpush1.msra.mxu0 0.0
    %1777 = vmatprep.subr.mxu0 0.0
    %1778 = vmatpush1.msra.mxu0 0.0
    %1779 = vmatprep.subr.mxu0 0.0
    %1780 = vmatpush1.msra.mxu0 0.0
    %1781 = vmatprep.mubr.f32.mxu0 0.0
    %1782 = vmatmul.mubr.f32.gmra.mrb[0].mxu0 %v1612
    %v1783 = vpop.f32.mrb[0].mxu0
    %v1784 = vadd.f32 %v1714, %v1783
    %v1785 = vpop.f32.mrb[0].mxu0
    %1786 = vdwg.mxu0
    %s1787 = scalar_lea.vmem [#allocation4], 26
    %v1788 = vld [vmem:[%s1787] ss:$2 sm:$0xff]
    %v1789 = vld [vmem:[%s1510] sm:$0xff]
    %v1790 = vld [vmem:[%s1510 + $0x8] sm:$0xff]
    %v1791 = vld [vmem:[%s1510 + $0x10] sm:$0xff]
    %v1792 = vld [vmem:[%s1510 + $0x18] sm:$0xff]
    %v1793 = vld [vmem:[%s1510 + $0x20] sm:$0xff]
    %v1794 = vld [vmem:[%s1510 + $0x28] sm:$0xff]
    %v1795 = vld [vmem:[%s1510 + $0x30] sm:$0xff]
    %v1796 = vld [vmem:[%s1510 + $0x38] sm:$0xff]
    %v1797 = vld [vmem:[%s1510 + $0x40] sm:$0xff]
    %v1798 = vld [vmem:[%s1510 + $0x48] sm:$0xff]
    %v1799 = vld [vmem:[%s1510 + $0x50] sm:$0xff]
    %v1800 = vld [vmem:[%s1510 + $0x58] sm:$0xff]
    %v1801 = vld [vmem:[%s1510 + $0x60] sm:$0xff]
    %v1802 = vld [vmem:[%s1510 + $0x68] sm:$0xff]
    %v1803 = vld [vmem:[%s1510 + $0x70] sm:$0xff]
    %v1804 = vld [vmem:[%s1510 + $0x78] sm:$0xff]
    %1805 = vmatprep.subr.mxu0 0.0
    %1806 = vmatpush1.msra.mxu0 %v1789
    %1807 = vmatprep.subr.mxu0 0.0
    %1808 = vmatpush1.msra.mxu0 %v1790
    %1809 = vmatprep.subr.mxu0 0.0
    %1810 = vmatpush1.msra.mxu0 %v1791
    %1811 = vmatprep.subr.mxu0 0.0
    %1812 = vmatpush1.msra.mxu0 %v1792
    %1813 = vmatprep.subr.mxu0 0.0
    %1814 = vmatpush1.msra.mxu0 %v1793
    %1815 = vmatprep.subr.mxu0 0.0
    %1816 = vmatpush1.msra.mxu0 %v1794
    %1817 = vmatprep.subr.mxu0 0.0
    %1818 = vmatpush1.msra.mxu0 %v1795
    %1819 = vmatprep.subr.mxu0 0.0
    %1820 = vmatpush1.msra.mxu0 %v1796
    %1821 = vmatprep.subr.mxu0 0.0
    %1822 = vmatpush1.msra.mxu0 %v1797
    %1823 = vmatprep.subr.mxu0 0.0
    %1824 = vmatpush1.msra.mxu0 %v1798
    %1825 = vmatprep.subr.mxu0 0.0
    %1826 = vmatpush1.msra.mxu0 %v1799
    %1827 = vmatprep.subr.mxu0 0.0
    %1828 = vmatpush1.msra.mxu0 %v1800
    %1829 = vmatprep.subr.mxu0 0.0
    %1830 = vmatpush1.msra.mxu0 %v1801
    %1831 = vmatprep.subr.mxu0 0.0
    %1832 = vmatpush1.msra.mxu0 %v1802
    %1833 = vmatprep.subr.mxu0 0.0
    %1834 = vmatpush1.msra.mxu0 %v1803
    %1835 = vmatprep.subr.mxu0 0.0
    %1836 = vmatpush1.msra.mxu0 %v1804
    %1837 = vmatprep.subr.mxu0 0.0
    %1838 = vmatpush1.msra.mxu0 0.0
    %1839 = vmatprep.subr.mxu0 0.0
    %1840 = vmatpush1.msra.mxu0 0.0
    %1841 = vmatprep.subr.mxu0 0.0
    %1842 = vmatpush1.msra.mxu0 0.0
    %1843 = vmatprep.subr.mxu0 0.0
    %1844 = vmatpush1.msra.mxu0 0.0
    %1845 = vmatprep.subr.mxu0 0.0
    %1846 = vmatpush1.msra.mxu0 0.0
    %1847 = vmatprep.subr.mxu0 0.0
    %1848 = vmatpush1.msra.mxu0 0.0
    %1849 = vmatprep.subr.mxu0 0.0
    %1850 = vmatpush1.msra.mxu0 0.0
    %1851 = vmatprep.subr.mxu0 0.0
    %1852 = vmatpush1.msra.mxu0 0.0
    %1853 = vmatprep.subr.mxu0 0.0
    %1854 = vmatpush1.msra.mxu0 0.0
    %1855 = vmatprep.subr.mxu0 0.0
    %1856 = vmatpush1.msra.mxu0 0.0
    %1857 = vmatprep.subr.mxu0 0.0
    %1858 = vmatpush1.msra.mxu0 0.0
    %1859 = vmatprep.subr.mxu0 0.0
    %1860 = vmatpush1.msra.mxu0 0.0
    %1861 = vmatprep.subr.mxu0 0.0
    %1862 = vmatpush1.msra.mxu0 0.0
    %1863 = vmatprep.subr.mxu0 0.0
    %1864 = vmatpush1.msra.mxu0 0.0
    %1865 = vmatprep.subr.mxu0 0.0
    %1866 = vmatpush1.msra.mxu0 0.0
    %1867 = vmatprep.subr.mxu0 0.0
    %1868 = vmatpush1.msra.mxu0 0.0
    %1869 = vmatprep.mubr.f32.mxu0 0.0
    %1870 = vmatmul.mubr.f32.gmra.mrb[0].mxu0 %v1788
    %v1871 = vpop.f32.mrb[0].mxu0
    %v1872 = vadd.f32 0.0, %v1871
    %v1873 = vpop.f32.mrb[0].mxu0
    %1874 = vdwg.mxu0
    %v1875 = vadd.f32 %v1784, %v1872
    %v1876 = vadd.f32 %v1875, %v1602
    %v1877 = vmul.f32 %v1876, 0.5
    %v1878 = vmul.f32 %v1876, 0.70710677
    %v1879 = verf.f32.pop %v1878
    %v1880 = vadd.f32 %v1879, 1.0
    %v1881 = vmul.f32 %v1877, %v1880
    %1882 = vst [vmem:[#allocation5 + $0x11] sm:$0xff] %v1881
    %v1883 = vld [vmem:[%s8] sm:$0x1]
    %v1884 = vld [vmem:[#allocation5] sm:$0xff]
    %v1885 = vld [vmem:[#allocation13] sm:$0xff]
    %v1886 = vld [vmem:[#allocation13 + $0x8] sm:$0xff]
    %v1887 = vld [vmem:[#allocation13 + $0x10] sm:$0xff]
    %v1888 = vld [vmem:[#allocation13 + $0x18] sm:$0xff]
    %v1889 = vld [vmem:[#allocation13 + $0x20] sm:$0xff]
    %v1890 = vld [vmem:[#allocation13 + $0x28] sm:$0xff]
    %v1891 = vld [vmem:[#allocation13 + $0x30] sm:$0xff]
    %v1892 = vld [vmem:[#allocation13 + $0x38] sm:$0xff]
    %v1893 = vld [vmem:[#allocation13 + $0x40] sm:$0xff]
    %v1894 = vld [vmem:[#allocation13 + $0x48] sm:$0xff]
    %v1895 = vld [vmem:[#allocation13 + $0x50] sm:$0xff]
    %v1896 = vld [vmem:[#allocation13 + $0x58] sm:$0xff]
    %v1897 = vld [vmem:[#allocation13 + $0x60] sm:$0xff]
    %v1898 = vld [vmem:[#allocation13 + $0x68] sm:$0xff]
    %v1899 = vld [vmem:[#allocation13 + $0x70] sm:$0xff]
    %v1900 = vld [vmem:[#allocation13 + $0x78] sm:$0xff]
    %v1901 = vld [vmem:[#allocation5 + $0x1] sm:$0xff]
    %s1902 = scalar_lea.vmem [#allocation13], 128
    %v1903 = vld [vmem:[%s1902] sm:$0xff]
    %v1904 = vld [vmem:[%s1902 + $0x8] sm:$0xff]
    %v1905 = vld [vmem:[%s1902 + $0x10] sm:$0xff]
    %v1906 = vld [vmem:[%s1902 + $0x18] sm:$0xff]
    %v1907 = vld [vmem:[%s1902 + $0x20] sm:$0xff]
    %v1908 = vld [vmem:[%s1902 + $0x28] sm:$0xff]
    %v1909 = vld [vmem:[%s1902 + $0x30] sm:$0xff]
    %v1910 = vld [vmem:[%s1902 + $0x38] sm:$0xff]
    %v1911 = vld [vmem:[%s1902 + $0x40] sm:$0xff]
    %v1912 = vld [vmem:[%s1902 + $0x48] sm:$0xff]
    %v1913 = vld [vmem:[%s1902 + $0x50] sm:$0xff]
    %v1914 = vld [vmem:[%s1902 + $0x58] sm:$0xff]
    %v1915 = vld [vmem:[%s1902 + $0x60] sm:$0xff]
    %v1916 = vld [vmem:[%s1902 + $0x68] sm:$0xff]
    %v1917 = vld [vmem:[%s1902 + $0x70] sm:$0xff]
    %v1918 = vld [vmem:[%s1902 + $0x78] sm:$0xff]
    %1919 = vmatprep.subr.mxu0 0.0
    %1920 = vmatpush1.msra.mxu0 %v1903
    %1921 = vmatprep.subr.mxu0 0.0
    %1922 = vmatpush1.msra.mxu0 %v1904
    %1923 = vmatprep.subr.mxu0 0.0
    %1924 = vmatpush1.msra.mxu0 %v1905
    %1925 = vmatprep.subr.mxu0 0.0
    %1926 = vmatpush1.msra.mxu0 %v1906
    %1927 = vmatprep.subr.mxu0 0.0
    %1928 = vmatpush1.msra.mxu0 %v1907
    %1929 = vmatprep.subr.mxu0 0.0
    %1930 = vmatpush1.msra.mxu0 %v1908
    %1931 = vmatprep.subr.mxu0 0.0
    %1932 = vmatpush1.msra.mxu0 %v1909
    %1933 = vmatprep.subr.mxu0 0.0
    %1934 = vmatpush1.msra.mxu0 %v1910
    %1935 = vmatprep.subr.mxu0 0.0
    %1936 = vmatpush1.msra.mxu0 %v1911
    %1937 = vmatprep.subr.mxu0 0.0
    %1938 = vmatpush1.msra.mxu0 %v1912
    %1939 = vmatprep.subr.mxu0 0.0
    %1940 = vmatpush1.msra.mxu0 %v1913
    %1941 = vmatprep.subr.mxu0 0.0
    %1942 = vmatpush1.msra.mxu0 %v1914
    %1943 = vmatprep.subr.mxu0 0.0
    %1944 = vmatpush1.msra.mxu0 %v1915
    %1945 = vmatprep.subr.mxu0 0.0
    %1946 = vmatpush1.msra.mxu0 %v1916
    %1947 = vmatprep.subr.mxu0 0.0
    %1948 = vmatpush1.msra.mxu0 %v1917
    %1949 = vmatprep.subr.mxu0 0.0
    %1950 = vmatpush1.msra.mxu0 %v1918
    %1951 = vmatprep.subr.mxu0 0.0
    %1952 = vmatpush1.msra.mxu0 0.0
    %1953 = vmatprep.subr.mxu0 0.0
    %1954 = vmatpush1.msra.mxu0 0.0
    %1955 = vmatprep.subr.mxu0 0.0
    %1956 = vmatpush1.msra.mxu0 0.0
    %1957 = vmatprep.subr.mxu0 0.0
    %1958 = vmatpush1.msra.mxu0 0.0
    %1959 = vmatprep.subr.mxu0 0.0
    %1960 = vmatpush1.msra.mxu0 0.0
    %1961 = vmatprep.subr.mxu0 0.0
    %1962 = vmatpush1.msra.mxu0 0.0
    %1963 = vmatprep.subr.mxu0 0.0
    %1964 = vmatpush1.msra.mxu0 0.0
    %1965 = vmatprep.subr.mxu0 0.0
    %1966 = vmatpush1.msra.mxu0 0.0
    %1967 = vmatprep.subr.mxu0 0.0
    %1968 = vmatpush1.msra.mxu0 0.0
    %1969 = vmatprep.subr.mxu0 0.0
    %1970 = vmatpush1.msra.mxu0 0.0
    %1971 = vmatprep.subr.mxu0 0.0
    %1972 = vmatpush1.msra.mxu0 0.0
    %1973 = vmatprep.subr.mxu0 0.0
    %1974 = vmatpush1.msra.mxu0 0.0
    %1975 = vmatprep.subr.mxu0 0.0
    %1976 = vmatpush1.msra.mxu0 0.0
    %1977 = vmatprep.subr.mxu0 0.0
    %1978 = vmatpush1.msra.mxu0 0.0
    %1979 = vmatprep.subr.mxu0 0.0
    %1980 = vmatpush1.msra.mxu0 0.0
    %1981 = vmatprep.subr.mxu0 0.0
    %1982 = vmatpush1.msra.mxu0 0.0
    %1983 = vmatprep.mubr.f32.mxu0 0.0
    %1984 = vmatmul.mubr.f32.gmra.mrb[0].mxu0 %v1901
    %v1985 = vpop.f32.mrb[0].mxu0
    %v1986 = vadd.f32 0.0, %v1985
    %v1987 = vpop.f32.mrb[0].mxu0
    %1988 = vdwg.mxu0
    %1989 = vmatprep.subr.mxu0 0.0
    %1990 = vmatpush1.msra.mxu0 %v1885
    %1991 = vmatprep.subr.mxu0 0.0
    %1992 = vmatpush1.msra.mxu0 %v1886
    %1993 = vmatprep.subr.mxu0 0.0
    %1994 = vmatpush1.msra.mxu0 %v1887
    %1995 = vmatprep.subr.mxu0 0.0
    %1996 = vmatpush1.msra.mxu0 %v1888
    %1997 = vmatprep.subr.mxu0 0.0
    %1998 = vmatpush1.msra.mxu0 %v1889
    %1999 = vmatprep.subr.mxu0 0.0
    %2000 = vmatpush1.msra.mxu0 %v1890
    %2001 = vmatprep.subr.mxu0 0.0
    %2002 = vmatpush1.msra.mxu0 %v1891
    %2003 = vmatprep.subr.mxu0 0.0
    %2004 = vmatpush1.msra.mxu0 %v1892
    %2005 = vmatprep.subr.mxu0 0.0
    %2006 = vmatpush1.msra.mxu0 %v1893
    %2007 = vmatprep.subr.mxu0 0.0
    %2008 = vmatpush1.msra.mxu0 %v1894
    %2009 = vmatprep.subr.mxu0 0.0
    %2010 = vmatpush1.msra.mxu0 %v1895
    %2011 = vmatprep.subr.mxu0 0.0
    %2012 = vmatpush1.msra.mxu0 %v1896
    %2013 = vmatprep.subr.mxu0 0.0
    %2014 = vmatpush1.msra.mxu0 %v1897
    %2015 = vmatprep.subr.mxu0 0.0
    %2016 = vmatpush1.msra.mxu0 %v1898
    %2017 = vmatprep.subr.mxu0 0.0
    %2018 = vmatpush1.msra.mxu0 %v1899
    %2019 = vmatprep.subr.mxu0 0.0
    %2020 = vmatpush1.msra.mxu0 %v1900
    %2021 = vmatprep.subr.mxu0 0.0
    %2022 = vmatpush1.msra.mxu0 0.0
    %2023 = vmatprep.subr.mxu0 0.0
    %2024 = vmatpush1.msra.mxu0 0.0
    %2025 = vmatprep.subr.mxu0 0.0
    %2026 = vmatpush1.msra.mxu0 0.0
    %2027 = vmatprep.subr.mxu0 0.0
    %2028 = vmatpush1.msra.mxu0 0.0
    %2029 = vmatprep.subr.mxu0 0.0
    %2030 = vmatpush1.msra.mxu0 0.0
    %2031 = vmatprep.subr.mxu0 0.0
    %2032 = vmatpush1.msra.mxu0 0.0
    %2033 = vmatprep.subr.mxu0 0.0
    %2034 = vmatpush1.msra.mxu0 0.0
    %2035 = vmatprep.subr.mxu0 0.0
    %2036 = vmatpush1.msra.mxu0 0.0
    %2037 = vmatprep.subr.mxu0 0.0
    %2038 = vmatpush1.msra.mxu0 0.0
    %2039 = vmatprep.subr.mxu0 0.0
    %2040 = vmatpush1.msra.mxu0 0.0
    %2041 = vmatprep.subr.mxu0 0.0
    %2042 = vmatpush1.msra.mxu0 0.0
    %2043 = vmatprep.subr.mxu0 0.0
    %2044 = vmatpush1.msra.mxu0 0.0
    %2045 = vmatprep.subr.mxu0 0.0
    %2046 = vmatpush1.msra.mxu0 0.0
    %2047 = vmatprep.subr.mxu0 0.0
    %2048 = vmatpush1.msra.mxu0 0.0
    %2049 = vmatprep.subr.mxu0 0.0
    %2050 = vmatpush1.msra.mxu0 0.0
    %2051 = vmatprep.subr.mxu0 0.0
    %2052 = vmatpush1.msra.mxu0 0.0
    %2053 = vmatprep.mubr.f32.mxu0 0.0
    %2054 = vmatmul.mubr.f32.gmra.mrb[0].mxu0 %v1884
    %v2055 = vpop.f32.mrb[0].mxu0
    %v2056 = vadd.f32 %v1986, %v2055
    %v2057 = vpop.f32.mrb[0].mxu0
    %2058 = vdwg.mxu0
    %v2059 = vld [vmem:[#allocation5 + $0x2] sm:$0xff]
    %s2060 = scalar_lea.vmem [#allocation13], 256
    %v2061 = vld [vmem:[%s2060] sm:$0xff]
    %v2062 = vld [vmem:[%s2060 + $0x8] sm:$0xff]
    %v2063 = vld [vmem:[%s2060 + $0x10] sm:$0xff]
    %v2064 = vld [vmem:[%s2060 + $0x18] sm:$0xff]
    %v2065 = vld [vmem:[%s2060 + $0x20] sm:$0xff]
    %v2066 = vld [vmem:[%s2060 + $0x28] sm:$0xff]
    %v2067 = vld [vmem:[%s2060 + $0x30] sm:$0xff]
    %v2068 = vld [vmem:[%s2060 + $0x38] sm:$0xff]
    %v2069 = vld [vmem:[%s2060 + $0x40] sm:$0xff]
    %v2070 = vld [vmem:[%s2060 + $0x48] sm:$0xff]
    %v2071 = vld [vmem:[%s2060 + $0x50] sm:$0xff]
    %v2072 = vld [vmem:[%s2060 + $0x58] sm:$0xff]
    %v2073 = vld [vmem:[%s2060 + $0x60] sm:$0xff]
    %v2074 = vld [vmem:[%s2060 + $0x68] sm:$0xff]
    %v2075 = vld [vmem:[%s2060 + $0x70] sm:$0xff]
    %v2076 = vld [vmem:[%s2060 + $0x78] sm:$0xff]
    %2077 = vmatprep.subr.mxu0 0.0
    %2078 = vmatpush1.msra.mxu0 %v2061
    %2079 = vmatprep.subr.mxu0 0.0
    %2080 = vmatpush1.msra.mxu0 %v2062
    %2081 = vmatprep.subr.mxu0 0.0
    %2082 = vmatpush1.msra.mxu0 %v2063
    %2083 = vmatprep.subr.mxu0 0.0
    %2084 = vmatpush1.msra.mxu0 %v2064
    %2085 = vmatprep.subr.mxu0 0.0
    %2086 = vmatpush1.msra.mxu0 %v2065
    %2087 = vmatprep.subr.mxu0 0.0
    %2088 = vmatpush1.msra.mxu0 %v2066
    %2089 = vmatprep.subr.mxu0 0.0
    %2090 = vmatpush1.msra.mxu0 %v2067
    %2091 = vmatprep.subr.mxu0 0.0
    %2092 = vmatpush1.msra.mxu0 %v2068
    %2093 = vmatprep.subr.mxu0 0.0
    %2094 = vmatpush1.msra.mxu0 %v2069
    %2095 = vmatprep.subr.mxu0 0.0
    %2096 = vmatpush1.msra.mxu0 %v2070
    %2097 = vmatprep.subr.mxu0 0.0
    %2098 = vmatpush1.msra.mxu0 %v2071
    %2099 = vmatprep.subr.mxu0 0.0
    %2100 = vmatpush1.msra.mxu0 %v2072
    %2101 = vmatprep.subr.mxu0 0.0
    %2102 = vmatpush1.msra.mxu0 %v2073
    %2103 = vmatprep.subr.mxu0 0.0
    %2104 = vmatpush1.msra.mxu0 %v2074
    %2105 = vmatprep.subr.mxu0 0.0
    %2106 = vmatpush1.msra.mxu0 %v2075
    %2107 = vmatprep.subr.mxu0 0.0
    %2108 = vmatpush1.msra.mxu0 %v2076
    %2109 = vmatprep.subr.mxu0 0.0
    %2110 = vmatpush1.msra.mxu0 0.0
    %2111 = vmatprep.subr.mxu0 0.0
    %2112 = vmatpush1.msra.mxu0 0.0
    %2113 = vmatprep.subr.mxu0 0.0
    %2114 = vmatpush1.msra.mxu0 0.0
    %2115 = vmatprep.subr.mxu0 0.0
    %2116 = vmatpush1.msra.mxu0 0.0
    %2117 = vmatprep.subr.mxu0 0.0
    %2118 = vmatpush1.msra.mxu0 0.0
    %2119 = vmatprep.subr.mxu0 0.0
    %2120 = vmatpush1.msra.mxu0 0.0
    %2121 = vmatprep.subr.mxu0 0.0
    %2122 = vmatpush1.msra.mxu0 0.0
    %2123 = vmatprep.subr.mxu0 0.0
    %2124 = vmatpush1.msra.mxu0 0.0
    %2125 = vmatprep.subr.mxu0 0.0
    %2126 = vmatpush1.msra.mxu0 0.0
    %2127 = vmatprep.subr.mxu0 0.0
    %2128 = vmatpush1.msra.mxu0 0.0
    %2129 = vmatprep.subr.mxu0 0.0
    %2130 = vmatpush1.msra.mxu0 0.0
    %2131 = vmatprep.subr.mxu0 0.0
    %2132 = vmatpush1.msra.mxu0 0.0
    %2133 = vmatprep.subr.mxu0 0.0
    %2134 = vmatpush1.msra.mxu0 0.0
    %2135 = vmatprep.subr.mxu0 0.0
    %2136 = vmatpush1.msra.mxu0 0.0
    %2137 = vmatprep.subr.mxu0 0.0
    %2138 = vmatpush1.msra.mxu0 0.0
    %2139 = vmatprep.subr.mxu0 0.0
    %2140 = vmatpush1.msra.mxu0 0.0
    %2141 = vmatprep.mubr.f32.mxu0 0.0
    %2142 = vmatmul.mubr.f32.gmra.mrb[0].mxu0 %v2059
    %v2143 = vpop.f32.mrb[0].mxu0
    %v2144 = vadd.f32 0.0, %v2143
    %v2145 = vpop.f32.mrb[0].mxu0
    %2146 = vdwg.mxu0
    %v2147 = vadd.f32 %v2056, %v2144
    %v2149 = vlaneseq
    %v2150 = vshrl.u32 %v2149, 7
    %v2151 = vsub.s32 0, %v2150
    %v2152 = vrot.slane %v1883, %v2151
    %v2154 = vadd.f32 %v2147, %v2152
    %v2155 = vmul.f32 %v2154, 0.5
    %v2156 = vmul.f32 %v2154, 0.70710677
    %v2157 = verf.f32.pop %v2156
    %v2158 = vadd.f32 %v2157, 1.0
    %v2159 = vmul.f32 %v2155, %v2158
    %2160 = vst [vmem:[#allocation6 + $0x1] sm:$0xff] %v2159
    %v2161 = vld [vmem:[#allocation5 + $0x10] sm:$0xff]
    %v2162 = vld [vmem:[#allocation13] sm:$0xff]
    %v2163 = vld [vmem:[#allocation13 + $0x8] sm:$0xff]
    %v2164 = vld [vmem:[#allocation13 + $0x10] sm:$0xff]
    %v2165 = vld [vmem:[#allocation13 + $0x18] sm:$0xff]
    %v2166 = vld [vmem:[#allocation13 + $0x20] sm:$0xff]
    %v2167 = vld [vmem:[#allocation13 + $0x28] sm:$0xff]
    %v2168 = vld [vmem:[#allocation13 + $0x30] sm:$0xff]
    %v2169 = vld [vmem:[#allocation13 + $0x38] sm:$0xff]
    %v2170 = vld [vmem:[#allocation13 + $0x40] sm:$0xff]
    %v2171 = vld [vmem:[#allocation13 + $0x48] sm:$0xff]
    %v2172 = vld [vmem:[#allocation13 + $0x50] sm:$0xff]
    %v2173 = vld [vmem:[#allocation13 + $0x58] sm:$0xff]
    %v2174 = vld [vmem:[#allocation13 + $0x60] sm:$0xff]
    %v2175 = vld [vmem:[#allocation13 + $0x68] sm:$0xff]
    %v2176 = vld [vmem:[#allocation13 + $0x70] sm:$0xff]
    %v2177 = vld [vmem:[#allocation13 + $0x78] sm:$0xff]
    %v2178 = vld [vmem:[#allocation5 + $0x11] sm:$0xff]
    %v2179 = vld [vmem:[%s1902] sm:$0xff]
    %v2180 = vld [vmem:[%s1902 + $0x8] sm:$0xff]
    %v2181 = vld [vmem:[%s1902 + $0x10] sm:$0xff]
    %v2182 = vld [vmem:[%s1902 + $0x18] sm:$0xff]
    %v2183 = vld [vmem:[%s1902 + $0x20] sm:$0xff]
    %v2184 = vld [vmem:[%s1902 + $0x28] sm:$0xff]
    %v2185 = vld [vmem:[%s1902 + $0x30] sm:$0xff]
    %v2186 = vld [vmem:[%s1902 + $0x38] sm:$0xff]
    %v2187 = vld [vmem:[%s1902 + $0x40] sm:$0xff]
    %v2188 = vld [vmem:[%s1902 + $0x48] sm:$0xff]
    %v2189 = vld [vmem:[%s1902 + $0x50] sm:$0xff]
    %v2190 = vld [vmem:[%s1902 + $0x58] sm:$0xff]
    %v2191 = vld [vmem:[%s1902 + $0x60] sm:$0xff]
    %v2192 = vld [vmem:[%s1902 + $0x68] sm:$0xff]
    %v2193 = vld [vmem:[%s1902 + $0x70] sm:$0xff]
    %v2194 = vld [vmem:[%s1902 + $0x78] sm:$0xff]
    %2195 = vmatprep.subr.mxu0 0.0
    %2196 = vmatpush1.msra.mxu0 %v2179
    %2197 = vmatprep.subr.mxu0 0.0
    %2198 = vmatpush1.msra.mxu0 %v2180
    %2199 = vmatprep.subr.mxu0 0.0
    %2200 = vmatpush1.msra.mxu0 %v2181
    %2201 = vmatprep.subr.mxu0 0.0
    %2202 = vmatpush1.msra.mxu0 %v2182
    %2203 = vmatprep.subr.mxu0 0.0
    %2204 = vmatpush1.msra.mxu0 %v2183
    %2205 = vmatprep.subr.mxu0 0.0
    %2206 = vmatpush1.msra.mxu0 %v2184
    %2207 = vmatprep.subr.mxu0 0.0
    %2208 = vmatpush1.msra.mxu0 %v2185
    %2209 = vmatprep.subr.mxu0 0.0
    %2210 = vmatpush1.msra.mxu0 %v2186
    %2211 = vmatprep.subr.mxu0 0.0
    %2212 = vmatpush1.msra.mxu0 %v2187
    %2213 = vmatprep.subr.mxu0 0.0
    %2214 = vmatpush1.msra.mxu0 %v2188
    %2215 = vmatprep.subr.mxu0 0.0
    %2216 = vmatpush1.msra.mxu0 %v2189
    %2217 = vmatprep.subr.mxu0 0.0
    %2218 = vmatpush1.msra.mxu0 %v2190
    %2219 = vmatprep.subr.mxu0 0.0
    %2220 = vmatpush1.msra.mxu0 %v2191
    %2221 = vmatprep.subr.mxu0 0.0
    %2222 = vmatpush1.msra.mxu0 %v2192
    %2223 = vmatprep.subr.mxu0 0.0
    %2224 = vmatpush1.msra.mxu0 %v2193
    %2225 = vmatprep.subr.mxu0 0.0
    %2226 = vmatpush1.msra.mxu0 %v2194
    %2227 = vmatprep.subr.mxu0 0.0
    %2228 = vmatpush1.msra.mxu0 0.0
    %2229 = vmatprep.subr.mxu0 0.0
    %2230 = vmatpush1.msra.mxu0 0.0
    %2231 = vmatprep.subr.mxu0 0.0
    %2232 = vmatpush1.msra.mxu0 0.0
    %2233 = vmatprep.subr.mxu0 0.0
    %2234 = vmatpush1.msra.mxu0 0.0
    %2235 = vmatprep.subr.mxu0 0.0
    %2236 = vmatpush1.msra.mxu0 0.0
    %2237 = vmatprep.subr.mxu0 0.0
    %2238 = vmatpush1.msra.mxu0 0.0
    %2239 = vmatprep.subr.mxu0 0.0
    %2240 = vmatpush1.msra.mxu0 0.0
    %2241 = vmatprep.subr.mxu0 0.0
    %2242 = vmatpush1.msra.mxu0 0.0
    %2243 = vmatprep.subr.mxu0 0.0
    %2244 = vmatpush1.msra.mxu0 0.0
    %2245 = vmatprep.subr.mxu0 0.0
    %2246 = vmatpush1.msra.mxu0 0.0
    %2247 = vmatprep.subr.mxu0 0.0
    %2248 = vmatpush1.msra.mxu0 0.0
    %2249 = vmatprep.subr.mxu0 0.0
    %2250 = vmatpush1.msra.mxu0 0.0
    %2251 = vmatprep.subr.mxu0 0.0
    %2252 = vmatpush1.msra.mxu0 0.0
    %2253 = vmatprep.subr.mxu0 0.0
    %2254 = vmatpush1.msra.mxu0 0.0
    %2255 = vmatprep.subr.mxu0 0.0
    %2256 = vmatpush1.msra.mxu0 0.0
    %2257 = vmatprep.subr.mxu0 0.0
    %2258 = vmatpush1.msra.mxu0 0.0
    %2259 = vmatprep.mubr.f32.mxu0 0.0
    %2260 = vmatmul.mubr.f32.gmra.mrb[0].mxu0 %v2178
    %v2261 = vpop.f32.mrb[0].mxu0
    %v2262 = vadd.f32 0.0, %v2261
    %v2263 = vpop.f32.mrb[0].mxu0
    %2264 = vdwg.mxu0
    %2265 = vmatprep.subr.mxu0 0.0
    %2266 = vmatpush1.msra.mxu0 %v2162
    %2267 = vmatprep.subr.mxu0 0.0
    %2268 = vmatpush1.msra.mxu0 %v2163
    %2269 = vmatprep.subr.mxu0 0.0
    %2270 = vmatpush1.msra.mxu0 %v2164
    %2271 = vmatprep.subr.mxu0 0.0
    %2272 = vmatpush1.msra.mxu0 %v2165
    %2273 = vmatprep.subr.mxu0 0.0
    %2274 = vmatpush1.msra.mxu0 %v2166
    %2275 = vmatprep.subr.mxu0 0.0
    %2276 = vmatpush1.msra.mxu0 %v2167
    %2277 = vmatprep.subr.mxu0 0.0
    %2278 = vmatpush1.msra.mxu0 %v2168
    %2279 = vmatprep.subr.mxu0 0.0
    %2280 = vmatpush1.msra.mxu0 %v2169
    %2281 = vmatprep.subr.mxu0 0.0
    %2282 = vmatpush1.msra.mxu0 %v2170
    %2283 = vmatprep.subr.mxu0 0.0
    %2284 = vmatpush1.msra.mxu0 %v2171
    %2285 = vmatprep.subr.mxu0 0.0
    %2286 = vmatpush1.msra.mxu0 %v2172
    %2287 = vmatprep.subr.mxu0 0.0
    %2288 = vmatpush1.msra.mxu0 %v2173
    %2289 = vmatprep.subr.mxu0 0.0
    %2290 = vmatpush1.msra.mxu0 %v2174
    %2291 = vmatprep.subr.mxu0 0.0
    %2292 = vmatpush1.msra.mxu0 %v2175
    %2293 = vmatprep.subr.mxu0 0.0
    %2294 = vmatpush1.msra.mxu0 %v2176
    %2295 = vmatprep.subr.mxu0 0.0
    %2296 = vmatpush1.msra.mxu0 %v2177
    %2297 = vmatprep.subr.mxu0 0.0
    %2298 = vmatpush1.msra.mxu0 0.0
    %2299 = vmatprep.subr.mxu0 0.0
    %2300 = vmatpush1.msra.mxu0 0.0
    %2301 = vmatprep.subr.mxu0 0.0
    %2302 = vmatpush1.msra.mxu0 0.0
    %2303 = vmatprep.subr.mxu0 0.0
    %2304 = vmatpush1.msra.mxu0 0.0
    %2305 = vmatprep.subr.mxu0 0.0
    %2306 = vmatpush1.msra.mxu0 0.0
    %2307 = vmatprep.subr.mxu0 0.0
    %2308 = vmatpush1.msra.mxu0 0.0
    %2309 = vmatprep.subr.mxu0 0.0
    %2310 = vmatpush1.msra.mxu0 0.0
    %2311 = vmatprep.subr.mxu0 0.0
    %2312 = vmatpush1.msra.mxu0 0.0
    %2313 = vmatprep.subr.mxu0 0.0
    %2314 = vmatpush1.msra.mxu0 0.0
    %2315 = vmatprep.subr.mxu0 0.0
    %2316 = vmatpush1.msra.mxu0 0.0
    %2317 = vmatprep.subr.mxu0 0.0
    %2318 = vmatpush1.msra.mxu0 0.0
    %2319 = vmatprep.subr.mxu0 0.0
    %2320 = vmatpush1.msra.mxu0 0.0
    %2321 = vmatprep.subr.mxu0 0.0
    %2322 = vmatpush1.msra.mxu0 0.0
    %2323 = vmatprep.subr.mxu0 0.0
    %2324 = vmatpush1.msra.mxu0 0.0
    %2325 = vmatprep.subr.mxu0 0.0
    %2326 = vmatpush1.msra.mxu0 0.0
    %2327 = vmatprep.subr.mxu0 0.0
    %2328 = vmatpush1.msra.mxu0 0.0
    %2329 = vmatprep.mubr.f32.mxu0 0.0
    %2330 = vmatmul.mubr.f32.gmra.mrb[0].mxu0 %v2161
    %v2331 = vpop.f32.mrb[0].mxu0
    %v2332 = vadd.f32 %v2262, %v2331
    %v2333 = vpop.f32.mrb[0].mxu0
    %2334 = vdwg.mxu0
    %v2335 = vld [vmem:[#allocation5 + $0x12] sm:$0xff]
    %v2336 = vld [vmem:[%s2060] sm:$0xff]
    %v2337 = vld [vmem:[%s2060 + $0x8] sm:$0xff]
    %v2338 = vld [vmem:[%s2060 + $0x10] sm:$0xff]
    %v2339 = vld [vmem:[%s2060 + $0x18] sm:$0xff]
    %v2340 = vld [vmem:[%s2060 + $0x20] sm:$0xff]
    %v2341 = vld [vmem:[%s2060 + $0x28] sm:$0xff]
    %v2342 = vld [vmem:[%s2060 + $0x30] sm:$0xff]
    %v2343 = vld [vmem:[%s2060 + $0x38] sm:$0xff]
    %v2344 = vld [vmem:[%s2060 + $0x40] sm:$0xff]
    %v2345 = vld [vmem:[%s2060 + $0x48] sm:$0xff]
    %v2346 = vld [vmem:[%s2060 + $0x50] sm:$0xff]
    %v2347 = vld [vmem:[%s2060 + $0x58] sm:$0xff]
    %v2348 = vld [vmem:[%s2060 + $0x60] sm:$0xff]
    %v2349 = vld [vmem:[%s2060 + $0x68] sm:$0xff]
    %v2350 = vld [vmem:[%s2060 + $0x70] sm:$0xff]
    %v2351 = vld [vmem:[%s2060 + $0x78] sm:$0xff]
    %2352 = vmatprep.subr.mxu0 0.0
    %2353 = vmatpush1.msra.mxu0 %v2336
    %2354 = vmatprep.subr.mxu0 0.0
    %2355 = vmatpush1.msra.mxu0 %v2337
    %2356 = vmatprep.subr.mxu0 0.0
    %2357 = vmatpush1.msra.mxu0 %v2338
    %2358 = vmatprep.subr.mxu0 0.0
    %2359 = vmatpush1.msra.mxu0 %v2339
    %2360 = vmatprep.subr.mxu0 0.0
    %2361 = vmatpush1.msra.mxu0 %v2340
    %2362 = vmatprep.subr.mxu0 0.0
    %2363 = vmatpush1.msra.mxu0 %v2341
    %2364 = vmatprep.subr.mxu0 0.0
    %2365 = vmatpush1.msra.mxu0 %v2342
    %2366 = vmatprep.subr.mxu0 0.0
    %2367 = vmatpush1.msra.mxu0 %v2343
    %2368 = vmatprep.subr.mxu0 0.0
    %2369 = vmatpush1.msra.mxu0 %v2344
    %2370 = vmatprep.subr.mxu0 0.0
    %2371 = vmatpush1.msra.mxu0 %v2345
    %2372 = vmatprep.subr.mxu0 0.0
    %2373 = vmatpush1.msra.mxu0 %v2346
    %2374 = vmatprep.subr.mxu0 0.0
    %2375 = vmatpush1.msra.mxu0 %v2347
    %2376 = vmatprep.subr.mxu0 0.0
    %2377 = vmatpush1.msra.mxu0 %v2348
    %2378 = vmatprep.subr.mxu0 0.0
    %2379 = vmatpush1.msra.mxu0 %v2349
    %2380 = vmatprep.subr.mxu0 0.0
    %2381 = vmatpush1.msra.mxu0 %v2350
    %2382 = vmatprep.subr.mxu0 0.0
    %2383 = vmatpush1.msra.mxu0 %v2351
    %2384 = vmatprep.subr.mxu0 0.0
    %2385 = vmatpush1.msra.mxu0 0.0
    %2386 = vmatprep.subr.mxu0 0.0
    %2387 = vmatpush1.msra.mxu0 0.0
    %2388 = vmatprep.subr.mxu0 0.0
    %2389 = vmatpush1.msra.mxu0 0.0
    %2390 = vmatprep.subr.mxu0 0.0
    %2391 = vmatpush1.msra.mxu0 0.0
    %2392 = vmatprep.subr.mxu0 0.0
    %2393 = vmatpush1.msra.mxu0 0.0
    %2394 = vmatprep.subr.mxu0 0.0
    %2395 = vmatpush1.msra.mxu0 0.0
    %2396 = vmatprep.subr.mxu0 0.0
    %2397 = vmatpush1.msra.mxu0 0.0
    %2398 = vmatprep.subr.mxu0 0.0
    %2399 = vmatpush1.msra.mxu0 0.0
    %2400 = vmatprep.subr.mxu0 0.0
    %2401 = vmatpush1.msra.mxu0 0.0
    %2402 = vmatprep.subr.mxu0 0.0
    %2403 = vmatpush1.msra.mxu0 0.0
    %2404 = vmatprep.subr.mxu0 0.0
    %2405 = vmatpush1.msra.mxu0 0.0
    %2406 = vmatprep.subr.mxu0 0.0
    %2407 = vmatpush1.msra.mxu0 0.0
    %2408 = vmatprep.subr.mxu0 0.0
    %2409 = vmatpush1.msra.mxu0 0.0
    %2410 = vmatprep.subr.mxu0 0.0
    %2411 = vmatpush1.msra.mxu0 0.0
    %2412 = vmatprep.subr.mxu0 0.0
    %2413 = vmatpush1.msra.mxu0 0.0
    %2414 = vmatprep.subr.mxu0 0.0
    %2415 = vmatpush1.msra.mxu0 0.0
    %2416 = vmatprep.mubr.f32.mxu0 0.0
    %2417 = vmatmul.mubr.f32.gmra.mrb[0].mxu0 %v2335
    %v2418 = vpop.f32.mrb[0].mxu0
    %v2419 = vadd.f32 0.0, %v2418
    %v2420 = vpop.f32.mrb[0].mxu0
    %2421 = vdwg.mxu0
    %v2422 = vadd.f32 %v2332, %v2419
    %v2423 = vadd.f32 %v2422, %v2152
    %v2424 = vmul.f32 %v2423, 0.5
    %v2425 = vmul.f32 %v2423, 0.70710677
    %v2426 = verf.f32.pop %v2425
    %v2427 = vadd.f32 %v2426, 1.0
    %v2428 = vmul.f32 %v2424, %v2427
    %2429 = vst [vmem:[#allocation6 + $0x11] sm:$0xff] %v2428
    %v2430 = vld [vmem:[%s10] sm:$0x1]
    %v2431 = vld [vmem:[#allocation6] ss:$2 sm:$0xf]
    %v2432 = vld [vmem:[%s9] sm:$0xff]
    %v2433 = vld [vmem:[%s9 + $0x8] sm:$0xff]
    %v2434 = vld [vmem:[%s9 + $0x10] sm:$0xff]
    %v2435 = vld [vmem:[%s9 + $0x18] sm:$0xff]
    %v2436 = vld [vmem:[%s9 + $0x20] sm:$0xff]
    %v2437 = vld [vmem:[%s9 + $0x28] sm:$0xff]
    %v2438 = vld [vmem:[%s9 + $0x30] sm:$0xff]
    %v2439 = vld [vmem:[%s9 + $0x38] sm:$0xff]
    %v2440 = vld [vmem:[%s9 + $0x40] sm:$0xff]
    %v2441 = vld [vmem:[%s9 + $0x48] sm:$0xff]
    %v2442 = vld [vmem:[%s9 + $0x50] sm:$0xff]
    %v2443 = vld [vmem:[%s9 + $0x58] sm:$0xff]
    %v2444 = vld [vmem:[%s9 + $0x60] sm:$0xff]
    %v2445 = vld [vmem:[%s9 + $0x68] sm:$0xff]
    %v2446 = vld [vmem:[%s9 + $0x70] sm:$0xff]
    %v2447 = vld [vmem:[%s9 + $0x78] sm:$0xff]
    %s2448 = scalar_lea.vmem [#allocation6], 1
    %v2449 = vld [vmem:[%s2448] ss:$2 sm:$0xf]
    %s2450 = scalar_lea.vmem %s9, 128
    %v2451 = vld [vmem:[%s2450] sm:$0xff]
    %v2452 = vld [vmem:[%s2450 + $0x8] sm:$0xff]
    %v2453 = vld [vmem:[%s2450 + $0x10] sm:$0xff]
    %v2454 = vld [vmem:[%s2450 + $0x18] sm:$0xff]
    %v2455 = vld [vmem:[%s2450 + $0x20] sm:$0xff]
    %v2456 = vld [vmem:[%s2450 + $0x28] sm:$0xff]
    %v2457 = vld [vmem:[%s2450 + $0x30] sm:$0xff]
    %v2458 = vld [vmem:[%s2450 + $0x38] sm:$0xff]
    %v2459 = vld [vmem:[%s2450 + $0x40] sm:$0xff]
    %v2460 = vld [vmem:[%s2450 + $0x48] sm:$0xff]
    %v2461 = vld [vmem:[%s2450 + $0x50] sm:$0xff]
    %v2462 = vld [vmem:[%s2450 + $0x58] sm:$0xff]
    %v2463 = vld [vmem:[%s2450 + $0x60] sm:$0xff]
    %v2464 = vld [vmem:[%s2450 + $0x68] sm:$0xff]
    %v2465 = vld [vmem:[%s2450 + $0x70] sm:$0xff]
    %v2466 = vld [vmem:[%s2450 + $0x78] sm:$0xff]
    %2467 = vmatprep.subr.mxu0 0.0
    %2468 = vmatpush1.msra.mxu0 %v2451
    %2469 = vmatprep.subr.mxu0 0.0
    %2470 = vmatpush1.msra.mxu0 %v2452
    %2471 = vmatprep.subr.mxu0 0.0
    %2472 = vmatpush1.msra.mxu0 %v2453
    %2473 = vmatprep.subr.mxu0 0.0
    %2474 = vmatpush1.msra.mxu0 %v2454
    %2475 = vmatprep.subr.mxu0 0.0
    %2476 = vmatpush1.msra.mxu0 %v2455
    %2477 = vmatprep.subr.mxu0 0.0
    %2478 = vmatpush1.msra.mxu0 %v2456
    %2479 = vmatprep.subr.mxu0 0.0
    %2480 = vmatpush1.msra.mxu0 %v2457
    %2481 = vmatprep.subr.mxu0 0.0
    %2482 = vmatpush1.msra.mxu0 %v2458
    %2483 = vmatprep.subr.mxu0 0.0
    %2484 = vmatpush1.msra.mxu0 %v2459
    %2485 = vmatprep.subr.mxu0 0.0
    %2486 = vmatpush1.msra.mxu0 %v2460
    %2487 = vmatprep.subr.mxu0 0.0
    %2488 = vmatpush1.msra.mxu0 %v2461
    %2489 = vmatprep.subr.mxu0 0.0
    %2490 = vmatpush1.msra.mxu0 %v2462
    %2491 = vmatprep.subr.mxu0 0.0
    %2492 = vmatpush1.msra.mxu0 %v2463
    %2493 = vmatprep.subr.mxu0 0.0
    %2494 = vmatpush1.msra.mxu0 %v2464
    %2495 = vmatprep.subr.mxu0 0.0
    %2496 = vmatpush1.msra.mxu0 %v2465
    %2497 = vmatprep.subr.mxu0 0.0
    %2498 = vmatpush1.msra.mxu0 %v2466
    %2499 = vmatprep.subr.mxu0 0.0
    %2500 = vmatpush1.msra.mxu0 0.0
    %2501 = vmatprep.subr.mxu0 0.0
    %2502 = vmatpush1.msra.mxu0 0.0
    %2503 = vmatprep.subr.mxu0 0.0
    %2504 = vmatpush1.msra.mxu0 0.0
    %2505 = vmatprep.subr.mxu0 0.0
    %2506 = vmatpush1.msra.mxu0 0.0
    %2507 = vmatprep.subr.mxu0 0.0
    %2508 = vmatpush1.msra.mxu0 0.0
    %2509 = vmatprep.subr.mxu0 0.0
    %2510 = vmatpush1.msra.mxu0 0.0
    %2511 = vmatprep.subr.mxu0 0.0
    %2512 = vmatpush1.msra.mxu0 0.0
    %2513 = vmatprep.subr.mxu0 0.0
    %2514 = vmatpush1.msra.mxu0 0.0
    %2515 = vmatprep.subr.mxu0 0.0
    %2516 = vmatpush1.msra.mxu0 0.0
    %2517 = vmatprep.subr.mxu0 0.0
    %2518 = vmatpush1.msra.mxu0 0.0
    %2519 = vmatprep.subr.mxu0 0.0
    %2520 = vmatpush1.msra.mxu0 0.0
    %2521 = vmatprep.subr.mxu0 0.0
    %2522 = vmatpush1.msra.mxu0 0.0
    %2523 = vmatprep.subr.mxu0 0.0
    %2524 = vmatpush1.msra.mxu0 0.0
    %2525 = vmatprep.subr.mxu0 0.0
    %2526 = vmatpush1.msra.mxu0 0.0
    %2527 = vmatprep.subr.mxu0 0.0
    %2528 = vmatpush1.msra.mxu0 0.0
    %2529 = vmatprep.subr.mxu0 0.0
    %2530 = vmatpush1.msra.mxu0 0.0
    %2531 = vmatprep.mubr.f32.mxu0 0.0
    %2532 = vmatmul.mubr.f32.gmra.mrb[0].mxu0 %v2449
    %v2533 = vpop.f32.mrb[0].mxu0
    %v2534 = vadd.f32 0.0, %v2533
    %v2535 = vpop.f32.mrb[0].mxu0
    %2536 = vdwg.mxu0
    %2537 = vmatprep.subr.mxu0 0.0
    %2538 = vmatpush1.msra.mxu0 %v2432
    %2539 = vmatprep.subr.mxu0 0.0
    %2540 = vmatpush1.msra.mxu0 %v2433
    %2541 = vmatprep.subr.mxu0 0.0
    %2542 = vmatpush1.msra.mxu0 %v2434
    %2543 = vmatprep.subr.mxu0 0.0
    %2544 = vmatpush1.msra.mxu0 %v2435
    %2545 = vmatprep.subr.mxu0 0.0
    %2546 = vmatpush1.msra.mxu0 %v2436
    %2547 = vmatprep.subr.mxu0 0.0
    %2548 = vmatpush1.msra.mxu0 %v2437
    %2549 = vmatprep.subr.mxu0 0.0
    %2550 = vmatpush1.msra.mxu0 %v2438
    %2551 = vmatprep.subr.mxu0 0.0
    %2552 = vmatpush1.msra.mxu0 %v2439
    %2553 = vmatprep.subr.mxu0 0.0
    %2554 = vmatpush1.msra.mxu0 %v2440
    %2555 = vmatprep.subr.mxu0 0.0
    %2556 = vmatpush1.msra.mxu0 %v2441
    %2557 = vmatprep.subr.mxu0 0.0
    %2558 = vmatpush1.msra.mxu0 %v2442
    %2559 = vmatprep.subr.mxu0 0.0
    %2560 = vmatpush1.msra.mxu0 %v2443
    %2561 = vmatprep.subr.mxu0 0.0
    %2562 = vmatpush1.msra.mxu0 %v2444
    %2563 = vmatprep.subr.mxu0 0.0
    %2564 = vmatpush1.msra.mxu0 %v2445
    %2565 = vmatprep.subr.mxu0 0.0
    %2566 = vmatpush1.msra.mxu0 %v2446
    %2567 = vmatprep.subr.mxu0 0.0
    %2568 = vmatpush1.msra.mxu0 %v2447
    %2569 = vmatprep.subr.mxu0 0.0
    %2570 = vmatpush1.msra.mxu0 0.0
    %2571 = vmatprep.subr.mxu0 0.0
    %2572 = vmatpush1.msra.mxu0 0.0
    %2573 = vmatprep.subr.mxu0 0.0
    %2574 = vmatpush1.msra.mxu0 0.0
    %2575 = vmatprep.subr.mxu0 0.0
    %2576 = vmatpush1.msra.mxu0 0.0
    %2577 = vmatprep.subr.mxu0 0.0
    %2578 = vmatpush1.msra.mxu0 0.0
    %2579 = vmatprep.subr.mxu0 0.0
    %2580 = vmatpush1.msra.mxu0 0.0
    %2581 = vmatprep.subr.mxu0 0.0
    %2582 = vmatpush1.msra.mxu0 0.0
    %2583 = vmatprep.subr.mxu0 0.0
    %2584 = vmatpush1.msra.mxu0 0.0
    %2585 = vmatprep.subr.mxu0 0.0
    %2586 = vmatpush1.msra.mxu0 0.0
    %2587 = vmatprep.subr.mxu0 0.0
    %2588 = vmatpush1.msra.mxu0 0.0
    %2589 = vmatprep.subr.mxu0 0.0
    %2590 = vmatpush1.msra.mxu0 0.0
    %2591 = vmatprep.subr.mxu0 0.0
    %2592 = vmatpush1.msra.mxu0 0.0
    %2593 = vmatprep.subr.mxu0 0.0
    %2594 = vmatpush1.msra.mxu0 0.0
    %2595 = vmatprep.subr.mxu0 0.0
    %2596 = vmatpush1.msra.mxu0 0.0
    %2597 = vmatprep.subr.mxu0 0.0
    %2598 = vmatpush1.msra.mxu0 0.0
    %2599 = vmatprep.subr.mxu0 0.0
    %2600 = vmatpush1.msra.mxu0 0.0
    %2601 = vmatprep.mubr.f32.mxu0 0.0
    %2602 = vmatmul.mubr.f32.gmra.mrb[0].mxu0 %v2431
    %v2603 = vpop.f32.mrb[0].mxu0
    %v2604 = vadd.f32 %v2534, %v2603
    %v2605 = vpop.f32.mrb[0].mxu0
    %2606 = vdwg.mxu0
    %s2607 = scalar_lea.vmem [#allocation6], 2
    %v2608 = vld [vmem:[%s2607] ss:$2 sm:$0xf]
    %s2609 = scalar_lea.vmem %s9, 256
    %v2610 = vld [vmem:[%s2609] sm:$0xff]
    %v2611 = vld [vmem:[%s2609 + $0x8] sm:$0xff]
    %v2612 = vld [vmem:[%s2609 + $0x10] sm:$0xff]
    %v2613 = vld [vmem:[%s2609 + $0x18] sm:$0xff]
    %v2614 = vld [vmem:[%s2609 + $0x20] sm:$0xff]
    %v2615 = vld [vmem:[%s2609 + $0x28] sm:$0xff]
    %v2616 = vld [vmem:[%s2609 + $0x30] sm:$0xff]
    %v2617 = vld [vmem:[%s2609 + $0x38] sm:$0xff]
    %v2618 = vld [vmem:[%s2609 + $0x40] sm:$0xff]
    %v2619 = vld [vmem:[%s2609 + $0x48] sm:$0xff]
    %v2620 = vld [vmem:[%s2609 + $0x50] sm:$0xff]
    %v2621 = vld [vmem:[%s2609 + $0x58] sm:$0xff]
    %v2622 = vld [vmem:[%s2609 + $0x60] sm:$0xff]
    %v2623 = vld [vmem:[%s2609 + $0x68] sm:$0xff]
    %v2624 = vld [vmem:[%s2609 + $0x70] sm:$0xff]
    %v2625 = vld [vmem:[%s2609 + $0x78] sm:$0xff]
    %2626 = vmatprep.subr.mxu0 0.0
    %2627 = vmatpush1.msra.mxu0 %v2610
    %2628 = vmatprep.subr.mxu0 0.0
    %2629 = vmatpush1.msra.mxu0 %v2611
    %2630 = vmatprep.subr.mxu0 0.0
    %2631 = vmatpush1.msra.mxu0 %v2612
    %2632 = vmatprep.subr.mxu0 0.0
    %2633 = vmatpush1.msra.mxu0 %v2613
    %2634 = vmatprep.subr.mxu0 0.0
    %2635 = vmatpush1.msra.mxu0 %v2614
    %2636 = vmatprep.subr.mxu0 0.0
    %2637 = vmatpush1.msra.mxu0 %v2615
    %2638 = vmatprep.subr.mxu0 0.0
    %2639 = vmatpush1.msra.mxu0 %v2616
    %2640 = vmatprep.subr.mxu0 0.0
    %2641 = vmatpush1.msra.mxu0 %v2617
    %2642 = vmatprep.subr.mxu0 0.0
    %2643 = vmatpush1.msra.mxu0 %v2618
    %2644 = vmatprep.subr.mxu0 0.0
    %2645 = vmatpush1.msra.mxu0 %v2619
    %2646 = vmatprep.subr.mxu0 0.0
    %2647 = vmatpush1.msra.mxu0 %v2620
    %2648 = vmatprep.subr.mxu0 0.0
    %2649 = vmatpush1.msra.mxu0 %v2621
    %2650 = vmatprep.subr.mxu0 0.0
    %2651 = vmatpush1.msra.mxu0 %v2622
    %2652 = vmatprep.subr.mxu0 0.0
    %2653 = vmatpush1.msra.mxu0 %v2623
    %2654 = vmatprep.subr.mxu0 0.0
    %2655 = vmatpush1.msra.mxu0 %v2624
    %2656 = vmatprep.subr.mxu0 0.0
    %2657 = vmatpush1.msra.mxu0 %v2625
    %2658 = vmatprep.subr.mxu0 0.0
    %2659 = vmatpush1.msra.mxu0 0.0
    %2660 = vmatprep.subr.mxu0 0.0
    %2661 = vmatpush1.msra.mxu0 0.0
    %2662 = vmatprep.subr.mxu0 0.0
    %2663 = vmatpush1.msra.mxu0 0.0
    %2664 = vmatprep.subr.mxu0 0.0
    %2665 = vmatpush1.msra.mxu0 0.0
    %2666 = vmatprep.subr.mxu0 0.0
    %2667 = vmatpush1.msra.mxu0 0.0
    %2668 = vmatprep.subr.mxu0 0.0
    %2669 = vmatpush1.msra.mxu0 0.0
    %2670 = vmatprep.subr.mxu0 0.0
    %2671 = vmatpush1.msra.mxu0 0.0
    %2672 = vmatprep.subr.mxu0 0.0
    %2673 = vmatpush1.msra.mxu0 0.0
    %2674 = vmatprep.subr.mxu0 0.0
    %2675 = vmatpush1.msra.mxu0 0.0
    %2676 = vmatprep.subr.mxu0 0.0
    %2677 = vmatpush1.msra.mxu0 0.0
    %2678 = vmatprep.subr.mxu0 0.0
    %2679 = vmatpush1.msra.mxu0 0.0
    %2680 = vmatprep.subr.mxu0 0.0
    %2681 = vmatpush1.msra.mxu0 0.0
    %2682 = vmatprep.subr.mxu0 0.0
    %2683 = vmatpush1.msra.mxu0 0.0
    %2684 = vmatprep.subr.mxu0 0.0
    %2685 = vmatpush1.msra.mxu0 0.0
    %2686 = vmatprep.subr.mxu0 0.0
    %2687 = vmatpush1.msra.mxu0 0.0
    %2688 = vmatprep.subr.mxu0 0.0
    %2689 = vmatpush1.msra.mxu0 0.0
    %2690 = vmatprep.mubr.f32.mxu0 0.0
    %2691 = vmatmul.mubr.f32.gmra.mrb[0].mxu0 %v2608
    %v2692 = vpop.f32.mrb[0].mxu0
    %v2693 = vadd.f32 0.0, %v2692
    %v2694 = vpop.f32.mrb[0].mxu0
    %2695 = vdwg.mxu0
    %v2696 = vadd.f32 %v2604, %v2693
    %v2698 = vlaneseq
    %v2699 = vshrl.u32 %v2698, 7
    %v2700 = vsub.s32 0, %v2699
    %v2701 = vrot.slane %v2430, %v2700
    %v2703 = vadd.f32 %v2696, %v2701
    %v2704 = vmul.f32 %v2703, 0.5
    %v2705 = vmul.f32 %v2703, 0.70710677
    %v2706 = verf.f32.pop %v2705
    %v2707 = vadd.f32 %v2706, 1.0
    %v2708 = vmul.f32 %v2704, %v2707
    %vm2709 = vcmask 519168
    %2710 = vst.msk [vmem:[#allocation7] sm:$0xf] %vm2709, %v2708
    %s2711 = scalar_lea.vmem [#allocation6], 16
    %v2712 = vld [vmem:[%s2711] ss:$2 sm:$0xf]
    %v2713 = vld [vmem:[%s9] sm:$0xff]
    %v2714 = vld [vmem:[%s9 + $0x8] sm:$0xff]
    %v2715 = vld [vmem:[%s9 + $0x10] sm:$0xff]
    %v2716 = vld [vmem:[%s9 + $0x18] sm:$0xff]
    %v2717 = vld [vmem:[%s9 + $0x20] sm:$0xff]
    %v2718 = vld [vmem:[%s9 + $0x28] sm:$0xff]
    %v2719 = vld [vmem:[%s9 + $0x30] sm:$0xff]
    %v2720 = vld [vmem:[%s9 + $0x38] sm:$0xff]
    %v2721 = vld [vmem:[%s9 + $0x40] sm:$0xff]
    %v2722 = vld [vmem:[%s9 + $0x48] sm:$0xff]
    %v2723 = vld [vmem:[%s9 + $0x50] sm:$0xff]
    %v2724 = vld [vmem:[%s9 + $0x58] sm:$0xff]
    %v2725 = vld [vmem:[%s9 + $0x60] sm:$0xff]
    %v2726 = vld [vmem:[%s9 + $0x68] sm:$0xff]
    %v2727 = vld [vmem:[%s9 + $0x70] sm:$0xff]
    %v2728 = vld [vmem:[%s9 + $0x78] sm:$0xff]
    %s2729 = scalar_lea.vmem [#allocation6], 17
    %v2730 = vld [vmem:[%s2729] ss:$2 sm:$0xf]
    %v2731 = vld [vmem:[%s2450] sm:$0xff]
    %v2732 = vld [vmem:[%s2450 + $0x8] sm:$0xff]
    %v2733 = vld [vmem:[%s2450 + $0x10] sm:$0xff]
    %v2734 = vld [vmem:[%s2450 + $0x18] sm:$0xff]
    %v2735 = vld [vmem:[%s2450 + $0x20] sm:$0xff]
    %v2736 = vld [vmem:[%s2450 + $0x28] sm:$0xff]
    %v2737 = vld [vmem:[%s2450 + $0x30] sm:$0xff]
    %v2738 = vld [vmem:[%s2450 + $0x38] sm:$0xff]
    %v2739 = vld [vmem:[%s2450 + $0x40] sm:$0xff]
    %v2740 = vld [vmem:[%s2450 + $0x48] sm:$0xff]
    %v2741 = vld [vmem:[%s2450 + $0x50] sm:$0xff]
    %v2742 = vld [vmem:[%s2450 + $0x58] sm:$0xff]
    %v2743 = vld [vmem:[%s2450 + $0x60] sm:$0xff]
    %v2744 = vld [vmem:[%s2450 + $0x68] sm:$0xff]
    %v2745 = vld [vmem:[%s2450 + $0x70] sm:$0xff]
    %v2746 = vld [vmem:[%s2450 + $0x78] sm:$0xff]
    %2747 = vmatprep.subr.mxu0 0.0
    %2748 = vmatpush1.msra.mxu0 %v2731
    %2749 = vmatprep.subr.mxu0 0.0
    %2750 = vmatpush1.msra.mxu0 %v2732
    %2751 = vmatprep.subr.mxu0 0.0
    %2752 = vmatpush1.msra.mxu0 %v2733
    %2753 = vmatprep.subr.mxu0 0.0
    %2754 = vmatpush1.msra.mxu0 %v2734
    %2755 = vmatprep.subr.mxu0 0.0
    %2756 = vmatpush1.msra.mxu0 %v2735
    %2757 = vmatprep.subr.mxu0 0.0
    %2758 = vmatpush1.msra.mxu0 %v2736
    %2759 = vmatprep.subr.mxu0 0.0
    %2760 = vmatpush1.msra.mxu0 %v2737
    %2761 = vmatprep.subr.mxu0 0.0
    %2762 = vmatpush1.msra.mxu0 %v2738
    %2763 = vmatprep.subr.mxu0 0.0
    %2764 = vmatpush1.msra.mxu0 %v2739
    %2765 = vmatprep.subr.mxu0 0.0
    %2766 = vmatpush1.msra.mxu0 %v2740
    %2767 = vmatprep.subr.mxu0 0.0
    %2768 = vmatpush1.msra.mxu0 %v2741
    %2769 = vmatprep.subr.mxu0 0.0
    %2770 = vmatpush1.msra.mxu0 %v2742
    %2771 = vmatprep.subr.mxu0 0.0
    %2772 = vmatpush1.msra.mxu0 %v2743
    %2773 = vmatprep.subr.mxu0 0.0
    %2774 = vmatpush1.msra.mxu0 %v2744
    %2775 = vmatprep.subr.mxu0 0.0
    %2776 = vmatpush1.msra.mxu0 %v2745
    %2777 = vmatprep.subr.mxu0 0.0
    %2778 = vmatpush1.msra.mxu0 %v2746
    %2779 = vmatprep.subr.mxu0 0.0
    %2780 = vmatpush1.msra.mxu0 0.0
    %2781 = vmatprep.subr.mxu0 0.0
    %2782 = vmatpush1.msra.mxu0 0.0
    %2783 = vmatprep.subr.mxu0 0.0
    %2784 = vmatpush1.msra.mxu0 0.0
    %2785 = vmatprep.subr.mxu0 0.0
    %2786 = vmatpush1.msra.mxu0 0.0
    %2787 = vmatprep.subr.mxu0 0.0
    %2788 = vmatpush1.msra.mxu0 0.0
    %2789 = vmatprep.subr.mxu0 0.0
    %2790 = vmatpush1.msra.mxu0 0.0
    %2791 = vmatprep.subr.mxu0 0.0
    %2792 = vmatpush1.msra.mxu0 0.0
    %2793 = vmatprep.subr.mxu0 0.0
    %2794 = vmatpush1.msra.mxu0 0.0
    %2795 = vmatprep.subr.mxu0 0.0
    %2796 = vmatpush1.msra.mxu0 0.0
    %2797 = vmatprep.subr.mxu0 0.0
    %2798 = vmatpush1.msra.mxu0 0.0
    %2799 = vmatprep.subr.mxu0 0.0
    %2800 = vmatpush1.msra.mxu0 0.0
    %2801 = vmatprep.subr.mxu0 0.0
    %2802 = vmatpush1.msra.mxu0 0.0
    %2803 = vmatprep.subr.mxu0 0.0
    %2804 = vmatpush1.msra.mxu0 0.0
    %2805 = vmatprep.subr.mxu0 0.0
    %2806 = vmatpush1.msra.mxu0 0.0
    %2807 = vmatprep.subr.mxu0 0.0
    %2808 = vmatpush1.msra.mxu0 0.0
    %2809 = vmatprep.subr.mxu0 0.0
    %2810 = vmatpush1.msra.mxu0 0.0
    %2811 = vmatprep.mubr.f32.mxu0 0.0
    %2812 = vmatmul.mubr.f32.gmra.mrb[0].mxu0 %v2730
    %v2813 = vpop.f32.mrb[0].mxu0
    %v2814 = vadd.f32 0.0, %v2813
    %v2815 = vpop.f32.mrb[0].mxu0
    %2816 = vdwg.mxu0
    %2817 = vmatprep.subr.mxu0 0.0
    %2818 = vmatpush1.msra.mxu0 %v2713
    %2819 = vmatprep.subr.mxu0 0.0
    %2820 = vmatpush1.msra.mxu0 %v2714
    %2821 = vmatprep.subr.mxu0 0.0
    %2822 = vmatpush1.msra.mxu0 %v2715
    %2823 = vmatprep.subr.mxu0 0.0
    %2824 = vmatpush1.msra.mxu0 %v2716
    %2825 = vmatprep.subr.mxu0 0.0
    %2826 = vmatpush1.msra.mxu0 %v2717
    %2827 = vmatprep.subr.mxu0 0.0
    %2828 = vmatpush1.msra.mxu0 %v2718
    %2829 = vmatprep.subr.mxu0 0.0
    %2830 = vmatpush1.msra.mxu0 %v2719
    %2831 = vmatprep.subr.mxu0 0.0
    %2832 = vmatpush1.msra.mxu0 %v2720
    %2833 = vmatprep.subr.mxu0 0.0
    %2834 = vmatpush1.msra.mxu0 %v2721
    %2835 = vmatprep.subr.mxu0 0.0
    %2836 = vmatpush1.msra.mxu0 %v2722
    %2837 = vmatprep.subr.mxu0 0.0
    %2838 = vmatpush1.msra.mxu0 %v2723
    %2839 = vmatprep.subr.mxu0 0.0
    %2840 = vmatpush1.msra.mxu0 %v2724
    %2841 = vmatprep.subr.mxu0 0.0
    %2842 = vmatpush1.msra.mxu0 %v2725
    %2843 = vmatprep.subr.mxu0 0.0
    %2844 = vmatpush1.msra.mxu0 %v2726
    %2845 = vmatprep.subr.mxu0 0.0
    %2846 = vmatpush1.msra.mxu0 %v2727
    %2847 = vmatprep.subr.mxu0 0.0
    %2848 = vmatpush1.msra.mxu0 %v2728
    %2849 = vmatprep.subr.mxu0 0.0
    %2850 = vmatpush1.msra.mxu0 0.0
    %2851 = vmatprep.subr.mxu0 0.0
    %2852 = vmatpush1.msra.mxu0 0.0
    %2853 = vmatprep.subr.mxu0 0.0
    %2854 = vmatpush1.msra.mxu0 0.0
    %2855 = vmatprep.subr.mxu0 0.0
    %2856 = vmatpush1.msra.mxu0 0.0
    %2857 = vmatprep.subr.mxu0 0.0
    %2858 = vmatpush1.msra.mxu0 0.0
    %2859 = vmatprep.subr.mxu0 0.0
    %2860 = vmatpush1.msra.mxu0 0.0
    %2861 = vmatprep.subr.mxu0 0.0
    %2862 = vmatpush1.msra.mxu0 0.0
    %2863 = vmatprep.subr.mxu0 0.0
    %2864 = vmatpush1.msra.mxu0 0.0
    %2865 = vmatprep.subr.mxu0 0.0
    %2866 = vmatpush1.msra.mxu0 0.0
    %2867 = vmatprep.subr.mxu0 0.0
    %2868 = vmatpush1.msra.mxu0 0.0
    %2869 = vmatprep.subr.mxu0 0.0
    %2870 = vmatpush1.msra.mxu0 0.0
    %2871 = vmatprep.subr.mxu0 0.0
    %2872 = vmatpush1.msra.mxu0 0.0
    %2873 = vmatprep.subr.mxu0 0.0
    %2874 = vmatpush1.msra.mxu0 0.0
    %2875 = vmatprep.subr.mxu0 0.0
    %2876 = vmatpush1.msra.mxu0 0.0
    %2877 = vmatprep.subr.mxu0 0.0
    %2878 = vmatpush1.msra.mxu0 0.0
    %2879 = vmatprep.subr.mxu0 0.0
    %2880 = vmatpush1.msra.mxu0 0.0
    %2881 = vmatprep.mubr.f32.mxu0 0.0
    %2882 = vmatmul.mubr.f32.gmra.mrb[0].mxu0 %v2712
    %v2883 = vpop.f32.mrb[0].mxu0
    %v2884 = vadd.f32 %v2814, %v2883
    %v2885 = vpop.f32.mrb[0].mxu0
    %2886 = vdwg.mxu0
    %s2887 = scalar_lea.vmem [#allocation6], 18
    %v2888 = vld [vmem:[%s2887] ss:$2 sm:$0xf]
    %v2889 = vld [vmem:[%s2609] sm:$0xff]
    %v2890 = vld [vmem:[%s2609 + $0x8] sm:$0xff]
    %v2891 = vld [vmem:[%s2609 + $0x10] sm:$0xff]
    %v2892 = vld [vmem:[%s2609 + $0x18] sm:$0xff]
    %v2893 = vld [vmem:[%s2609 + $0x20] sm:$0xff]
    %v2894 = vld [vmem:[%s2609 + $0x28] sm:$0xff]
    %v2895 = vld [vmem:[%s2609 + $0x30] sm:$0xff]
    %v2896 = vld [vmem:[%s2609 + $0x38] sm:$0xff]
    %v2897 = vld [vmem:[%s2609 + $0x40] sm:$0xff]
    %v2898 = vld [vmem:[%s2609 + $0x48] sm:$0xff]
    %v2899 = vld [vmem:[%s2609 + $0x50] sm:$0xff]
    %v2900 = vld [vmem:[%s2609 + $0x58] sm:$0xff]
    %v2901 = vld [vmem:[%s2609 + $0x60] sm:$0xff]
    %v2902 = vld [vmem:[%s2609 + $0x68] sm:$0xff]
    %v2903 = vld [vmem:[%s2609 + $0x70] sm:$0xff]
    %v2904 = vld [vmem:[%s2609 + $0x78] sm:$0xff]
    %2905 = vmatprep.subr.mxu0 0.0
    %2906 = vmatpush1.msra.mxu0 %v2889
    %2907 = vmatprep.subr.mxu0 0.0
    %2908 = vmatpush1.msra.mxu0 %v2890
    %2909 = vmatprep.subr.mxu0 0.0
    %2910 = vmatpush1.msra.mxu0 %v2891
    %2911 = vmatprep.subr.mxu0 0.0
    %2912 = vmatpush1.msra.mxu0 %v2892
    %2913 = vmatprep.subr.mxu0 0.0
    %2914 = vmatpush1.msra.mxu0 %v2893
    %2915 = vmatprep.subr.mxu0 0.0
    %2916 = vmatpush1.msra.mxu0 %v2894
    %2917 = vmatprep.subr.mxu0 0.0
    %2918 = vmatpush1.msra.mxu0 %v2895
    %2919 = vmatprep.subr.mxu0 0.0
    %2920 = vmatpush1.msra.mxu0 %v2896
    %2921 = vmatprep.subr.mxu0 0.0
    %2922 = vmatpush1.msra.mxu0 %v2897
    %2923 = vmatprep.subr.mxu0 0.0
    %2924 = vmatpush1.msra.mxu0 %v2898
    %2925 = vmatprep.subr.mxu0 0.0
    %2926 = vmatpush1.msra.mxu0 %v2899
    %2927 = vmatprep.subr.mxu0 0.0
    %2928 = vmatpush1.msra.mxu0 %v2900
    %2929 = vmatprep.subr.mxu0 0.0
    %2930 = vmatpush1.msra.mxu0 %v2901
    %2931 = vmatprep.subr.mxu0 0.0
    %2932 = vmatpush1.msra.mxu0 %v2902
    %2933 = vmatprep.subr.mxu0 0.0
    %2934 = vmatpush1.msra.mxu0 %v2903
    %2935 = vmatprep.subr.mxu0 0.0
    %2936 = vmatpush1.msra.mxu0 %v2904
    %2937 = vmatprep.subr.mxu0 0.0
    %2938 = vmatpush1.msra.mxu0 0.0
    %2939 = vmatprep.subr.mxu0 0.0
    %2940 = vmatpush1.msra.mxu0 0.0
    %2941 = vmatprep.subr.mxu0 0.0
    %2942 = vmatpush1.msra.mxu0 0.0
    %2943 = vmatprep.subr.mxu0 0.0
    %2944 = vmatpush1.msra.mxu0 0.0
    %2945 = vmatprep.subr.mxu0 0.0
    %2946 = vmatpush1.msra.mxu0 0.0
    %2947 = vmatprep.subr.mxu0 0.0
    %2948 = vmatpush1.msra.mxu0 0.0
    %2949 = vmatprep.subr.mxu0 0.0
    %2950 = vmatpush1.msra.mxu0 0.0
    %2951 = vmatprep.subr.mxu0 0.0
    %2952 = vmatpush1.msra.mxu0 0.0
    %2953 = vmatprep.subr.mxu0 0.0
    %2954 = vmatpush1.msra.mxu0 0.0
    %2955 = vmatprep.subr.mxu0 0.0
    %2956 = vmatpush1.msra.mxu0 0.0
    %2957 = vmatprep.subr.mxu0 0.0
    %2958 = vmatpush1.msra.mxu0 0.0
    %2959 = vmatprep.subr.mxu0 0.0
    %2960 = vmatpush1.msra.mxu0 0.0
    %2961 = vmatprep.subr.mxu0 0.0
    %2962 = vmatpush1.msra.mxu0 0.0
    %2963 = vmatprep.subr.mxu0 0.0
    %2964 = vmatpush1.msra.mxu0 0.0
    %2965 = vmatprep.subr.mxu0 0.0
    %2966 = vmatpush1.msra.mxu0 0.0
    %2967 = vmatprep.subr.mxu0 0.0
    %2968 = vmatpush1.msra.mxu0 0.0
    %2969 = vmatprep.mubr.f32.mxu0 0.0
    %2970 = vmatmul.mubr.f32.gmra.mrb[0].mxu0 %v2888
    %v2971 = vpop.f32.mrb[0].mxu0
    %v2972 = vadd.f32 0.0, %v2971
    %v2973 = vpop.f32.mrb[0].mxu0
    %2974 = vdwg.mxu0
    %v2975 = vadd.f32 %v2884, %v2972
    %v2976 = vadd.f32 %v2975, %v2701
    %v2977 = vmul.f32 %v2976, 0.5
    %v2978 = vmul.f32 %v2976, 0.70710677
    %v2979 = verf.f32.pop %v2978
    %v2980 = vadd.f32 %v2979, 1.0
    %v2981 = vmul.f32 %v2977, %v2980
    %2982 = vst.msk [vmem:[#allocation7 + $0x4] sm:$0xf] %vm2709, %v2981
    %v2983 = vld [vmem:[#allocation7] ss:$4 sm:$0x3]
    %v2984 = vld [vmem:[%s11] sm:$0xff]
    %v2985 = vld [vmem:[%s11 + $0x8] sm:$0xff]
    %v2986 = vld [vmem:[%s11 + $0x10] sm:$0xff]
    %v2987 = vld [vmem:[%s11 + $0x18] sm:$0xff]
    %v2988 = vld [vmem:[%s11 + $0x20] sm:$0xff]
    %v2989 = vld [vmem:[%s11 + $0x28] sm:$0xff]
    %v2990 = vld [vmem:[%s11 + $0x30] sm:$0xff]
    %v2991 = vld [vmem:[%s11 + $0x38] sm:$0xff]
    %s2992 = scalar_lea.vmem [#allocation7], 1
    %v2993 = vld [vmem:[%s2992] ss:$4 sm:$0x3]
    %s2994 = scalar_lea.vmem %s11, 64
    %v2995 = vld [vmem:[%s2994] sm:$0xff]
    %v2996 = vld [vmem:[%s2994 + $0x8] sm:$0xff]
    %v2997 = vld [vmem:[%s2994 + $0x10] sm:$0xff]
    %v2998 = vld [vmem:[%s2994 + $0x18] sm:$0xff]
    %v2999 = vld [vmem:[%s2994 + $0x20] sm:$0xff]
    %v3000 = vld [vmem:[%s2994 + $0x28] sm:$0xff]
    %v3001 = vld [vmem:[%s2994 + $0x30] sm:$0xff]
    %v3002 = vld [vmem:[%s2994 + $0x38] sm:$0xff]
    %vm3003 = vcmask 523264
    %v3005 = vsel %vm3003, %v2993, 0
    %3007 = vmatprep.subr.mxu0 0.0
    %3008 = vmatpush1.msra.mxu0 %v2995
    %3009 = vmatprep.subr.mxu0 0.0
    %3010 = vmatpush1.msra.mxu0 %v2996
    %3011 = vmatprep.subr.mxu0 0.0
    %3012 = vmatpush1.msra.mxu0 %v2997
    %3013 = vmatprep.subr.mxu0 0.0
    %3014 = vmatpush1.msra.mxu0 %v2998
    %3015 = vmatprep.subr.mxu0 0.0
    %3016 = vmatpush1.msra.mxu0 %v2999
    %3017 = vmatprep.subr.mxu0 0.0
    %3018 = vmatpush1.msra.mxu0 %v3000
    %3019 = vmatprep.subr.mxu0 0.0
    %3020 = vmatpush1.msra.mxu0 %v3001
    %3021 = vmatprep.subr.mxu0 0.0
    %3022 = vmatpush1.msra.mxu0 %v3002
    %3023 = vmatprep.subr.mxu0 0.0
    %3024 = vmatpush1.msra.mxu0 0.0
    %3025 = vmatprep.subr.mxu0 0.0
    %3026 = vmatpush1.msra.mxu0 0.0
    %3027 = vmatprep.subr.mxu0 0.0
    %3028 = vmatpush1.msra.mxu0 0.0
    %3029 = vmatprep.subr.mxu0 0.0
    %3030 = vmatpush1.msra.mxu0 0.0
    %3031 = vmatprep.subr.mxu0 0.0
    %3032 = vmatpush1.msra.mxu0 0.0
    %3033 = vmatprep.subr.mxu0 0.0
    %3034 = vmatpush1.msra.mxu0 0.0
    %3035 = vmatprep.subr.mxu0 0.0
    %3036 = vmatpush1.msra.mxu0 0.0
    %3037 = vmatprep.subr.mxu0 0.0
    %3038 = vmatpush1.msra.mxu0 0.0
    %3039 = vmatprep.subr.mxu0 0.0
    %3040 = vmatpush1.msra.mxu0 0.0
    %3041 = vmatprep.subr.mxu0 0.0
    %3042 = vmatpush1.msra.mxu0 0.0
    %3043 = vmatprep.subr.mxu0 0.0
    %3044 = vmatpush1.msra.mxu0 0.0
    %3045 = vmatprep.subr.mxu0 0.0
    %3046 = vmatpush1.msra.mxu0 0.0
    %3047 = vmatprep.subr.mxu0 0.0
    %3048 = vmatpush1.msra.mxu0 0.0
    %3049 = vmatprep.subr.mxu0 0.0
    %3050 = vmatpush1.msra.mxu0 0.0
    %3051 = vmatprep.subr.mxu0 0.0
    %3052 = vmatpush1.msra.mxu0 0.0
    %3053 = vmatprep.subr.mxu0 0.0
    %3054 = vmatpush1.msra.mxu0 0.0
    %3055 = vmatprep.subr.mxu0 0.0
    %3056 = vmatpush1.msra.mxu0 0.0
    %3057 = vmatprep.subr.mxu0 0.0
    %3058 = vmatpush1.msra.mxu0 0.0
    %3059 = vmatprep.subr.mxu0 0.0
    %3060 = vmatpush1.msra.mxu0 0.0
    %3061 = vmatprep.subr.mxu0 0.0
    %3062 = vmatpush1.msra.mxu0 0.0
    %3063 = vmatprep.subr.mxu0 0.0
    %3064 = vmatpush1.msra.mxu0 0.0
    %3065 = vmatprep.subr.mxu0 0.0
    %3066 = vmatpush1.msra.mxu0 0.0
    %3067 = vmatprep.subr.mxu0 0.0
    %3068 = vmatpush1.msra.mxu0 0.0
    %3069 = vmatprep.subr.mxu0 0.0
    %3070 = vmatpush1.msra.mxu0 0.0
    %3071 = vmatprep.mubr.f32.mxu0 0.0
    %3072 = vmatmul.mubr.f32.gmra.mrb[0].mxu0 %v3005
    %v3073 = vpop.f32.mrb[0].mxu0
    %v3074 = vadd.f32 0.0, %v3073
    %v3075 = vpop.f32.mrb[0].mxu0
    %3076 = vdwg.mxu0
    %v3078 = vsel %vm3003, %v2983, 0
    %3080 = vmatprep.subr.mxu0 0.0
    %3081 = vmatpush1.msra.mxu0 %v2984
    %3082 = vmatprep.subr.mxu0 0.0
    %3083 = vmatpush1.msra.mxu0 %v2985
    %3084 = vmatprep.subr.mxu0 0.0
    %3085 = vmatpush1.msra.mxu0 %v2986
    %3086 = vmatprep.subr.mxu0 0.0
    %3087 = vmatpush1.msra.mxu0 %v2987
    %3088 = vmatprep.subr.mxu0 0.0
    %3089 = vmatpush1.msra.mxu0 %v2988
    %3090 = vmatprep.subr.mxu0 0.0
    %3091 = vmatpush1.msra.mxu0 %v2989
    %3092 = vmatprep.subr.mxu0 0.0
    %3093 = vmatpush1.msra.mxu0 %v2990
    %3094 = vmatprep.subr.mxu0 0.0
    %3095 = vmatpush1.msra.mxu0 %v2991
    %3096 = vmatprep.subr.mxu0 0.0
    %3097 = vmatpush1.msra.mxu0 0.0
    %3098 = vmatprep.subr.mxu0 0.0
    %3099 = vmatpush1.msra.mxu0 0.0
    %3100 = vmatprep.subr.mxu0 0.0
    %3101 = vmatpush1.msra.mxu0 0.0
    %3102 = vmatprep.subr.mxu0 0.0
    %3103 = vmatpush1.msra.mxu0 0.0
    %3104 = vmatprep.subr.mxu0 0.0
    %3105 = vmatpush1.msra.mxu0 0.0
    %3106 = vmatprep.subr.mxu0 0.0
    %3107 = vmatpush1.msra.mxu0 0.0
    %3108 = vmatprep.subr.mxu0 0.0
    %3109 = vmatpush1.msra.mxu0 0.0
    %3110 = vmatprep.subr.mxu0 0.0
    %3111 = vmatpush1.msra.mxu0 0.0
    %3112 = vmatprep.subr.mxu0 0.0
    %3113 = vmatpush1.msra.mxu0 0.0
    %3114 = vmatprep.subr.mxu0 0.0
    %3115 = vmatpush1.msra.mxu0 0.0
    %3116 = vmatprep.subr.mxu0 0.0
    %3117 = vmatpush1.msra.mxu0 0.0
    %3118 = vmatprep.subr.mxu0 0.0
    %3119 = vmatpush1.msra.mxu0 0.0
    %3120 = vmatprep.subr.mxu0 0.0
    %3121 = vmatpush1.msra.mxu0 0.0
    %3122 = vmatprep.subr.mxu0 0.0
    %3123 = vmatpush1.msra.mxu0 0.0
    %3124 = vmatprep.subr.mxu0 0.0
    %3125 = vmatpush1.msra.mxu0 0.0
    %3126 = vmatprep.subr.mxu0 0.0
    %3127 = vmatpush1.msra.mxu0 0.0
    %3128 = vmatprep.subr.mxu0 0.0
    %3129 = vmatpush1.msra.mxu0 0.0
    %3130 = vmatprep.subr.mxu0 0.0
    %3131 = vmatpush1.msra.mxu0 0.0
    %3132 = vmatprep.subr.mxu0 0.0
    %3133 = vmatpush1.msra.mxu0 0.0
    %3134 = vmatprep.subr.mxu0 0.0
    %3135 = vmatpush1.msra.mxu0 0.0
    %3136 = vmatprep.subr.mxu0 0.0
    %3137 = vmatpush1.msra.mxu0 0.0
    %3138 = vmatprep.subr.mxu0 0.0
    %3139 = vmatpush1.msra.mxu0 0.0
    %3140 = vmatprep.subr.mxu0 0.0
    %3141 = vmatpush1.msra.mxu0 0.0
    %3142 = vmatprep.subr.mxu0 0.0
    %3143 = vmatpush1.msra.mxu0 0.0
    %3144 = vmatprep.mubr.f32.mxu0 0.0
    %3145 = vmatmul.mubr.f32.gmra.mrb[0].mxu0 %v3078
    %v3146 = vpop.f32.mrb[0].mxu0
    %v3147 = vadd.f32 %v3074, %v3146
    %v3148 = vpop.f32.mrb[0].mxu0
    %3149 = vdwg.mxu0
    %s3150 = scalar_lea.vmem [#allocation7], 2
    %v3151 = vld [vmem:[%s3150] ss:$4 sm:$0x3]
    %s3152 = scalar_lea.vmem %s11, 128
    %v3153 = vld [vmem:[%s3152] sm:$0xff]
    %v3154 = vld [vmem:[%s3152 + $0x8] sm:$0xff]
    %v3155 = vld [vmem:[%s3152 + $0x10] sm:$0xff]
    %v3156 = vld [vmem:[%s3152 + $0x18] sm:$0xff]
    %v3157 = vld [vmem:[%s3152 + $0x20] sm:$0xff]
    %v3158 = vld [vmem:[%s3152 + $0x28] sm:$0xff]
    %v3159 = vld [vmem:[%s3152 + $0x30] sm:$0xff]
    %v3160 = vld [vmem:[%s3152 + $0x38] sm:$0xff]
    %v3162 = vsel %vm3003, %v3151, 0
    %3164 = vmatprep.subr.mxu0 0.0
    %3165 = vmatpush1.msra.mxu0 %v3153
    %3166 = vmatprep.subr.mxu0 0.0
    %3167 = vmatpush1.msra.mxu0 %v3154
    %3168 = vmatprep.subr.mxu0 0.0
    %3169 = vmatpush1.msra.mxu0 %v3155
    %3170 = vmatprep.subr.mxu0 0.0
    %3171 = vmatpush1.msra.mxu0 %v3156
    %3172 = vmatprep.subr.mxu0 0.0
    %3173 = vmatpush1.msra.mxu0 %v3157
    %3174 = vmatprep.subr.mxu0 0.0
    %3175 = vmatpush1.msra.mxu0 %v3158
    %3176 = vmatprep.subr.mxu0 0.0
    %3177 = vmatpush1.msra.mxu0 %v3159
    %3178 = vmatprep.subr.mxu0 0.0
    %3179 = vmatpush1.msra.mxu0 %v3160
    %3180 = vmatprep.subr.mxu0 0.0
    %3181 = vmatpush1.msra.mxu0 0.0
    %3182 = vmatprep.subr.mxu0 0.0
    %3183 = vmatpush1.msra.mxu0 0.0
    %3184 = vmatprep.subr.mxu0 0.0
    %3185 = vmatpush1.msra.mxu0 0.0
    %3186 = vmatprep.subr.mxu0 0.0
    %3187 = vmatpush1.msra.mxu0 0.0
    %3188 = vmatprep.subr.mxu0 0.0
    %3189 = vmatpush1.msra.mxu0 0.0
    %3190 = vmatprep.subr.mxu0 0.0
    %3191 = vmatpush1.msra.mxu0 0.0
    %3192 = vmatprep.subr.mxu0 0.0
    %3193 = vmatpush1.msra.mxu0 0.0
    %3194 = vmatprep.subr.mxu0 0.0
    %3195 = vmatpush1.msra.mxu0 0.0
    %3196 = vmatprep.subr.mxu0 0.0
    %3197 = vmatpush1.msra.mxu0 0.0
    %3198 = vmatprep.subr.mxu0 0.0
    %3199 = vmatpush1.msra.mxu0 0.0
    %3200 = vmatprep.subr.mxu0 0.0
    %3201 = vmatpush1.msra.mxu0 0.0
    %3202 = vmatprep.subr.mxu0 0.0
    %3203 = vmatpush1.msra.mxu0 0.0
    %3204 = vmatprep.subr.mxu0 0.0
    %3205 = vmatpush1.msra.mxu0 0.0
    %3206 = vmatprep.subr.mxu0 0.0
    %3207 = vmatpush1.msra.mxu0 0.0
    %3208 = vmatprep.subr.mxu0 0.0
    %3209 = vmatpush1.msra.mxu0 0.0
    %3210 = vmatprep.subr.mxu0 0.0
    %3211 = vmatpush1.msra.mxu0 0.0
    %3212 = vmatprep.subr.mxu0 0.0
    %3213 = vmatpush1.msra.mxu0 0.0
    %3214 = vmatprep.subr.mxu0 0.0
    %3215 = vmatpush1.msra.mxu0 0.0
    %3216 = vmatprep.subr.mxu0 0.0
    %3217 = vmatpush1.msra.mxu0 0.0
    %3218 = vmatprep.subr.mxu0 0.0
    %3219 = vmatpush1.msra.mxu0 0.0
    %3220 = vmatprep.subr.mxu0 0.0
    %3221 = vmatpush1.msra.mxu0 0.0
    %3222 = vmatprep.subr.mxu0 0.0
    %3223 = vmatpush1.msra.mxu0 0.0
    %3224 = vmatprep.subr.mxu0 0.0
    %3225 = vmatpush1.msra.mxu0 0.0
    %3226 = vmatprep.subr.mxu0 0.0
    %3227 = vmatpush1.msra.mxu0 0.0
    %3228 = vmatprep.mubr.f32.mxu0 0.0
    %3229 = vmatmul.mubr.f32.gmra.mrb[0].mxu0 %v3162
    %v3230 = vpop.f32.mrb[0].mxu0
    %v3231 = vadd.f32 0.0, %v3230
    %v3232 = vpop.f32.mrb[0].mxu0
    %3233 = vdwg.mxu0
    %v3234 = vadd.f32 %v3147, %v3231
    %s3235 = scalar_lea.vmem [#allocation7], 3
    %v3236 = vld [vmem:[%s3235] ss:$4 sm:$0x3]
    %s3237 = scalar_lea.vmem %s11, 192
    %v3238 = vld [vmem:[%s3237] sm:$0xff]
    %v3239 = vld [vmem:[%s3237 + $0x8] sm:$0xff]
    %v3240 = vld [vmem:[%s3237 + $0x10] sm:$0xff]
    %v3241 = vld [vmem:[%s3237 + $0x18] sm:$0xff]
    %v3242 = vld [vmem:[%s3237 + $0x20] sm:$0xff]
    %v3243 = vld [vmem:[%s3237 + $0x28] sm:$0xff]
    %v3244 = vld [vmem:[%s3237 + $0x30] sm:$0xff]
    %v3245 = vld [vmem:[%s3237 + $0x38] sm:$0xff]
    %v3247 = vsel %vm3003, %v3236, 0
    %3249 = vmatprep.subr.mxu0 0.0
    %3250 = vmatpush1.msra.mxu0 %v3238
    %3251 = vmatprep.subr.mxu0 0.0
    %3252 = vmatpush1.msra.mxu0 %v3239
    %3253 = vmatprep.subr.mxu0 0.0
    %3254 = vmatpush1.msra.mxu0 %v3240
    %3255 = vmatprep.subr.mxu0 0.0
    %3256 = vmatpush1.msra.mxu0 %v3241
    %3257 = vmatprep.subr.mxu0 0.0
    %3258 = vmatpush1.msra.mxu0 %v3242
    %3259 = vmatprep.subr.mxu0 0.0
    %3260 = vmatpush1.msra.mxu0 %v3243
    %3261 = vmatprep.subr.mxu0 0.0
    %3262 = vmatpush1.msra.mxu0 %v3244
    %3263 = vmatprep.subr.mxu0 0.0
    %3264 = vmatpush1.msra.mxu0 %v3245
    %3265 = vmatprep.subr.mxu0 0.0
    %3266 = vmatpush1.msra.mxu0 0.0
    %3267 = vmatprep.subr.mxu0 0.0
    %3268 = vmatpush1.msra.mxu0 0.0
    %3269 = vmatprep.subr.mxu0 0.0
    %3270 = vmatpush1.msra.mxu0 0.0
    %3271 = vmatprep.subr.mxu0 0.0
    %3272 = vmatpush1.msra.mxu0 0.0
    %3273 = vmatprep.subr.mxu0 0.0
    %3274 = vmatpush1.msra.mxu0 0.0
    %3275 = vmatprep.subr.mxu0 0.0
    %3276 = vmatpush1.msra.mxu0 0.0
    %3277 = vmatprep.subr.mxu0 0.0
    %3278 = vmatpush1.msra.mxu0 0.0
    %3279 = vmatprep.subr.mxu0 0.0
    %3280 = vmatpush1.msra.mxu0 0.0
    %3281 = vmatprep.subr.mxu0 0.0
    %3282 = vmatpush1.msra.mxu0 0.0
    %3283 = vmatprep.subr.mxu0 0.0
    %3284 = vmatpush1.msra.mxu0 0.0
    %3285 = vmatprep.subr.mxu0 0.0
    %3286 = vmatpush1.msra.mxu0 0.0
    %3287 = vmatprep.subr.mxu0 0.0
    %3288 = vmatpush1.msra.mxu0 0.0
    %3289 = vmatprep.subr.mxu0 0.0
    %3290 = vmatpush1.msra.mxu0 0.0
    %3291 = vmatprep.subr.mxu0 0.0
    %3292 = vmatpush1.msra.mxu0 0.0
    %3293 = vmatprep.subr.mxu0 0.0
    %3294 = vmatpush1.msra.mxu0 0.0
    %3295 = vmatprep.subr.mxu0 0.0
    %3296 = vmatpush1.msra.mxu0 0.0
    %3297 = vmatprep.subr.mxu0 0.0
    %3298 = vmatpush1.msra.mxu0 0.0
    %3299 = vmatprep.subr.mxu0 0.0
    %3300 = vmatpush1.msra.mxu0 0.0
    %3301 = vmatprep.subr.mxu0 0.0
    %3302 = vmatpush1.msra.mxu0 0.0
    %3303 = vmatprep.subr.mxu0 0.0
    %3304 = vmatpush1.msra.mxu0 0.0
    %3305 = vmatprep.subr.mxu0 0.0
    %3306 = vmatpush1.msra.mxu0 0.0
    %3307 = vmatprep.subr.mxu0 0.0
    %3308 = vmatpush1.msra.mxu0 0.0
    %3309 = vmatprep.subr.mxu0 0.0
    %3310 = vmatpush1.msra.mxu0 0.0
    %3311 = vmatprep.subr.mxu0 0.0
    %3312 = vmatpush1.msra.mxu0 0.0
    %3313 = vmatprep.mubr.f32.mxu0 0.0
    %3314 = vmatmul.mubr.f32.gmra.mrb[0].mxu0 %v3247
    %v3315 = vpop.f32.mrb[0].mxu0
    %v3316 = vadd.f32 0.0, %v3315
    %v3317 = vpop.f32.mrb[0].mxu0
    %3318 = vdwg.mxu0
    %v3319 = vadd.f32 %v3234, %v3316
    %v3320 = vld [vmem:[%s12] sm:$0x1]
    %v3322 = vlaneseq
    %v3323 = vshrl.u32 %v3322, 7
    %v3324 = vsub.s32 0, %v3323
    %v3325 = vrot.slane %v3320, %v3324
    %v3327 = vadd.f32 %v3319, %v3325
    %vm3328 = vcmask 254976
    %3329 = vst.msk [vmem:[#allocation14] sm:$0x3] %vm3328, %v3327
    // Predicated region
    $region66: #{tpu_custom_call.1} parent=1 // pred_check
      _
    $region67: #{tpu_custom_call.1} parent=1 // pred_check_branch
      %3331 = sbr.rel (0) target = $region69
    $region68: #{tpu_custom_call.1} parent=1 // pred_region
      %s3333 = ssub.s32 32, 32
      %3334 = vsyncadd [#allocation10], %s3333
      %s3336 = sshll.u32 [#allocation14], 4
      %s3337 = int_to_ptr.vmem [resolvable:$true] %s3336
      %3339 = dma.vmem_to_hbm [thread:$0]  %s3337, 32, %s13, [#allocation10]
    $region69: #{tpu_custom_call.1} parent=1 // pred_fallthru
      _
    // Predicated region
    $region70: #{tpu_custom_call.1} parent=1 // pred_check
      _
    $region71: #{tpu_custom_call.1} parent=1 // pred_check_branch
      %3341 = sbr.rel (0) target = $region73
    $region72: #{tpu_custom_call.1} parent=1 // pred_region
      %3342 = dma.done [#allocation10], 32
    $region73: #{tpu_custom_call.1} parent=1 // pred_fallthru
      _
    %3343 = vsyncpa [#allocation9], 1
    %3344 = vsyncpa [#allocation12], 1
    %3345 = vsyncpa [#allocation10], 1

</llo_original>
